<compile_context>
chip_gen: v7x
topology: tpu7x:2x2x1
jax: 0.10.0
libtpu: 0.0.40
codegen_flags: <defaults>
</compile_context>

<pallas_src>
import math
import functools

import jax
import jax.numpy as jnp
from jax.experimental import pallas as pl
from jax.experimental.pallas import tpu as pltpu


def _layernorm(h, g, b, eps=1e-5):
    # PyTorch nn.LayerNorm: biased variance over last dim, eps inside sqrt.
    mu = jnp.mean(h, axis=-1, keepdims=True)
    var = jnp.mean((h - mu) ** 2, axis=-1, keepdims=True)
    return (h - mu) * jax.lax.rsqrt(var + eps) * g + b


def block_kernel(x_ref, gains_ref, bqkv_ref, b1_ref, wqkv_ref, wo_ref, w1_ref, w2_ref,
                 out_ref, attn_sc, *, batch_per_step, seq_len, num_heads):
    f32 = jnp.float32
    bf16 = jnp.bfloat16
    Bc, N, H = batch_per_step, seq_len, num_heads

    x = x_ref[...].astype(f32)                                    # (Bc*N, D) f32

    # ---- ln_1 on the flattened slab ----
    h1 = _layernorm(x, gains_ref[0], gains_ref[1])                # (Bc*N, D) f32
    h1b = h1.astype(bf16)

    # ---- self-attention: static (batch, head) loop of rank-2 MXU matmuls ----
    # wqkv_ref[proj, h] is a free leading-axis tile select (no lane slicing); the head-merge +
    # output projection is fused by accumulating per-head (N,hd)@(hd,D) partials into `acc`.
    for b in range(Bc):
        hb = h1b[b * N:(b + 1) * N, :]                            # (N, D) bf16, sublane-aligned
        acc = None
        for h in range(H):
            q = jnp.dot(hb, wqkv_ref[0, h], preferred_element_type=f32) + bqkv_ref[0, h]  # (N,hd)
            k = jnp.dot(hb, wqkv_ref[1, h], preferred_element_type=f32) + bqkv_ref[1, h]
            v = jnp.dot(hb, wqkv_ref[2, h], preferred_element_type=f32) + bqkv_ref[2, h]
            # scores: q @ k^T via dimension numbers (no transpose materialized)
            s = jnp.einsum('ne,me->nm', q.astype(bf16), k.astype(bf16),
                           preferred_element_type=f32)            # (N, N) f32
            s = s - jnp.max(s, axis=-1, keepdims=True)
            p = jnp.exp(s)
            p = p * pl.reciprocal(jnp.sum(p, axis=-1, keepdims=True), approx=True)
            o = jnp.dot(p.astype(bf16), v.astype(bf16), preferred_element_type=f32)       # (N,hd)
            contrib = jnp.dot(o.astype(bf16), wo_ref[h], preferred_element_type=f32)      # (N, D)
            acc = contrib if acc is None else acc + contrib
        attn_sc[pl.ds(b * N, N), :] = acc + gains_ref[4]          # + bo

    # ---- residual 1, ln_2, MLP, residual 2 (single fused store) ----
    x1 = x + attn_sc[...]                                         # (Bc*N, D) f32
    h2 = _layernorm(x1, gains_ref[2], gains_ref[3])
    f = jnp.dot(h2.astype(bf16), w1_ref[...], preferred_element_type=f32) + b1_ref[...]   # (R, M)
    f = jax.nn.gelu(f, approximate=True)                          # tanh GELU -> EUP
    proj = jnp.dot(f.astype(bf16), w2_ref[...], preferred_element_type=f32) + gains_ref[5]
    out_ref[...] = (x1 + proj).astype(out_ref.dtype)


def _prep_weights(params, num_heads):
    """Host-side: per-head QKV weights on a leading axis, scale folded into q, packed biases."""
    D = params["wq"].shape[0]
    H = num_heads
    hd = D // H
    scale = 1.0 / math.sqrt(hd)
    bf16 = jnp.bfloat16
    f32 = jnp.float32

    def per_head_w(w):                         # (D, D) -> (H, D, hd)
        return jnp.transpose(w.reshape(D, H, hd), (1, 0, 2))

    def per_head_b(b):                         # (1, D) -> (H, 1, hd)
        return jnp.transpose(b.reshape(1, H, hd), (1, 0, 2))

    wqkv = jnp.stack([per_head_w(params["wq"]) * scale,
                      per_head_w(params["wk"]),
                      per_head_w(params["wv"])], axis=0).astype(bf16)        # (3, H, D, hd)
    bqkv = jnp.stack([per_head_b(params["bq"]) * scale,
                      per_head_b(params["bk"]),
                      per_head_b(params["bv"])], axis=0).astype(f32)         # (3, H, 1, hd)
    wo = params["wo"].reshape(H, hd, D).astype(bf16)                          # (H, hd, D)

    # pack the six (1, D) vectors into one array: [ln1_g, ln1_b, ln2_g, ln2_b, bo, b2]
    gains = jnp.stack([params["ln1g"], params["ln1b"],
                       params["ln2g"], params["ln2b"],
                       params["bo"], params["b2"]], axis=0).astype(f32)       # (6, 1, D)

    return {
        "gains": gains, "bqkv": bqkv, "b1": params["b1"].astype(f32),
        "wqkv": wqkv, "wo": wo,
        "w1": params["w1"].astype(bf16), "w2": params["w2"].astype(bf16),
    }


def block_forward(x, params, *, num_heads, batch_chunks=1):
    """batch_chunks=1: whole batch in one invocation (v5e/v6e). batch_chunks=2: one fat
    'parallel' grid step per TensorCore on v7x."""
    B, N, D = x.shape
    assert D % num_heads == 0
    assert B % batch_chunks == 0
    Bc = B // batch_chunks

    w = _prep_weights(params, num_heads)
    x2d = x.reshape(B * N, D)                          # LN/MLP/residuals run on this slab

    order = ["gains", "bqkv", "b1", "wqkv", "wo", "w1", "w2"]
    vals = [w[k] for k in order]

    def const_spec(v):                                 # grid-invariant full block
        zeros = (0,) * v.ndim
        return pl.BlockSpec(v.shape, lambda c, z=zeros: z)

    param_specs = [const_spec(v) for v in vals]

    kernel = functools.partial(block_kernel, batch_per_step=Bc, seq_len=N, num_heads=num_heads)

    io_bytes = 2 * x2d.size * x2d.dtype.itemsize
    param_bytes = sum(int(v.size) * v.dtype.itemsize for v in vals)
    vmem_limit = int(min(32 * 1024 * 1024, max(16 * 1024 * 1024, 6 * (io_bytes + param_bytes))))

    out2d = pl.pallas_call(
        kernel,
        out_shape=jax.ShapeDtypeStruct((B * N, D), x.dtype),
        grid_spec=pltpu.PrefetchScalarGridSpec(
            num_scalar_prefetch=0,
            grid=(batch_chunks,),
            in_specs=[pl.BlockSpec((Bc * N, D), lambda c: (c, 0))] + param_specs,
            out_specs=pl.BlockSpec((Bc * N, D), lambda c: (c, 0)),
            scratch_shapes=[pltpu.VMEM((Bc * N, D), jnp.float32)],
        ),
        compiler_params=pltpu.CompilerParams(
            dimension_semantics=("parallel",),
            vmem_limit_bytes=vmem_limit,
        ),
    )(x2d, *vals)
    return out2d.reshape(B, N, D)


def make_params(key, n_embd, mlp_dim):
    ks = jax.random.split(key, 8)
    s = 0.02
    return {
        "ln1g": jnp.ones((1, n_embd), jnp.float32),
        "ln1b": jnp.zeros((1, n_embd), jnp.float32),
        "wq": s * jax.random.normal(ks[0], (n_embd, n_embd), jnp.float32),
        "bq": jnp.zeros((1, n_embd), jnp.float32),
        "wk": s * jax.random.normal(ks[1], (n_embd, n_embd), jnp.float32),
        "bk": jnp.zeros((1, n_embd), jnp.float32),
        "wv": s * jax.random.normal(ks[2], (n_embd, n_embd), jnp.float32),
        "bv": jnp.zeros((1, n_embd), jnp.float32),
        "wo": s * jax.random.normal(ks[3], (n_embd, n_embd), jnp.float32),
        "bo": jnp.zeros((1, n_embd), jnp.float32),
        "ln2g": jnp.ones((1, n_embd), jnp.float32),
        "ln2b": jnp.zeros((1, n_embd), jnp.float32),
        "w1": s * jax.random.normal(ks[4], (n_embd, mlp_dim), jnp.float32),
        "b1": jnp.zeros((1, mlp_dim), jnp.float32),
        "w2": s * jax.random.normal(ks[5], (mlp_dim, n_embd), jnp.float32),
        "b2": jnp.zeros((1, n_embd), jnp.float32),
    }


def block_reference(x, params, *, num_heads):
    """Pure-JAX f32 reference (direct translation of the PyTorch Block)."""
    B, N, D = x.shape
    hd = D // num_heads

    def ln(h, g, b, eps=1e-5):
        mu = jnp.mean(h, axis=-1, keepdims=True)
        var = jnp.mean((h - mu) ** 2, axis=-1, keepdims=True)
        return (h - mu) / jnp.sqrt(var + eps) * g + b

    def heads(t):
        return jnp.transpose(t.reshape(B, N, num_heads, hd), (0, 2, 1, 3))

    h = ln(x, params["ln1g"], params["ln1b"])
    q = heads(h @ params["wq"] + params["bq"])
    k = heads(h @ params["wk"] + params["bk"])
    v = heads(h @ params["wv"] + params["bv"])
    s = jnp.einsum('bhne,bhme->bhnm', q, k) / math.sqrt(hd)
    p = jax.nn.softmax(s, axis=-1)
    o = jnp.einsum('bhnm,bhme->bhne', p, v)
    o = jnp.transpose(o, (0, 2, 1, 3)).reshape(B, N, D)
    x1 = x + (o @ params["wo"] + params["bo"])
    h2 = ln(x1, params["ln2g"], params["ln2b"])
    f = jax.nn.gelu(h2 @ params["w1"] + params["b1"], approximate=False)
    return x1 + (f @ params["w2"] + params["b2"])


if __name__ == "__main__":
    # config: n_embd=32, num_heads=4, mlp_dim=64, bias=True, dropout=0.0
    B, N, D, H, M = 2, 8, 32, 4, 64
    key = jax.random.PRNGKey(0)
    kx, kp = jax.random.split(key)
    x = jax.random.normal(kx, (B, N, D), jnp.float32)
    params = make_params(kp, D, M)

    y = block_forward(x, params, num_heads=H)          # single-invocation path (v5e/v6e default)
    jax.block_until_ready(y)

    y_ref = block_reference(x, params, num_heads=H)
    assert y.shape == (B, N, D)
    assert bool(jnp.all(jnp.isfinite(y)))
    err = float(jnp.max(jnp.abs(y - y_ref)))
    assert bool(jnp.allclose(y, y_ref, atol=1e-2, rtol=1e-2)), f"max abs err {err}"
    print("KERNEL_OK")
</pallas_src>

<mosaic_0001>
module attributes {stable_mosaic.version = 11 : i64} {
  func.func @block_kernel(%arg0: i32, %arg1: memref<16x32xf32, #tpu.memory_space<vmem>>, %arg2: memref<6x1x32xf32, #tpu.memory_space<vmem>>, %arg3: memref<3x4x1x8xf32, #tpu.memory_space<vmem>>, %arg4: memref<1x64xf32, #tpu.memory_space<vmem>>, %arg5: memref<3x4x32x8xbf16, #tpu.memory_space<vmem>>, %arg6: memref<4x8x32xbf16, #tpu.memory_space<vmem>>, %arg7: memref<32x64xbf16, #tpu.memory_space<vmem>>, %arg8: memref<64x32xbf16, #tpu.memory_space<vmem>>, %arg9: memref<16x32xf32, #tpu.memory_space<vmem>>, %arg10: memref<16x32xf32, #tpu.memory_space<vmem>>) attributes {dimension_semantics = [#tpu.dimension_semantics<parallel>], iteration_bounds = array<i64: 1>, scalar_prefetch = 0 : i64, scratch_operands = 1 : i64, tpu.core_type = #tpu.core_type<tc>, window_params = [{transform_indices = @transform_0, window_bounds = array<i64: 16, 32>}, {pipeline_mode = #tpu.pipeline_mode<synchronous>, transform_indices = @transform_1, window_bounds = array<i64: 6, 1, 32>}, {pipeline_mode = #tpu.pipeline_mode<synchronous>, transform_indices = @transform_2, window_bounds = array<i64: 3, 4, 1, 8>}, {pipeline_mode = #tpu.pipeline_mode<synchronous>, transform_indices = @transform_3, window_bounds = array<i64: 1, 64>}, {pipeline_mode = #tpu.pipeline_mode<synchronous>, transform_indices = @transform_4, window_bounds = array<i64: 3, 4, 32, 8>}, {pipeline_mode = #tpu.pipeline_mode<synchronous>, transform_indices = @transform_5, window_bounds = array<i64: 4, 8, 32>}, {pipeline_mode = #tpu.pipeline_mode<synchronous>, transform_indices = @transform_6, window_bounds = array<i64: 32, 64>}, {pipeline_mode = #tpu.pipeline_mode<synchronous>, transform_indices = @transform_7, window_bounds = array<i64: 64, 32>}, {transform_indices = @transform_8, window_bounds = array<i64: 16, 32>}]} {
    %c0 = arith.constant 0 : index
    %c0_0 = arith.constant 0 : index
    %0 = vector.load %arg1[%c0, %c0_0] : memref<16x32xf32, #tpu.memory_space<vmem>>, vector<16x32xf32>
    %c0_1 = arith.constant 0 : index
    %c0_2 = arith.constant 0 : index
    %c0_3 = arith.constant 0 : index
    %1 = vector.load %arg2[%c0_1, %c0_2, %c0_3] : memref<6x1x32xf32, #tpu.memory_space<vmem>>, vector<1x1x32xf32>
    %2 = vector.shape_cast %1 : vector<1x1x32xf32> to vector<1x32xf32>
    %c1 = arith.constant 1 : index
    %c0_4 = arith.constant 0 : index
    %c0_5 = arith.constant 0 : index
    %3 = vector.load %arg2[%c1, %c0_4, %c0_5] : memref<6x1x32xf32, #tpu.memory_space<vmem>>, vector<1x1x32xf32>
    %4 = vector.shape_cast %3 : vector<1x1x32xf32> to vector<1x32xf32>
    %cst = arith.constant dense<0.000000e+00> : vector<16xf32>
    %5 = vector.multi_reduction <add>, %0, %cst [1] : vector<16x32xf32> to vector<16xf32>
    %6 = vector.shape_cast %5 : vector<16xf32> to vector<16x1xf32>
    %cst_6 = arith.constant 3.200000e+01 : f32
    %7 = vector.broadcast %cst_6 : f32 to vector<16x1xf32>
    %8 = arith.divf %6, %7 : vector<16x1xf32>
    %9 = vector.broadcast %8 : vector<16x1xf32> to vector<16x32xf32>
    %10 = arith.subf %0, %9 : vector<16x32xf32>
    %11 = arith.mulf %10, %10 : vector<16x32xf32>
    %cst_7 = arith.constant dense<0.000000e+00> : vector<16xf32>
    %12 = vector.multi_reduction <add>, %11, %cst_7 [1] : vector<16x32xf32> to vector<16xf32>
    %13 = vector.shape_cast %12 : vector<16xf32> to vector<16x1xf32>
    %cst_8 = arith.constant 3.200000e+01 : f32
    %14 = vector.broadcast %cst_8 : f32 to vector<16x1xf32>
    %15 = arith.divf %13, %14 : vector<16x1xf32>
    %16 = vector.broadcast %8 : vector<16x1xf32> to vector<16x32xf32>
    %17 = arith.subf %0, %16 : vector<16x32xf32>
    %cst_9 = arith.constant 9.99999974E-6 : f32
    %18 = vector.broadcast %cst_9 : f32 to vector<16x1xf32>
    %19 = arith.addf %15, %18 : vector<16x1xf32>
    %20 = math.rsqrt %19 : vector<16x1xf32>
    %21 = vector.broadcast %20 : vector<16x1xf32> to vector<16x32xf32>
    %22 = arith.mulf %17, %21 : vector<16x32xf32>
    %23 = vector.broadcast %2 : vector<1x32xf32> to vector<16x32xf32>
    %24 = arith.mulf %22, %23 : vector<16x32xf32>
    %25 = vector.broadcast %4 : vector<1x32xf32> to vector<16x32xf32>
    %26 = arith.addf %24, %25 : vector<16x32xf32>
    %27 = arith.truncf %26 : vector<16x32xf32> to vector<16x32xbf16>
    %28 = vector.extract_strided_slice %27 {offsets = [0, 0], sizes = [8, 32], strides = [1, 1]} : vector<16x32xbf16> to vector<8x32xbf16>
    %c0_10 = arith.constant 0 : index
    %c0_11 = arith.constant 0 : index
    %c0_12 = arith.constant 0 : index
    %c0_13 = arith.constant 0 : index
    %29 = vector.load %arg5[%c0_10, %c0_11, %c0_12, %c0_13] : memref<3x4x32x8xbf16, #tpu.memory_space<vmem>>, vector<1x1x32x8xbf16>
    %30 = vector.shape_cast %29 : vector<1x1x32x8xbf16> to vector<32x8xbf16>
    %cst_14 = arith.constant dense<0.000000e+00> : vector<8x8xf32>
    %31 = tpu.matmul %28, %30, %cst_14 {dimension_numbers = #tpu.dot_dimension_numbers<[1], [0], [0], [1], [0, 0, 1, 1], [], []>} : vector<8x32xbf16>, vector<32x8xbf16>, vector<8x8xf32> -> vector<8x8xf32>
    %c0_15 = arith.constant 0 : index
    %c0_16 = arith.constant 0 : index
    %c0_17 = arith.constant 0 : index
    %c0_18 = arith.constant 0 : index
    %32 = vector.load %arg3[%c0_15, %c0_16, %c0_17, %c0_18] : memref<3x4x1x8xf32, #tpu.memory_space<vmem>>, vector<1x1x1x8xf32>
    %33 = vector.shape_cast %32 : vector<1x1x1x8xf32> to vector<1x8xf32>
    %34 = vector.broadcast %33 : vector<1x8xf32> to vector<8x8xf32>
    %35 = arith.addf %31, %34 : vector<8x8xf32>
    %c1_19 = arith.constant 1 : index
    %c0_20 = arith.constant 0 : index
    %c0_21 = arith.constant 0 : index
    %c0_22 = arith.constant 0 : index
    %36 = vector.load %arg5[%c1_19, %c0_20, %c0_21, %c0_22] : memref<3x4x32x8xbf16, #tpu.memory_space<vmem>>, vector<1x1x32x8xbf16>
    %37 = vector.shape_cast %36 : vector<1x1x32x8xbf16> to vector<32x8xbf16>
    %cst_23 = arith.constant dense<0.000000e+00> : vector<8x8xf32>
    %38 = tpu.matmul %28, %37, %cst_23 {dimension_numbers = #tpu.dot_dimension_numbers<[1], [0], [0], [1], [0, 0, 1, 1], [], []>} : vector<8x32xbf16>, vector<32x8xbf16>, vector<8x8xf32> -> vector<8x8xf32>
    %c1_24 = arith.constant 1 : index
    %c0_25 = arith.constant 0 : index
    %c0_26 = arith.constant 0 : index
    %c0_27 = arith.constant 0 : index
    %39 = vector.load %arg3[%c1_24, %c0_25, %c0_26, %c0_27] : memref<3x4x1x8xf32, #tpu.memory_space<vmem>>, vector<1x1x1x8xf32>
    %40 = vector.shape_cast %39 : vector<1x1x1x8xf32> to vector<1x8xf32>
    %41 = vector.broadcast %40 : vector<1x8xf32> to vector<8x8xf32>
    %42 = arith.addf %38, %41 : vector<8x8xf32>
    %c2 = arith.constant 2 : index
    %c0_28 = arith.constant 0 : index
    %c0_29 = arith.constant 0 : index
    %c0_30 = arith.constant 0 : index
    %43 = vector.load %arg5[%c2, %c0_28, %c0_29, %c0_30] : memref<3x4x32x8xbf16, #tpu.memory_space<vmem>>, vector<1x1x32x8xbf16>
    %44 = vector.shape_cast %43 : vector<1x1x32x8xbf16> to vector<32x8xbf16>
    %cst_31 = arith.constant dense<0.000000e+00> : vector<8x8xf32>
    %45 = tpu.matmul %28, %44, %cst_31 {dimension_numbers = #tpu.dot_dimension_numbers<[1], [0], [0], [1], [0, 0, 1, 1], [], []>} : vector<8x32xbf16>, vector<32x8xbf16>, vector<8x8xf32> -> vector<8x8xf32>
    %c2_32 = arith.constant 2 : index
    %c0_33 = arith.constant 0 : index
    %c0_34 = arith.constant 0 : index
    %c0_35 = arith.constant 0 : index
    %46 = vector.load %arg3[%c2_32, %c0_33, %c0_34, %c0_35] : memref<3x4x1x8xf32, #tpu.memory_space<vmem>>, vector<1x1x1x8xf32>
    %47 = vector.shape_cast %46 : vector<1x1x1x8xf32> to vector<1x8xf32>
    %48 = vector.broadcast %47 : vector<1x8xf32> to vector<8x8xf32>
    %49 = arith.addf %45, %48 : vector<8x8xf32>
    %50 = arith.truncf %35 : vector<8x8xf32> to vector<8x8xbf16>
    %51 = arith.truncf %42 : vector<8x8xf32> to vector<8x8xbf16>
    "tpu.trace_start"() <{level = 10 : i32, message = "ne,me->nm"}> : () -> ()
    %cst_36 = arith.constant dense<0.000000e+00> : vector<8x8xf32>
    %52 = tpu.matmul %50, %51, %cst_36 {dimension_numbers = #tpu.dot_dimension_numbers<[1], [1], [0], [0], [0, 0, 1, 0], [], []>} : vector<8x8xbf16>, vector<8x8xbf16>, vector<8x8xf32> -> vector<8x8xf32>
    "tpu.trace_stop"() : () -> ()
    %cst_37 = arith.constant dense<0xFF800000> : vector<8xf32>
    %53 = vector.multi_reduction <maximumf>, %52, %cst_37 [1] : vector<8x8xf32> to vector<8xf32>
    %54 = vector.shape_cast %53 : vector<8xf32> to vector<8x1xf32>
    %55 = vector.broadcast %54 : vector<8x1xf32> to vector<8x8xf32>
    %56 = arith.subf %52, %55 : vector<8x8xf32>
    %57 = math.exp %56 : vector<8x8xf32>
    %cst_38 = arith.constant dense<0.000000e+00> : vector<8xf32>
    %58 = vector.multi_reduction <add>, %57, %cst_38 [1] : vector<8x8xf32> to vector<8xf32>
    %59 = vector.shape_cast %58 : vector<8xf32> to vector<8x1xf32>
    %60 = tpu.reciprocal %59 {approx = true} : vector<8x1xf32> -> vector<8x1xf32>
    %61 = vector.broadcast %60 : vector<8x1xf32> to vector<8x8xf32>
    %62 = arith.mulf %57, %61 : vector<8x8xf32>
    %63 = arith.truncf %62 : vector<8x8xf32> to vector<8x8xbf16>
    %64 = arith.truncf %49 : vector<8x8xf32> to vector<8x8xbf16>
    %cst_39 = arith.constant dense<0.000000e+00> : vector<8x8xf32>
    %65 = tpu.matmul %63, %64, %cst_39 {dimension_numbers = #tpu.dot_dimension_numbers<[1], [0], [0], [1], [0, 0, 1, 1], [], []>} : vector<8x8xbf16>, vector<8x8xbf16>, vector<8x8xf32> -> vector<8x8xf32>
    %66 = arith.truncf %65 : vector<8x8xf32> to vector<8x8xbf16>
    %c0_40 = arith.constant 0 : index
    %c0_41 = arith.constant 0 : index
    %c0_42 = arith.constant 0 : index
    %67 = vector.load %arg6[%c0_40, %c0_41, %c0_42] : memref<4x8x32xbf16, #tpu.memory_space<vmem>>, vector<1x8x32xbf16>
    %68 = vector.shape_cast %67 : vector<1x8x32xbf16> to vector<8x32xbf16>
    %cst_43 = arith.constant dense<0.000000e+00> : vector<8x32xf32>
    %69 = tpu.matmul %66, %68, %cst_43 {dimension_numbers = #tpu.dot_dimension_numbers<[1], [0], [0], [1], [0, 0, 1, 1], [], []>} : vector<8x8xbf16>, vector<8x32xbf16>, vector<8x32xf32> -> vector<8x32xf32>
    %c0_44 = arith.constant 0 : index
    %c1_45 = arith.constant 1 : index
    %c0_46 = arith.constant 0 : index
    %c0_47 = arith.constant 0 : index
    %70 = vector.load %arg5[%c0_44, %c1_45, %c0_46, %c0_47] : memref<3x4x32x8xbf16, #tpu.memory_space<vmem>>, vector<1x1x32x8xbf16>
    %71 = vector.shape_cast %70 : vector<1x1x32x8xbf16> to vector<32x8xbf16>
    %cst_48 = arith.constant dense<0.000000e+00> : vector<8x8xf32>
    %72 = tpu.matmul %28, %71, %cst_48 {dimension_numbers = #tpu.dot_dimension_numbers<[1], [0], [0], [1], [0, 0, 1, 1], [], []>} : vector<8x32xbf16>, vector<32x8xbf16>, vector<8x8xf32> -> vector<8x8xf32>
    %c0_49 = arith.constant 0 : index
    %c1_50 = arith.constant 1 : index
    %c0_51 = arith.constant 0 : index
    %c0_52 = arith.constant 0 : index
    %73 = vector.load %arg3[%c0_49, %c1_50, %c0_51, %c0_52] : memref<3x4x1x8xf32, #tpu.memory_space<vmem>>, vector<1x1x1x8xf32>
    %74 = vector.shape_cast %73 : vector<1x1x1x8xf32> to vector<1x8xf32>
    %75 = vector.broadcast %74 : vector<1x8xf32> to vector<8x8xf32>
    %76 = arith.addf %72, %75 : vector<8x8xf32>
    %c1_53 = arith.constant 1 : index
    %c1_54 = arith.constant 1 : index
    %c0_55 = arith.constant 0 : index
    %c0_56 = arith.constant 0 : index
    %77 = vector.load %arg5[%c1_53, %c1_54, %c0_55, %c0_56] : memref<3x4x32x8xbf16, #tpu.memory_space<vmem>>, vector<1x1x32x8xbf16>
    %78 = vector.shape_cast %77 : vector<1x1x32x8xbf16> to vector<32x8xbf16>
    %cst_57 = arith.constant dense<0.000000e+00> : vector<8x8xf32>
    %79 = tpu.matmul %28, %78, %cst_57 {dimension_numbers = #tpu.dot_dimension_numbers<[1], [0], [0], [1], [0, 0, 1, 1], [], []>} : vector<8x32xbf16>, vector<32x8xbf16>, vector<8x8xf32> -> vector<8x8xf32>
    %c1_58 = arith.constant 1 : index
    %c1_59 = arith.constant 1 : index
    %c0_60 = arith.constant 0 : index
    %c0_61 = arith.constant 0 : index
    %80 = vector.load %arg3[%c1_58, %c1_59, %c0_60, %c0_61] : memref<3x4x1x8xf32, #tpu.memory_space<vmem>>, vector<1x1x1x8xf32>
    %81 = vector.shape_cast %80 : vector<1x1x1x8xf32> to vector<1x8xf32>
    %82 = vector.broadcast %81 : vector<1x8xf32> to vector<8x8xf32>
    %83 = arith.addf %79, %82 : vector<8x8xf32>
    %c2_62 = arith.constant 2 : index
    %c1_63 = arith.constant 1 : index
    %c0_64 = arith.constant 0 : index
    %c0_65 = arith.constant 0 : index
    %84 = vector.load %arg5[%c2_62, %c1_63, %c0_64, %c0_65] : memref<3x4x32x8xbf16, #tpu.memory_space<vmem>>, vector<1x1x32x8xbf16>
    %85 = vector.shape_cast %84 : vector<1x1x32x8xbf16> to vector<32x8xbf16>
    %cst_66 = arith.constant dense<0.000000e+00> : vector<8x8xf32>
    %86 = tpu.matmul %28, %85, %cst_66 {dimension_numbers = #tpu.dot_dimension_numbers<[1], [0], [0], [1], [0, 0, 1, 1], [], []>} : vector<8x32xbf16>, vector<32x8xbf16>, vector<8x8xf32> -> vector<8x8xf32>
    %c2_67 = arith.constant 2 : index
    %c1_68 = arith.constant 1 : index
    %c0_69 = arith.constant 0 : index
    %c0_70 = arith.constant 0 : index
    %87 = vector.load %arg3[%c2_67, %c1_68, %c0_69, %c0_70] : memref<3x4x1x8xf32, #tpu.memory_space<vmem>>, vector<1x1x1x8xf32>
    %88 = vector.shape_cast %87 : vector<1x1x1x8xf32> to vector<1x8xf32>
    %89 = vector.broadcast %88 : vector<1x8xf32> to vector<8x8xf32>
    %90 = arith.addf %86, %89 : vector<8x8xf32>
    %91 = arith.truncf %76 : vector<8x8xf32> to vector<8x8xbf16>
    %92 = arith.truncf %83 : vector<8x8xf32> to vector<8x8xbf16>
    "tpu.trace_start"() <{level = 10 : i32, message = "ne,me->nm"}> : () -> ()
    %cst_71 = arith.constant dense<0.000000e+00> : vector<8x8xf32>
    %93 = tpu.matmul %91, %92, %cst_71 {dimension_numbers = #tpu.dot_dimension_numbers<[1], [1], [0], [0], [0, 0, 1, 0], [], []>} : vector<8x8xbf16>, vector<8x8xbf16>, vector<8x8xf32> -> vector<8x8xf32>
    "tpu.trace_stop"() : () -> ()
    %cst_72 = arith.constant dense<0xFF800000> : vector<8xf32>
    %94 = vector.multi_reduction <maximumf>, %93, %cst_72 [1] : vector<8x8xf32> to vector<8xf32>
    %95 = vector.shape_cast %94 : vector<8xf32> to vector<8x1xf32>
    %96 = vector.broadcast %95 : vector<8x1xf32> to vector<8x8xf32>
    %97 = arith.subf %93, %96 : vector<8x8xf32>
    %98 = math.exp %97 : vector<8x8xf32>
    %cst_73 = arith.constant dense<0.000000e+00> : vector<8xf32>
    %99 = vector.multi_reduction <add>, %98, %cst_73 [1] : vector<8x8xf32> to vector<8xf32>
    %100 = vector.shape_cast %99 : vector<8xf32> to vector<8x1xf32>
    %101 = tpu.reciprocal %100 {approx = true} : vector<8x1xf32> -> vector<8x1xf32>
    %102 = vector.broadcast %101 : vector<8x1xf32> to vector<8x8xf32>
    %103 = arith.mulf %98, %102 : vector<8x8xf32>
    %104 = arith.truncf %103 : vector<8x8xf32> to vector<8x8xbf16>
    %105 = arith.truncf %90 : vector<8x8xf32> to vector<8x8xbf16>
    %cst_74 = arith.constant dense<0.000000e+00> : vector<8x8xf32>
    %106 = tpu.matmul %104, %105, %cst_74 {dimension_numbers = #tpu.dot_dimension_numbers<[1], [0], [0], [1], [0, 0, 1, 1], [], []>} : vector<8x8xbf16>, vector<8x8xbf16>, vector<8x8xf32> -> vector<8x8xf32>
    %107 = arith.truncf %106 : vector<8x8xf32> to vector<8x8xbf16>
    %c1_75 = arith.constant 1 : index
    %c0_76 = arith.constant 0 : index
    %c0_77 = arith.constant 0 : index
    %108 = vector.load %arg6[%c1_75, %c0_76, %c0_77] : memref<4x8x32xbf16, #tpu.memory_space<vmem>>, vector<1x8x32xbf16>
    %109 = vector.shape_cast %108 : vector<1x8x32xbf16> to vector<8x32xbf16>
    %cst_78 = arith.constant dense<0.000000e+00> : vector<8x32xf32>
    %110 = tpu.matmul %107, %109, %cst_78 {dimension_numbers = #tpu.dot_dimension_numbers<[1], [0], [0], [1], [0, 0, 1, 1], [], []>} : vector<8x8xbf16>, vector<8x32xbf16>, vector<8x32xf32> -> vector<8x32xf32>
    %111 = arith.addf %69, %110 : vector<8x32xf32>
    %c0_79 = arith.constant 0 : index
    %c2_80 = arith.constant 2 : index
    %c0_81 = arith.constant 0 : index
    %c0_82 = arith.constant 0 : index
    %112 = vector.load %arg5[%c0_79, %c2_80, %c0_81, %c0_82] : memref<3x4x32x8xbf16, #tpu.memory_space<vmem>>, vector<1x1x32x8xbf16>
    %113 = vector.shape_cast %112 : vector<1x1x32x8xbf16> to vector<32x8xbf16>
    %cst_83 = arith.constant dense<0.000000e+00> : vector<8x8xf32>
    %114 = tpu.matmul %28, %113, %cst_83 {dimension_numbers = #tpu.dot_dimension_numbers<[1], [0], [0], [1], [0, 0, 1, 1], [], []>} : vector<8x32xbf16>, vector<32x8xbf16>, vector<8x8xf32> -> vector<8x8xf32>
    %c0_84 = arith.constant 0 : index
    %c2_85 = arith.constant 2 : index
    %c0_86 = arith.constant 0 : index
    %c0_87 = arith.constant 0 : index
    %115 = vector.load %arg3[%c0_84, %c2_85, %c0_86, %c0_87] : memref<3x4x1x8xf32, #tpu.memory_space<vmem>>, vector<1x1x1x8xf32>
    %116 = vector.shape_cast %115 : vector<1x1x1x8xf32> to vector<1x8xf32>
    %117 = vector.broadcast %116 : vector<1x8xf32> to vector<8x8xf32>
    %118 = arith.addf %114, %117 : vector<8x8xf32>
    %c1_88 = arith.constant 1 : index
    %c2_89 = arith.constant 2 : index
    %c0_90 = arith.constant 0 : index
    %c0_91 = arith.constant 0 : index
    %119 = vector.load %arg5[%c1_88, %c2_89, %c0_90, %c0_91] : memref<3x4x32x8xbf16, #tpu.memory_space<vmem>>, vector<1x1x32x8xbf16>
    %120 = vector.shape_cast %119 : vector<1x1x32x8xbf16> to vector<32x8xbf16>
    %cst_92 = arith.constant dense<0.000000e+00> : vector<8x8xf32>
    %121 = tpu.matmul %28, %120, %cst_92 {dimension_numbers = #tpu.dot_dimension_numbers<[1], [0], [0], [1], [0, 0, 1, 1], [], []>} : vector<8x32xbf16>, vector<32x8xbf16>, vector<8x8xf32> -> vector<8x8xf32>
    %c1_93 = arith.constant 1 : index
    %c2_94 = arith.constant 2 : index
    %c0_95 = arith.constant 0 : index
    %c0_96 = arith.constant 0 : index
    %122 = vector.load %arg3[%c1_93, %c2_94, %c0_95, %c0_96] : memref<3x4x1x8xf32, #tpu.memory_space<vmem>>, vector<1x1x1x8xf32>
    %123 = vector.shape_cast %122 : vector<1x1x1x8xf32> to vector<1x8xf32>
    %124 = vector.broadcast %123 : vector<1x8xf32> to vector<8x8xf32>
    %125 = arith.addf %121, %124 : vector<8x8xf32>
    %c2_97 = arith.constant 2 : index
    %c2_98 = arith.constant 2 : index
    %c0_99 = arith.constant 0 : index
    %c0_100 = arith.constant 0 : index
    %126 = vector.load %arg5[%c2_97, %c2_98, %c0_99, %c0_100] : memref<3x4x32x8xbf16, #tpu.memory_space<vmem>>, vector<1x1x32x8xbf16>
    %127 = vector.shape_cast %126 : vector<1x1x32x8xbf16> to vector<32x8xbf16>
    %cst_101 = arith.constant dense<0.000000e+00> : vector<8x8xf32>
    %128 = tpu.matmul %28, %127, %cst_101 {dimension_numbers = #tpu.dot_dimension_numbers<[1], [0], [0], [1], [0, 0, 1, 1], [], []>} : vector<8x32xbf16>, vector<32x8xbf16>, vector<8x8xf32> -> vector<8x8xf32>
    %c2_102 = arith.constant 2 : index
    %c2_103 = arith.constant 2 : index
    %c0_104 = arith.constant 0 : index
    %c0_105 = arith.constant 0 : index
    %129 = vector.load %arg3[%c2_102, %c2_103, %c0_104, %c0_105] : memref<3x4x1x8xf32, #tpu.memory_space<vmem>>, vector<1x1x1x8xf32>
    %130 = vector.shape_cast %129 : vector<1x1x1x8xf32> to vector<1x8xf32>
    %131 = vector.broadcast %130 : vector<1x8xf32> to vector<8x8xf32>
    %132 = arith.addf %128, %131 : vector<8x8xf32>
    %133 = arith.truncf %118 : vector<8x8xf32> to vector<8x8xbf16>
    %134 = arith.truncf %125 : vector<8x8xf32> to vector<8x8xbf16>
    "tpu.trace_start"() <{level = 10 : i32, message = "ne,me->nm"}> : () -> ()
    %cst_106 = arith.constant dense<0.000000e+00> : vector<8x8xf32>
    %135 = tpu.matmul %133, %134, %cst_106 {dimension_numbers = #tpu.dot_dimension_numbers<[1], [1], [0], [0], [0, 0, 1, 0], [], []>} : vector<8x8xbf16>, vector<8x8xbf16>, vector<8x8xf32> -> vector<8x8xf32>
    "tpu.trace_stop"() : () -> ()
    %cst_107 = arith.constant dense<0xFF800000> : vector<8xf32>
    %136 = vector.multi_reduction <maximumf>, %135, %cst_107 [1] : vector<8x8xf32> to vector<8xf32>
    %137 = vector.shape_cast %136 : vector<8xf32> to vector<8x1xf32>
    %138 = vector.broadcast %137 : vector<8x1xf32> to vector<8x8xf32>
    %139 = arith.subf %135, %138 : vector<8x8xf32>
    %140 = math.exp %139 : vector<8x8xf32>
    %cst_108 = arith.constant dense<0.000000e+00> : vector<8xf32>
    %141 = vector.multi_reduction <add>, %140, %cst_108 [1] : vector<8x8xf32> to vector<8xf32>
    %142 = vector.shape_cast %141 : vector<8xf32> to vector<8x1xf32>
    %143 = tpu.reciprocal %142 {approx = true} : vector<8x1xf32> -> vector<8x1xf32>
    %144 = vector.broadcast %143 : vector<8x1xf32> to vector<8x8xf32>
    %145 = arith.mulf %140, %144 : vector<8x8xf32>
    %146 = arith.truncf %145 : vector<8x8xf32> to vector<8x8xbf16>
    %147 = arith.truncf %132 : vector<8x8xf32> to vector<8x8xbf16>
    %cst_109 = arith.constant dense<0.000000e+00> : vector<8x8xf32>
    %148 = tpu.matmul %146, %147, %cst_109 {dimension_numbers = #tpu.dot_dimension_numbers<[1], [0], [0], [1], [0, 0, 1, 1], [], []>} : vector<8x8xbf16>, vector<8x8xbf16>, vector<8x8xf32> -> vector<8x8xf32>
    %149 = arith.truncf %148 : vector<8x8xf32> to vector<8x8xbf16>
    %c2_110 = arith.constant 2 : index
    %c0_111 = arith.constant 0 : index
    %c0_112 = arith.constant 0 : index
    %150 = vector.load %arg6[%c2_110, %c0_111, %c0_112] : memref<4x8x32xbf16, #tpu.memory_space<vmem>>, vector<1x8x32xbf16>
    %151 = vector.shape_cast %150 : vector<1x8x32xbf16> to vector<8x32xbf16>
    %cst_113 = arith.constant dense<0.000000e+00> : vector<8x32xf32>
    %152 = tpu.matmul %149, %151, %cst_113 {dimension_numbers = #tpu.dot_dimension_numbers<[1], [0], [0], [1], [0, 0, 1, 1], [], []>} : vector<8x8xbf16>, vector<8x32xbf16>, vector<8x32xf32> -> vector<8x32xf32>
    %153 = arith.addf %111, %152 : vector<8x32xf32>
    %c0_114 = arith.constant 0 : index
    %c3 = arith.constant 3 : index
    %c0_115 = arith.constant 0 : index
    %c0_116 = arith.constant 0 : index
    %154 = vector.load %arg5[%c0_114, %c3, %c0_115, %c0_116] : memref<3x4x32x8xbf16, #tpu.memory_space<vmem>>, vector<1x1x32x8xbf16>
    %155 = vector.shape_cast %154 : vector<1x1x32x8xbf16> to vector<32x8xbf16>
    %cst_117 = arith.constant dense<0.000000e+00> : vector<8x8xf32>
    %156 = tpu.matmul %28, %155, %cst_117 {dimension_numbers = #tpu.dot_dimension_numbers<[1], [0], [0], [1], [0, 0, 1, 1], [], []>} : vector<8x32xbf16>, vector<32x8xbf16>, vector<8x8xf32> -> vector<8x8xf32>
    %c0_118 = arith.constant 0 : index
    %c3_119 = arith.constant 3 : index
    %c0_120 = arith.constant 0 : index
    %c0_121 = arith.constant 0 : index
    %157 = vector.load %arg3[%c0_118, %c3_119, %c0_120, %c0_121] : memref<3x4x1x8xf32, #tpu.memory_space<vmem>>, vector<1x1x1x8xf32>
    %158 = vector.shape_cast %157 : vector<1x1x1x8xf32> to vector<1x8xf32>
    %159 = vector.broadcast %158 : vector<1x8xf32> to vector<8x8xf32>
    %160 = arith.addf %156, %159 : vector<8x8xf32>
    %c1_122 = arith.constant 1 : index
    %c3_123 = arith.constant 3 : index
    %c0_124 = arith.constant 0 : index
    %c0_125 = arith.constant 0 : index
    %161 = vector.load %arg5[%c1_122, %c3_123, %c0_124, %c0_125] : memref<3x4x32x8xbf16, #tpu.memory_space<vmem>>, vector<1x1x32x8xbf16>
    %162 = vector.shape_cast %161 : vector<1x1x32x8xbf16> to vector<32x8xbf16>
    %cst_126 = arith.constant dense<0.000000e+00> : vector<8x8xf32>
    %163 = tpu.matmul %28, %162, %cst_126 {dimension_numbers = #tpu.dot_dimension_numbers<[1], [0], [0], [1], [0, 0, 1, 1], [], []>} : vector<8x32xbf16>, vector<32x8xbf16>, vector<8x8xf32> -> vector<8x8xf32>
    %c1_127 = arith.constant 1 : index
    %c3_128 = arith.constant 3 : index
    %c0_129 = arith.constant 0 : index
    %c0_130 = arith.constant 0 : index
    %164 = vector.load %arg3[%c1_127, %c3_128, %c0_129, %c0_130] : memref<3x4x1x8xf32, #tpu.memory_space<vmem>>, vector<1x1x1x8xf32>
    %165 = vector.shape_cast %164 : vector<1x1x1x8xf32> to vector<1x8xf32>
    %166 = vector.broadcast %165 : vector<1x8xf32> to vector<8x8xf32>
    %167 = arith.addf %163, %166 : vector<8x8xf32>
    %c2_131 = arith.constant 2 : index
    %c3_132 = arith.constant 3 : index
    %c0_133 = arith.constant 0 : index
    %c0_134 = arith.constant 0 : index
    %168 = vector.load %arg5[%c2_131, %c3_132, %c0_133, %c0_134] : memref<3x4x32x8xbf16, #tpu.memory_space<vmem>>, vector<1x1x32x8xbf16>
    %169 = vector.shape_cast %168 : vector<1x1x32x8xbf16> to vector<32x8xbf16>
    %cst_135 = arith.constant dense<0.000000e+00> : vector<8x8xf32>
    %170 = tpu.matmul %28, %169, %cst_135 {dimension_numbers = #tpu.dot_dimension_numbers<[1], [0], [0], [1], [0, 0, 1, 1], [], []>} : vector<8x32xbf16>, vector<32x8xbf16>, vector<8x8xf32> -> vector<8x8xf32>
    %c2_136 = arith.constant 2 : index
    %c3_137 = arith.constant 3 : index
    %c0_138 = arith.constant 0 : index
    %c0_139 = arith.constant 0 : index
    %171 = vector.load %arg3[%c2_136, %c3_137, %c0_138, %c0_139] : memref<3x4x1x8xf32, #tpu.memory_space<vmem>>, vector<1x1x1x8xf32>
    %172 = vector.shape_cast %171 : vector<1x1x1x8xf32> to vector<1x8xf32>
    %173 = vector.broadcast %172 : vector<1x8xf32> to vector<8x8xf32>
    %174 = arith.addf %170, %173 : vector<8x8xf32>
    %175 = arith.truncf %160 : vector<8x8xf32> to vector<8x8xbf16>
    %176 = arith.truncf %167 : vector<8x8xf32> to vector<8x8xbf16>
    "tpu.trace_start"() <{level = 10 : i32, message = "ne,me->nm"}> : () -> ()
    %cst_140 = arith.constant dense<0.000000e+00> : vector<8x8xf32>
    %177 = tpu.matmul %175, %176, %cst_140 {dimension_numbers = #tpu.dot_dimension_numbers<[1], [1], [0], [0], [0, 0, 1, 0], [], []>} : vector<8x8xbf16>, vector<8x8xbf16>, vector<8x8xf32> -> vector<8x8xf32>
    "tpu.trace_stop"() : () -> ()
    %cst_141 = arith.constant dense<0xFF800000> : vector<8xf32>
    %178 = vector.multi_reduction <maximumf>, %177, %cst_141 [1] : vector<8x8xf32> to vector<8xf32>
    %179 = vector.shape_cast %178 : vector<8xf32> to vector<8x1xf32>
    %180 = vector.broadcast %179 : vector<8x1xf32> to vector<8x8xf32>
    %181 = arith.subf %177, %180 : vector<8x8xf32>
    %182 = math.exp %181 : vector<8x8xf32>
    %cst_142 = arith.constant dense<0.000000e+00> : vector<8xf32>
    %183 = vector.multi_reduction <add>, %182, %cst_142 [1] : vector<8x8xf32> to vector<8xf32>
    %184 = vector.shape_cast %183 : vector<8xf32> to vector<8x1xf32>
    %185 = tpu.reciprocal %184 {approx = true} : vector<8x1xf32> -> vector<8x1xf32>
    %186 = vector.broadcast %185 : vector<8x1xf32> to vector<8x8xf32>
    %187 = arith.mulf %182, %186 : vector<8x8xf32>
    %188 = arith.truncf %187 : vector<8x8xf32> to vector<8x8xbf16>
    %189 = arith.truncf %174 : vector<8x8xf32> to vector<8x8xbf16>
    %cst_143 = arith.constant dense<0.000000e+00> : vector<8x8xf32>
    %190 = tpu.matmul %188, %189, %cst_143 {dimension_numbers = #tpu.dot_dimension_numbers<[1], [0], [0], [1], [0, 0, 1, 1], [], []>} : vector<8x8xbf16>, vector<8x8xbf16>, vector<8x8xf32> -> vector<8x8xf32>
    %191 = arith.truncf %190 : vector<8x8xf32> to vector<8x8xbf16>
    %c3_144 = arith.constant 3 : index
    %c0_145 = arith.constant 0 : index
    %c0_146 = arith.constant 0 : index
    %192 = vector.load %arg6[%c3_144, %c0_145, %c0_146] : memref<4x8x32xbf16, #tpu.memory_space<vmem>>, vector<1x8x32xbf16>
    %193 = vector.shape_cast %192 : vector<1x8x32xbf16> to vector<8x32xbf16>
    %cst_147 = arith.constant dense<0.000000e+00> : vector<8x32xf32>
    %194 = tpu.matmul %191, %193, %cst_147 {dimension_numbers = #tpu.dot_dimension_numbers<[1], [0], [0], [1], [0, 0, 1, 1], [], []>} : vector<8x8xbf16>, vector<8x32xbf16>, vector<8x32xf32> -> vector<8x32xf32>
    %195 = arith.addf %153, %194 : vector<8x32xf32>
    %c4 = arith.constant 4 : index
    %c0_148 = arith.constant 0 : index
    %c0_149 = arith.constant 0 : index
    %196 = vector.load %arg2[%c4, %c0_148, %c0_149] : memref<6x1x32xf32, #tpu.memory_space<vmem>>, vector<1x1x32xf32>
    %197 = vector.shape_cast %196 : vector<1x1x32xf32> to vector<1x32xf32>
    %198 = vector.broadcast %197 : vector<1x32xf32> to vector<8x32xf32>
    %199 = arith.addf %195, %198 : vector<8x32xf32>
    %c0_150 = arith.constant 0 : index
    %c0_151 = arith.constant 0 : index
    %200 = vector.load %arg10[%c0_150, %c0_151] : memref<16x32xf32, #tpu.memory_space<vmem>>, vector<8x32xf32>
    tpu.vector_store %arg10[%c0_150, %c0_151], %199 {strides = array<i32>} : memref<16x32xf32, #tpu.memory_space<vmem>>, vector<8x32xf32>,
    %201 = vector.extract_strided_slice %27 {offsets = [8, 0], sizes = [8, 32], strides = [1, 1]} : vector<16x32xbf16> to vector<8x32xbf16>
    %c0_152 = arith.constant 0 : index
    %c0_153 = arith.constant 0 : index
    %c0_154 = arith.constant 0 : index
    %c0_155 = arith.constant 0 : index
    %202 = vector.load %arg5[%c0_152, %c0_153, %c0_154, %c0_155] : memref<3x4x32x8xbf16, #tpu.memory_space<vmem>>, vector<1x1x32x8xbf16>
    %203 = vector.shape_cast %202 : vector<1x1x32x8xbf16> to vector<32x8xbf16>
    %cst_156 = arith.constant dense<0.000000e+00> : vector<8x8xf32>
    %204 = tpu.matmul %201, %203, %cst_156 {dimension_numbers = #tpu.dot_dimension_numbers<[1], [0], [0], [1], [0, 0, 1, 1], [], []>} : vector<8x32xbf16>, vector<32x8xbf16>, vector<8x8xf32> -> vector<8x8xf32>
    %c0_157 = arith.constant 0 : index
    %c0_158 = arith.constant 0 : index
    %c0_159 = arith.constant 0 : index
    %c0_160 = arith.constant 0 : index
    %205 = vector.load %arg3[%c0_157, %c0_158, %c0_159, %c0_160] : memref<3x4x1x8xf32, #tpu.memory_space<vmem>>, vector<1x1x1x8xf32>
    %206 = vector.shape_cast %205 : vector<1x1x1x8xf32> to vector<1x8xf32>
    %207 = vector.broadcast %206 : vector<1x8xf32> to vector<8x8xf32>
    %208 = arith.addf %204, %207 : vector<8x8xf32>
    %c1_161 = arith.constant 1 : index
    %c0_162 = arith.constant 0 : index
    %c0_163 = arith.constant 0 : index
    %c0_164 = arith.constant 0 : index
    %209 = vector.load %arg5[%c1_161, %c0_162, %c0_163, %c0_164] : memref<3x4x32x8xbf16, #tpu.memory_space<vmem>>, vector<1x1x32x8xbf16>
    %210 = vector.shape_cast %209 : vector<1x1x32x8xbf16> to vector<32x8xbf16>
    %cst_165 = arith.constant dense<0.000000e+00> : vector<8x8xf32>
    %211 = tpu.matmul %201, %210, %cst_165 {dimension_numbers = #tpu.dot_dimension_numbers<[1], [0], [0], [1], [0, 0, 1, 1], [], []>} : vector<8x32xbf16>, vector<32x8xbf16>, vector<8x8xf32> -> vector<8x8xf32>
    %c1_166 = arith.constant 1 : index
    %c0_167 = arith.constant 0 : index
    %c0_168 = arith.constant 0 : index
    %c0_169 = arith.constant 0 : index
    %212 = vector.load %arg3[%c1_166, %c0_167, %c0_168, %c0_169] : memref<3x4x1x8xf32, #tpu.memory_space<vmem>>, vector<1x1x1x8xf32>
    %213 = vector.shape_cast %212 : vector<1x1x1x8xf32> to vector<1x8xf32>
    %214 = vector.broadcast %213 : vector<1x8xf32> to vector<8x8xf32>
    %215 = arith.addf %211, %214 : vector<8x8xf32>
    %c2_170 = arith.constant 2 : index
    %c0_171 = arith.constant 0 : index
    %c0_172 = arith.constant 0 : index
    %c0_173 = arith.constant 0 : index
    %216 = vector.load %arg5[%c2_170, %c0_171, %c0_172, %c0_173] : memref<3x4x32x8xbf16, #tpu.memory_space<vmem>>, vector<1x1x32x8xbf16>
    %217 = vector.shape_cast %216 : vector<1x1x32x8xbf16> to vector<32x8xbf16>
    %cst_174 = arith.constant dense<0.000000e+00> : vector<8x8xf32>
    %218 = tpu.matmul %201, %217, %cst_174 {dimension_numbers = #tpu.dot_dimension_numbers<[1], [0], [0], [1], [0, 0, 1, 1], [], []>} : vector<8x32xbf16>, vector<32x8xbf16>, vector<8x8xf32> -> vector<8x8xf32>
    %c2_175 = arith.constant 2 : index
    %c0_176 = arith.constant 0 : index
    %c0_177 = arith.constant 0 : index
    %c0_178 = arith.constant 0 : index
    %219 = vector.load %arg3[%c2_175, %c0_176, %c0_177, %c0_178] : memref<3x4x1x8xf32, #tpu.memory_space<vmem>>, vector<1x1x1x8xf32>
    %220 = vector.shape_cast %219 : vector<1x1x1x8xf32> to vector<1x8xf32>
    %221 = vector.broadcast %220 : vector<1x8xf32> to vector<8x8xf32>
    %222 = arith.addf %218, %221 : vector<8x8xf32>
    %223 = arith.truncf %208 : vector<8x8xf32> to vector<8x8xbf16>
    %224 = arith.truncf %215 : vector<8x8xf32> to vector<8x8xbf16>
    "tpu.trace_start"() <{level = 10 : i32, message = "ne,me->nm"}> : () -> ()
    %cst_179 = arith.constant dense<0.000000e+00> : vector<8x8xf32>
    %225 = tpu.matmul %223, %224, %cst_179 {dimension_numbers = #tpu.dot_dimension_numbers<[1], [1], [0], [0], [0, 0, 1, 0], [], []>} : vector<8x8xbf16>, vector<8x8xbf16>, vector<8x8xf32> -> vector<8x8xf32>
    "tpu.trace_stop"() : () -> ()
    %cst_180 = arith.constant dense<0xFF800000> : vector<8xf32>
    %226 = vector.multi_reduction <maximumf>, %225, %cst_180 [1] : vector<8x8xf32> to vector<8xf32>
    %227 = vector.shape_cast %226 : vector<8xf32> to vector<8x1xf32>
    %228 = vector.broadcast %227 : vector<8x1xf32> to vector<8x8xf32>
    %229 = arith.subf %225, %228 : vector<8x8xf32>
    %230 = math.exp %229 : vector<8x8xf32>
    %cst_181 = arith.constant dense<0.000000e+00> : vector<8xf32>
    %231 = vector.multi_reduction <add>, %230, %cst_181 [1] : vector<8x8xf32> to vector<8xf32>
    %232 = vector.shape_cast %231 : vector<8xf32> to vector<8x1xf32>
    %233 = tpu.reciprocal %232 {approx = true} : vector<8x1xf32> -> vector<8x1xf32>
    %234 = vector.broadcast %233 : vector<8x1xf32> to vector<8x8xf32>
    %235 = arith.mulf %230, %234 : vector<8x8xf32>
    %236 = arith.truncf %235 : vector<8x8xf32> to vector<8x8xbf16>
    %237 = arith.truncf %222 : vector<8x8xf32> to vector<8x8xbf16>
    %cst_182 = arith.constant dense<0.000000e+00> : vector<8x8xf32>
    %238 = tpu.matmul %236, %237, %cst_182 {dimension_numbers = #tpu.dot_dimension_numbers<[1], [0], [0], [1], [0, 0, 1, 1], [], []>} : vector<8x8xbf16>, vector<8x8xbf16>, vector<8x8xf32> -> vector<8x8xf32>
    %239 = arith.truncf %238 : vector<8x8xf32> to vector<8x8xbf16>
    %c0_183 = arith.constant 0 : index
    %c0_184 = arith.constant 0 : index
    %c0_185 = arith.constant 0 : index
    %240 = vector.load %arg6[%c0_183, %c0_184, %c0_185] : memref<4x8x32xbf16, #tpu.memory_space<vmem>>, vector<1x8x32xbf16>
    %241 = vector.shape_cast %240 : vector<1x8x32xbf16> to vector<8x32xbf16>
    %cst_186 = arith.constant dense<0.000000e+00> : vector<8x32xf32>
    %242 = tpu.matmul %239, %241, %cst_186 {dimension_numbers = #tpu.dot_dimension_numbers<[1], [0], [0], [1], [0, 0, 1, 1], [], []>} : vector<8x8xbf16>, vector<8x32xbf16>, vector<8x32xf32> -> vector<8x32xf32>
    %c0_187 = arith.constant 0 : index
    %c1_188 = arith.constant 1 : index
    %c0_189 = arith.constant 0 : index
    %c0_190 = arith.constant 0 : index
    %243 = vector.load %arg5[%c0_187, %c1_188, %c0_189, %c0_190] : memref<3x4x32x8xbf16, #tpu.memory_space<vmem>>, vector<1x1x32x8xbf16>
    %244 = vector.shape_cast %243 : vector<1x1x32x8xbf16> to vector<32x8xbf16>
    %cst_191 = arith.constant dense<0.000000e+00> : vector<8x8xf32>
    %245 = tpu.matmul %201, %244, %cst_191 {dimension_numbers = #tpu.dot_dimension_numbers<[1], [0], [0], [1], [0, 0, 1, 1], [], []>} : vector<8x32xbf16>, vector<32x8xbf16>, vector<8x8xf32> -> vector<8x8xf32>
    %c0_192 = arith.constant 0 : index
    %c1_193 = arith.constant 1 : index
    %c0_194 = arith.constant 0 : index
    %c0_195 = arith.constant 0 : index
    %246 = vector.load %arg3[%c0_192, %c1_193, %c0_194, %c0_195] : memref<3x4x1x8xf32, #tpu.memory_space<vmem>>, vector<1x1x1x8xf32>
    %247 = vector.shape_cast %246 : vector<1x1x1x8xf32> to vector<1x8xf32>
    %248 = vector.broadcast %247 : vector<1x8xf32> to vector<8x8xf32>
    %249 = arith.addf %245, %248 : vector<8x8xf32>
    %c1_196 = arith.constant 1 : index
    %c1_197 = arith.constant 1 : index
    %c0_198 = arith.constant 0 : index
    %c0_199 = arith.constant 0 : index
    %250 = vector.load %arg5[%c1_196, %c1_197, %c0_198, %c0_199] : memref<3x4x32x8xbf16, #tpu.memory_space<vmem>>, vector<1x1x32x8xbf16>
    %251 = vector.shape_cast %250 : vector<1x1x32x8xbf16> to vector<32x8xbf16>
    %cst_200 = arith.constant dense<0.000000e+00> : vector<8x8xf32>
    %252 = tpu.matmul %201, %251, %cst_200 {dimension_numbers = #tpu.dot_dimension_numbers<[1], [0], [0], [1], [0, 0, 1, 1], [], []>} : vector<8x32xbf16>, vector<32x8xbf16>, vector<8x8xf32> -> vector<8x8xf32>
    %c1_201 = arith.constant 1 : index
    %c1_202 = arith.constant 1 : index
    %c0_203 = arith.constant 0 : index
    %c0_204 = arith.constant 0 : index
    %253 = vector.load %arg3[%c1_201, %c1_202, %c0_203, %c0_204] : memref<3x4x1x8xf32, #tpu.memory_space<vmem>>, vector<1x1x1x8xf32>
    %254 = vector.shape_cast %253 : vector<1x1x1x8xf32> to vector<1x8xf32>
    %255 = vector.broadcast %254 : vector<1x8xf32> to vector<8x8xf32>
    %256 = arith.addf %252, %255 : vector<8x8xf32>
    %c2_205 = arith.constant 2 : index
    %c1_206 = arith.constant 1 : index
    %c0_207 = arith.constant 0 : index
    %c0_208 = arith.constant 0 : index
    %257 = vector.load %arg5[%c2_205, %c1_206, %c0_207, %c0_208] : memref<3x4x32x8xbf16, #tpu.memory_space<vmem>>, vector<1x1x32x8xbf16>
    %258 = vector.shape_cast %257 : vector<1x1x32x8xbf16> to vector<32x8xbf16>
    %cst_209 = arith.constant dense<0.000000e+00> : vector<8x8xf32>
    %259 = tpu.matmul %201, %258, %cst_209 {dimension_numbers = #tpu.dot_dimension_numbers<[1], [0], [0], [1], [0, 0, 1, 1], [], []>} : vector<8x32xbf16>, vector<32x8xbf16>, vector<8x8xf32> -> vector<8x8xf32>
    %c2_210 = arith.constant 2 : index
    %c1_211 = arith.constant 1 : index
    %c0_212 = arith.constant 0 : index
    %c0_213 = arith.constant 0 : index
    %260 = vector.load %arg3[%c2_210, %c1_211, %c0_212, %c0_213] : memref<3x4x1x8xf32, #tpu.memory_space<vmem>>, vector<1x1x1x8xf32>
    %261 = vector.shape_cast %260 : vector<1x1x1x8xf32> to vector<1x8xf32>
    %262 = vector.broadcast %261 : vector<1x8xf32> to vector<8x8xf32>
    %263 = arith.addf %259, %262 : vector<8x8xf32>
    %264 = arith.truncf %249 : vector<8x8xf32> to vector<8x8xbf16>
    %265 = arith.truncf %256 : vector<8x8xf32> to vector<8x8xbf16>
    "tpu.trace_start"() <{level = 10 : i32, message = "ne,me->nm"}> : () -> ()
    %cst_214 = arith.constant dense<0.000000e+00> : vector<8x8xf32>
    %266 = tpu.matmul %264, %265, %cst_214 {dimension_numbers = #tpu.dot_dimension_numbers<[1], [1], [0], [0], [0, 0, 1, 0], [], []>} : vector<8x8xbf16>, vector<8x8xbf16>, vector<8x8xf32> -> vector<8x8xf32>
    "tpu.trace_stop"() : () -> ()
    %cst_215 = arith.constant dense<0xFF800000> : vector<8xf32>
    %267 = vector.multi_reduction <maximumf>, %266, %cst_215 [1] : vector<8x8xf32> to vector<8xf32>
    %268 = vector.shape_cast %267 : vector<8xf32> to vector<8x1xf32>
    %269 = vector.broadcast %268 : vector<8x1xf32> to vector<8x8xf32>
    %270 = arith.subf %266, %269 : vector<8x8xf32>
    %271 = math.exp %270 : vector<8x8xf32>
    %cst_216 = arith.constant dense<0.000000e+00> : vector<8xf32>
    %272 = vector.multi_reduction <add>, %271, %cst_216 [1] : vector<8x8xf32> to vector<8xf32>
    %273 = vector.shape_cast %272 : vector<8xf32> to vector<8x1xf32>
    %274 = tpu.reciprocal %273 {approx = true} : vector<8x1xf32> -> vector<8x1xf32>
    %275 = vector.broadcast %274 : vector<8x1xf32> to vector<8x8xf32>
    %276 = arith.mulf %271, %275 : vector<8x8xf32>
    %277 = arith.truncf %276 : vector<8x8xf32> to vector<8x8xbf16>
    %278 = arith.truncf %263 : vector<8x8xf32> to vector<8x8xbf16>
    %cst_217 = arith.constant dense<0.000000e+00> : vector<8x8xf32>
    %279 = tpu.matmul %277, %278, %cst_217 {dimension_numbers = #tpu.dot_dimension_numbers<[1], [0], [0], [1], [0, 0, 1, 1], [], []>} : vector<8x8xbf16>, vector<8x8xbf16>, vector<8x8xf32> -> vector<8x8xf32>
    %280 = arith.truncf %279 : vector<8x8xf32> to vector<8x8xbf16>
    %c1_218 = arith.constant 1 : index
    %c0_219 = arith.constant 0 : index
    %c0_220 = arith.constant 0 : index
    %281 = vector.load %arg6[%c1_218, %c0_219, %c0_220] : memref<4x8x32xbf16, #tpu.memory_space<vmem>>, vector<1x8x32xbf16>
    %282 = vector.shape_cast %281 : vector<1x8x32xbf16> to vector<8x32xbf16>
    %cst_221 = arith.constant dense<0.000000e+00> : vector<8x32xf32>
    %283 = tpu.matmul %280, %282, %cst_221 {dimension_numbers = #tpu.dot_dimension_numbers<[1], [0], [0], [1], [0, 0, 1, 1], [], []>} : vector<8x8xbf16>, vector<8x32xbf16>, vector<8x32xf32> -> vector<8x32xf32>
    %284 = arith.addf %242, %283 : vector<8x32xf32>
    %c0_222 = arith.constant 0 : index
    %c2_223 = arith.constant 2 : index
    %c0_224 = arith.constant 0 : index
    %c0_225 = arith.constant 0 : index
    %285 = vector.load %arg5[%c0_222, %c2_223, %c0_224, %c0_225] : memref<3x4x32x8xbf16, #tpu.memory_space<vmem>>, vector<1x1x32x8xbf16>
    %286 = vector.shape_cast %285 : vector<1x1x32x8xbf16> to vector<32x8xbf16>
    %cst_226 = arith.constant dense<0.000000e+00> : vector<8x8xf32>
    %287 = tpu.matmul %201, %286, %cst_226 {dimension_numbers = #tpu.dot_dimension_numbers<[1], [0], [0], [1], [0, 0, 1, 1], [], []>} : vector<8x32xbf16>, vector<32x8xbf16>, vector<8x8xf32> -> vector<8x8xf32>
    %c0_227 = arith.constant 0 : index
    %c2_228 = arith.constant 2 : index
    %c0_229 = arith.constant 0 : index
    %c0_230 = arith.constant 0 : index
    %288 = vector.load %arg3[%c0_227, %c2_228, %c0_229, %c0_230] : memref<3x4x1x8xf32, #tpu.memory_space<vmem>>, vector<1x1x1x8xf32>
    %289 = vector.shape_cast %288 : vector<1x1x1x8xf32> to vector<1x8xf32>
    %290 = vector.broadcast %289 : vector<1x8xf32> to vector<8x8xf32>
    %291 = arith.addf %287, %290 : vector<8x8xf32>
    %c1_231 = arith.constant 1 : index
    %c2_232 = arith.constant 2 : index
    %c0_233 = arith.constant 0 : index
    %c0_234 = arith.constant 0 : index
    %292 = vector.load %arg5[%c1_231, %c2_232, %c0_233, %c0_234] : memref<3x4x32x8xbf16, #tpu.memory_space<vmem>>, vector<1x1x32x8xbf16>
    %293 = vector.shape_cast %292 : vector<1x1x32x8xbf16> to vector<32x8xbf16>
    %cst_235 = arith.constant dense<0.000000e+00> : vector<8x8xf32>
    %294 = tpu.matmul %201, %293, %cst_235 {dimension_numbers = #tpu.dot_dimension_numbers<[1], [0], [0], [1], [0, 0, 1, 1], [], []>} : vector<8x32xbf16>, vector<32x8xbf16>, vector<8x8xf32> -> vector<8x8xf32>
    %c1_236 = arith.constant 1 : index
    %c2_237 = arith.constant 2 : index
    %c0_238 = arith.constant 0 : index
    %c0_239 = arith.constant 0 : index
    %295 = vector.load %arg3[%c1_236, %c2_237, %c0_238, %c0_239] : memref<3x4x1x8xf32, #tpu.memory_space<vmem>>, vector<1x1x1x8xf32>
    %296 = vector.shape_cast %295 : vector<1x1x1x8xf32> to vector<1x8xf32>
    %297 = vector.broadcast %296 : vector<1x8xf32> to vector<8x8xf32>
    %298 = arith.addf %294, %297 : vector<8x8xf32>
    %c2_240 = arith.constant 2 : index
    %c2_241 = arith.constant 2 : index
    %c0_242 = arith.constant 0 : index
    %c0_243 = arith.constant 0 : index
    %299 = vector.load %arg5[%c2_240, %c2_241, %c0_242, %c0_243] : memref<3x4x32x8xbf16, #tpu.memory_space<vmem>>, vector<1x1x32x8xbf16>
    %300 = vector.shape_cast %299 : vector<1x1x32x8xbf16> to vector<32x8xbf16>
    %cst_244 = arith.constant dense<0.000000e+00> : vector<8x8xf32>
    %301 = tpu.matmul %201, %300, %cst_244 {dimension_numbers = #tpu.dot_dimension_numbers<[1], [0], [0], [1], [0, 0, 1, 1], [], []>} : vector<8x32xbf16>, vector<32x8xbf16>, vector<8x8xf32> -> vector<8x8xf32>
    %c2_245 = arith.constant 2 : index
    %c2_246 = arith.constant 2 : index
    %c0_247 = arith.constant 0 : index
    %c0_248 = arith.constant 0 : index
    %302 = vector.load %arg3[%c2_245, %c2_246, %c0_247, %c0_248] : memref<3x4x1x8xf32, #tpu.memory_space<vmem>>, vector<1x1x1x8xf32>
    %303 = vector.shape_cast %302 : vector<1x1x1x8xf32> to vector<1x8xf32>
    %304 = vector.broadcast %303 : vector<1x8xf32> to vector<8x8xf32>
    %305 = arith.addf %301, %304 : vector<8x8xf32>
    %306 = arith.truncf %291 : vector<8x8xf32> to vector<8x8xbf16>
    %307 = arith.truncf %298 : vector<8x8xf32> to vector<8x8xbf16>
    "tpu.trace_start"() <{level = 10 : i32, message = "ne,me->nm"}> : () -> ()
    %cst_249 = arith.constant dense<0.000000e+00> : vector<8x8xf32>
    %308 = tpu.matmul %306, %307, %cst_249 {dimension_numbers = #tpu.dot_dimension_numbers<[1], [1], [0], [0], [0, 0, 1, 0], [], []>} : vector<8x8xbf16>, vector<8x8xbf16>, vector<8x8xf32> -> vector<8x8xf32>
    "tpu.trace_stop"() : () -> ()
    %cst_250 = arith.constant dense<0xFF800000> : vector<8xf32>
    %309 = vector.multi_reduction <maximumf>, %308, %cst_250 [1] : vector<8x8xf32> to vector<8xf32>
    %310 = vector.shape_cast %309 : vector<8xf32> to vector<8x1xf32>
    %311 = vector.broadcast %310 : vector<8x1xf32> to vector<8x8xf32>
    %312 = arith.subf %308, %311 : vector<8x8xf32>
    %313 = math.exp %312 : vector<8x8xf32>
    %cst_251 = arith.constant dense<0.000000e+00> : vector<8xf32>
    %314 = vector.multi_reduction <add>, %313, %cst_251 [1] : vector<8x8xf32> to vector<8xf32>
    %315 = vector.shape_cast %314 : vector<8xf32> to vector<8x1xf32>
    %316 = tpu.reciprocal %315 {approx = true} : vector<8x1xf32> -> vector<8x1xf32>
    %317 = vector.broadcast %316 : vector<8x1xf32> to vector<8x8xf32>
    %318 = arith.mulf %313, %317 : vector<8x8xf32>
    %319 = arith.truncf %318 : vector<8x8xf32> to vector<8x8xbf16>
    %320 = arith.truncf %305 : vector<8x8xf32> to vector<8x8xbf16>
    %cst_252 = arith.constant dense<0.000000e+00> : vector<8x8xf32>
    %321 = tpu.matmul %319, %320, %cst_252 {dimension_numbers = #tpu.dot_dimension_numbers<[1], [0], [0], [1], [0, 0, 1, 1], [], []>} : vector<8x8xbf16>, vector<8x8xbf16>, vector<8x8xf32> -> vector<8x8xf32>
    %322 = arith.truncf %321 : vector<8x8xf32> to vector<8x8xbf16>
    %c2_253 = arith.constant 2 : index
    %c0_254 = arith.constant 0 : index
    %c0_255 = arith.constant 0 : index
    %323 = vector.load %arg6[%c2_253, %c0_254, %c0_255] : memref<4x8x32xbf16, #tpu.memory_space<vmem>>, vector<1x8x32xbf16>
    %324 = vector.shape_cast %323 : vector<1x8x32xbf16> to vector<8x32xbf16>
    %cst_256 = arith.constant dense<0.000000e+00> : vector<8x32xf32>
    %325 = tpu.matmul %322, %324, %cst_256 {dimension_numbers = #tpu.dot_dimension_numbers<[1], [0], [0], [1], [0, 0, 1, 1], [], []>} : vector<8x8xbf16>, vector<8x32xbf16>, vector<8x32xf32> -> vector<8x32xf32>
    %326 = arith.addf %284, %325 : vector<8x32xf32>
    %c0_257 = arith.constant 0 : index
    %c3_258 = arith.constant 3 : index
    %c0_259 = arith.constant 0 : index
    %c0_260 = arith.constant 0 : index
    %327 = vector.load %arg5[%c0_257, %c3_258, %c0_259, %c0_260] : memref<3x4x32x8xbf16, #tpu.memory_space<vmem>>, vector<1x1x32x8xbf16>
    %328 = vector.shape_cast %327 : vector<1x1x32x8xbf16> to vector<32x8xbf16>
    %cst_261 = arith.constant dense<0.000000e+00> : vector<8x8xf32>
    %329 = tpu.matmul %201, %328, %cst_261 {dimension_numbers = #tpu.dot_dimension_numbers<[1], [0], [0], [1], [0, 0, 1, 1], [], []>} : vector<8x32xbf16>, vector<32x8xbf16>, vector<8x8xf32> -> vector<8x8xf32>
    %c0_262 = arith.constant 0 : index
    %c3_263 = arith.constant 3 : index
    %c0_264 = arith.constant 0 : index
    %c0_265 = arith.constant 0 : index
    %330 = vector.load %arg3[%c0_262, %c3_263, %c0_264, %c0_265] : memref<3x4x1x8xf32, #tpu.memory_space<vmem>>, vector<1x1x1x8xf32>
    %331 = vector.shape_cast %330 : vector<1x1x1x8xf32> to vector<1x8xf32>
    %332 = vector.broadcast %331 : vector<1x8xf32> to vector<8x8xf32>
    %333 = arith.addf %329, %332 : vector<8x8xf32>
    %c1_266 = arith.constant 1 : index
    %c3_267 = arith.constant 3 : index
    %c0_268 = arith.constant 0 : index
    %c0_269 = arith.constant 0 : index
    %334 = vector.load %arg5[%c1_266, %c3_267, %c0_268, %c0_269] : memref<3x4x32x8xbf16, #tpu.memory_space<vmem>>, vector<1x1x32x8xbf16>
    %335 = vector.shape_cast %334 : vector<1x1x32x8xbf16> to vector<32x8xbf16>
    %cst_270 = arith.constant dense<0.000000e+00> : vector<8x8xf32>
    %336 = tpu.matmul %201, %335, %cst_270 {dimension_numbers = #tpu.dot_dimension_numbers<[1], [0], [0], [1], [0, 0, 1, 1], [], []>} : vector<8x32xbf16>, vector<32x8xbf16>, vector<8x8xf32> -> vector<8x8xf32>
    %c1_271 = arith.constant 1 : index
    %c3_272 = arith.constant 3 : index
    %c0_273 = arith.constant 0 : index
    %c0_274 = arith.constant 0 : index
    %337 = vector.load %arg3[%c1_271, %c3_272, %c0_273, %c0_274] : memref<3x4x1x8xf32, #tpu.memory_space<vmem>>, vector<1x1x1x8xf32>
    %338 = vector.shape_cast %337 : vector<1x1x1x8xf32> to vector<1x8xf32>
    %339 = vector.broadcast %338 : vector<1x8xf32> to vector<8x8xf32>
    %340 = arith.addf %336, %339 : vector<8x8xf32>
    %c2_275 = arith.constant 2 : index
    %c3_276 = arith.constant 3 : index
    %c0_277 = arith.constant 0 : index
    %c0_278 = arith.constant 0 : index
    %341 = vector.load %arg5[%c2_275, %c3_276, %c0_277, %c0_278] : memref<3x4x32x8xbf16, #tpu.memory_space<vmem>>, vector<1x1x32x8xbf16>
    %342 = vector.shape_cast %341 : vector<1x1x32x8xbf16> to vector<32x8xbf16>
    %cst_279 = arith.constant dense<0.000000e+00> : vector<8x8xf32>
    %343 = tpu.matmul %201, %342, %cst_279 {dimension_numbers = #tpu.dot_dimension_numbers<[1], [0], [0], [1], [0, 0, 1, 1], [], []>} : vector<8x32xbf16>, vector<32x8xbf16>, vector<8x8xf32> -> vector<8x8xf32>
    %c2_280 = arith.constant 2 : index
    %c3_281 = arith.constant 3 : index
    %c0_282 = arith.constant 0 : index
    %c0_283 = arith.constant 0 : index
    %344 = vector.load %arg3[%c2_280, %c3_281, %c0_282, %c0_283] : memref<3x4x1x8xf32, #tpu.memory_space<vmem>>, vector<1x1x1x8xf32>
    %345 = vector.shape_cast %344 : vector<1x1x1x8xf32> to vector<1x8xf32>
    %346 = vector.broadcast %345 : vector<1x8xf32> to vector<8x8xf32>
    %347 = arith.addf %343, %346 : vector<8x8xf32>
    %348 = arith.truncf %333 : vector<8x8xf32> to vector<8x8xbf16>
    %349 = arith.truncf %340 : vector<8x8xf32> to vector<8x8xbf16>
    "tpu.trace_start"() <{level = 10 : i32, message = "ne,me->nm"}> : () -> ()
    %cst_284 = arith.constant dense<0.000000e+00> : vector<8x8xf32>
    %350 = tpu.matmul %348, %349, %cst_284 {dimension_numbers = #tpu.dot_dimension_numbers<[1], [1], [0], [0], [0, 0, 1, 0], [], []>} : vector<8x8xbf16>, vector<8x8xbf16>, vector<8x8xf32> -> vector<8x8xf32>
    "tpu.trace_stop"() : () -> ()
    %cst_285 = arith.constant dense<0xFF800000> : vector<8xf32>
    %351 = vector.multi_reduction <maximumf>, %350, %cst_285 [1] : vector<8x8xf32> to vector<8xf32>
    %352 = vector.shape_cast %351 : vector<8xf32> to vector<8x1xf32>
    %353 = vector.broadcast %352 : vector<8x1xf32> to vector<8x8xf32>
    %354 = arith.subf %350, %353 : vector<8x8xf32>
    %355 = math.exp %354 : vector<8x8xf32>
    %cst_286 = arith.constant dense<0.000000e+00> : vector<8xf32>
    %356 = vector.multi_reduction <add>, %355, %cst_286 [1] : vector<8x8xf32> to vector<8xf32>
    %357 = vector.shape_cast %356 : vector<8xf32> to vector<8x1xf32>
    %358 = tpu.reciprocal %357 {approx = true} : vector<8x1xf32> -> vector<8x1xf32>
    %359 = vector.broadcast %358 : vector<8x1xf32> to vector<8x8xf32>
    %360 = arith.mulf %355, %359 : vector<8x8xf32>
    %361 = arith.truncf %360 : vector<8x8xf32> to vector<8x8xbf16>
    %362 = arith.truncf %347 : vector<8x8xf32> to vector<8x8xbf16>
    %cst_287 = arith.constant dense<0.000000e+00> : vector<8x8xf32>
    %363 = tpu.matmul %361, %362, %cst_287 {dimension_numbers = #tpu.dot_dimension_numbers<[1], [0], [0], [1], [0, 0, 1, 1], [], []>} : vector<8x8xbf16>, vector<8x8xbf16>, vector<8x8xf32> -> vector<8x8xf32>
    %364 = arith.truncf %363 : vector<8x8xf32> to vector<8x8xbf16>
    %c3_288 = arith.constant 3 : index
    %c0_289 = arith.constant 0 : index
    %c0_290 = arith.constant 0 : index
    %365 = vector.load %arg6[%c3_288, %c0_289, %c0_290] : memref<4x8x32xbf16, #tpu.memory_space<vmem>>, vector<1x8x32xbf16>
    %366 = vector.shape_cast %365 : vector<1x8x32xbf16> to vector<8x32xbf16>
    %cst_291 = arith.constant dense<0.000000e+00> : vector<8x32xf32>
    %367 = tpu.matmul %364, %366, %cst_291 {dimension_numbers = #tpu.dot_dimension_numbers<[1], [0], [0], [1], [0, 0, 1, 1], [], []>} : vector<8x8xbf16>, vector<8x32xbf16>, vector<8x32xf32> -> vector<8x32xf32>
    %368 = arith.addf %326, %367 : vector<8x32xf32>
    %c4_292 = arith.constant 4 : index
    %c0_293 = arith.constant 0 : index
    %c0_294 = arith.constant 0 : index
    %369 = vector.load %arg2[%c4_292, %c0_293, %c0_294] : memref<6x1x32xf32, #tpu.memory_space<vmem>>, vector<1x1x32xf32>
    %370 = vector.shape_cast %369 : vector<1x1x32xf32> to vector<1x32xf32>
    %371 = vector.broadcast %370 : vector<1x32xf32> to vector<8x32xf32>
    %372 = arith.addf %368, %371 : vector<8x32xf32>
    %c8 = arith.constant 8 : index
    %c0_295 = arith.constant 0 : index
    %373 = vector.load %arg10[%c8, %c0_295] : memref<16x32xf32, #tpu.memory_space<vmem>>, vector<8x32xf32>
    tpu.vector_store %arg10[%c8, %c0_295], %372 {strides = array<i32>} : memref<16x32xf32, #tpu.memory_space<vmem>>, vector<8x32xf32>,
    %c0_296 = arith.constant 0 : index
    %c0_297 = arith.constant 0 : index
    %374 = vector.load %arg10[%c0_296, %c0_297] : memref<16x32xf32, #tpu.memory_space<vmem>>, vector<16x32xf32>
    %375 = arith.addf %0, %374 : vector<16x32xf32>
    %c2_298 = arith.constant 2 : index
    %c0_299 = arith.constant 0 : index
    %c0_300 = arith.constant 0 : index
    %376 = vector.load %arg2[%c2_298, %c0_299, %c0_300] : memref<6x1x32xf32, #tpu.memory_space<vmem>>, vector<1x1x32xf32>
    %377 = vector.shape_cast %376 : vector<1x1x32xf32> to vector<1x32xf32>
    %c3_301 = arith.constant 3 : index
    %c0_302 = arith.constant 0 : index
    %c0_303 = arith.constant 0 : index
    %378 = vector.load %arg2[%c3_301, %c0_302, %c0_303] : memref<6x1x32xf32, #tpu.memory_space<vmem>>, vector<1x1x32xf32>
    %379 = vector.shape_cast %378 : vector<1x1x32xf32> to vector<1x32xf32>
    %cst_304 = arith.constant dense<0.000000e+00> : vector<16xf32>
    %380 = vector.multi_reduction <add>, %375, %cst_304 [1] : vector<16x32xf32> to vector<16xf32>
    %381 = vector.shape_cast %380 : vector<16xf32> to vector<16x1xf32>
    %cst_305 = arith.constant 3.200000e+01 : f32
    %382 = vector.broadcast %cst_305 : f32 to vector<16x1xf32>
    %383 = arith.divf %381, %382 : vector<16x1xf32>
    %384 = vector.broadcast %383 : vector<16x1xf32> to vector<16x32xf32>
    %385 = arith.subf %375, %384 : vector<16x32xf32>
    %386 = arith.mulf %385, %385 : vector<16x32xf32>
    %cst_306 = arith.constant dense<0.000000e+00> : vector<16xf32>
    %387 = vector.multi_reduction <add>, %386, %cst_306 [1] : vector<16x32xf32> to vector<16xf32>
    %388 = vector.shape_cast %387 : vector<16xf32> to vector<16x1xf32>
    %cst_307 = arith.constant 3.200000e+01 : f32
    %389 = vector.broadcast %cst_307 : f32 to vector<16x1xf32>
    %390 = arith.divf %388, %389 : vector<16x1xf32>
    %391 = vector.broadcast %383 : vector<16x1xf32> to vector<16x32xf32>
    %392 = arith.subf %375, %391 : vector<16x32xf32>
    %cst_308 = arith.constant 9.99999974E-6 : f32
    %393 = vector.broadcast %cst_308 : f32 to vector<16x1xf32>
    %394 = arith.addf %390, %393 : vector<16x1xf32>
    %395 = math.rsqrt %394 : vector<16x1xf32>
    %396 = vector.broadcast %395 : vector<16x1xf32> to vector<16x32xf32>
    %397 = arith.mulf %392, %396 : vector<16x32xf32>
    %398 = vector.broadcast %377 : vector<1x32xf32> to vector<16x32xf32>
    %399 = arith.mulf %397, %398 : vector<16x32xf32>
    %400 = vector.broadcast %379 : vector<1x32xf32> to vector<16x32xf32>
    %401 = arith.addf %399, %400 : vector<16x32xf32>
    %402 = arith.truncf %401 : vector<16x32xf32> to vector<16x32xbf16>
    %c0_309 = arith.constant 0 : index
    %c0_310 = arith.constant 0 : index
    %403 = vector.load %arg7[%c0_309, %c0_310] : memref<32x64xbf16, #tpu.memory_space<vmem>>, vector<32x64xbf16>
    %cst_311 = arith.constant dense<0.000000e+00> : vector<16x64xf32>
    %404 = tpu.matmul %402, %403, %cst_311 {dimension_numbers = #tpu.dot_dimension_numbers<[1], [0], [0], [1], [0, 0, 1, 1], [], []>} : vector<16x32xbf16>, vector<32x64xbf16>, vector<16x64xf32> -> vector<16x64xf32>
    %c0_312 = arith.constant 0 : index
    %c0_313 = arith.constant 0 : index
    %405 = vector.load %arg4[%c0_312, %c0_313] : memref<1x64xf32, #tpu.memory_space<vmem>>, vector<1x64xf32>
    %406 = vector.broadcast %405 : vector<1x64xf32> to vector<16x64xf32>
    %407 = arith.addf %404, %406 : vector<16x64xf32>
    %408 = arith.mulf %407, %407 : vector<16x64xf32>
    %409 = arith.mulf %407, %408 : vector<16x64xf32>
    %cst_314 = arith.constant 4.471500e-02 : f32
    %410 = vector.broadcast %cst_314 : f32 to vector<16x64xf32>
    %411 = arith.mulf %410, %409 : vector<16x64xf32>
    %412 = arith.addf %407, %411 : vector<16x64xf32>
    %cst_315 = arith.constant 0.797884583 : f32
    %413 = vector.broadcast %cst_315 : f32 to vector<16x64xf32>
    %414 = arith.mulf %413, %412 : vector<16x64xf32>
    %415 = math.tanh %414 : vector<16x64xf32>
    %cst_316 = arith.constant 1.000000e+00 : f32
    %416 = vector.broadcast %cst_316 : f32 to vector<16x64xf32>
    %417 = arith.addf %416, %415 : vector<16x64xf32>
    %cst_317 = arith.constant 5.000000e-01 : f32
    %418 = vector.broadcast %cst_317 : f32 to vector<16x64xf32>
    %419 = arith.mulf %418, %417 : vector<16x64xf32>
    %420 = arith.mulf %407, %419 : vector<16x64xf32>
    %421 = arith.truncf %420 : vector<16x64xf32> to vector<16x64xbf16>
    %c0_318 = arith.constant 0 : index
    %c0_319 = arith.constant 0 : index
    %422 = vector.load %arg8[%c0_318, %c0_319] : memref<64x32xbf16, #tpu.memory_space<vmem>>, vector<64x32xbf16>
    %cst_320 = arith.constant dense<0.000000e+00> : vector<16x32xf32>
    %423 = tpu.matmul %421, %422, %cst_320 {dimension_numbers = #tpu.dot_dimension_numbers<[1], [0], [0], [1], [0, 0, 1, 1], [], []>} : vector<16x64xbf16>, vector<64x32xbf16>, vector<16x32xf32> -> vector<16x32xf32>
    %c5 = arith.constant 5 : index
    %c0_321 = arith.constant 0 : index
    %c0_322 = arith.constant 0 : index
    %424 = vector.load %arg2[%c5, %c0_321, %c0_322] : memref<6x1x32xf32, #tpu.memory_space<vmem>>, vector<1x1x32xf32>
    %425 = vector.shape_cast %424 : vector<1x1x32xf32> to vector<1x32xf32>
    %426 = vector.broadcast %425 : vector<1x32xf32> to vector<16x32xf32>
    %427 = arith.addf %423, %426 : vector<16x32xf32>
    %428 = arith.addf %375, %427 : vector<16x32xf32>
    %c0_323 = arith.constant 0 : index
    %c0_324 = arith.constant 0 : index
    %429 = vector.load %arg9[%c0_323, %c0_324] : memref<16x32xf32, #tpu.memory_space<vmem>>, vector<16x32xf32>
    tpu.vector_store %arg9[%c0_323, %c0_324], %428 {strides = array<i32>} : memref<16x32xf32, #tpu.memory_space<vmem>>, vector<16x32xf32>,
    return
  }
  func.func @transform_0(%arg0: i32) -> (i32, i32) {
    %c0_i32 = arith.constant 0 : i32
    %c0_i32_0 = arith.constant 0 : i32
    return %arg0, %c0_i32 : i32, i32
  }
  func.func @transform_1(%arg0: i32) -> (i32, i32, i32) {
    %c0_i32 = arith.constant 0 : i32
    %c0_i32_0 = arith.constant 0 : i32
    %c0_i32_1 = arith.constant 0 : i32
    %c0_i32_2 = arith.constant 0 : i32
    return %c0_i32, %c0_i32_0, %c0_i32_1 : i32, i32, i32
  }
  func.func @transform_2(%arg0: i32) -> (i32, i32, i32, i32) {
    %c0_i32 = arith.constant 0 : i32
    %c0_i32_0 = arith.constant 0 : i32
    %c0_i32_1 = arith.constant 0 : i32
    %c0_i32_2 = arith.constant 0 : i32
    %c0_i32_3 = arith.constant 0 : i32
    return %c0_i32, %c0_i32_0, %c0_i32_1, %c0_i32_2 : i32, i32, i32, i32
  }
  func.func @transform_3(%arg0: i32) -> (i32, i32) {
    %c0_i32 = arith.constant 0 : i32
    %c0_i32_0 = arith.constant 0 : i32
    %c0_i32_1 = arith.constant 0 : i32
    return %c0_i32, %c0_i32_0 : i32, i32
  }
  func.func @transform_4(%arg0: i32) -> (i32, i32, i32, i32) {
    %c0_i32 = arith.constant 0 : i32
    %c0_i32_0 = arith.constant 0 : i32
    %c0_i32_1 = arith.constant 0 : i32
    %c0_i32_2 = arith.constant 0 : i32
    %c0_i32_3 = arith.constant 0 : i32
    return %c0_i32, %c0_i32_0, %c0_i32_1, %c0_i32_2 : i32, i32, i32, i32
  }
  func.func @transform_5(%arg0: i32) -> (i32, i32, i32) {
    %c0_i32 = arith.constant 0 : i32
    %c0_i32_0 = arith.constant 0 : i32
    %c0_i32_1 = arith.constant 0 : i32
    %c0_i32_2 = arith.constant 0 : i32
    return %c0_i32, %c0_i32_0, %c0_i32_1 : i32, i32, i32
  }
  func.func @transform_6(%arg0: i32) -> (i32, i32) {
    %c0_i32 = arith.constant 0 : i32
    %c0_i32_0 = arith.constant 0 : i32
    %c0_i32_1 = arith.constant 0 : i32
    return %c0_i32, %c0_i32_0 : i32, i32
  }
  func.func @transform_7(%arg0: i32) -> (i32, i32) {
    %c0_i32 = arith.constant 0 : i32
    %c0_i32_0 = arith.constant 0 : i32
    %c0_i32_1 = arith.constant 0 : i32
    return %c0_i32, %c0_i32_0 : i32, i32
  }
  func.func @transform_8(%arg0: i32) -> (i32, i32) {
    %c0_i32 = arith.constant 0 : i32
    %c0_i32_0 = arith.constant 0 : i32
    return %arg0, %c0_i32 : i32, i32
  }
}

</mosaic_0001>

<llo_original>
// kernel: tpu_custom_call.1
$region0: #{tpu_custom_call.1}
  #allocation0 [shape = 'u32[]', space=smem, size = 0x4, offset = 0x4, fixed_abs, tag = 'smem constant byte address 0x4 - core index']
  #allocation1 [shape = 'u32[144,128]{1,0:T(1,128)}', space=vmem, size = 0x12000, scoped, tag = 'internal scratch']
  #allocation2 [shape = 'f32[16,32]{1,0:T(8,128)}', space=vmem, size = 0x2000, scoped, tag = 'scratch operand']
  %s0 = inlined_call_operand.vmem [shape: f32[16,32], index: 0, kind: input, shape index: {}]
  %s1 = inlined_call_operand.vmem [shape: f32[6,1,32], index: 1, kind: input, shape index: {}]
  %s2 = inlined_call_operand.vmem [shape: f32[3,4,1,8], index: 2, kind: input, shape index: {}]
  %s3 = inlined_call_operand.vmem [shape: f32[1,64], index: 3, kind: input, shape index: {}]
  %s4 = inlined_call_operand.vmem [shape: bf16[3,4,32,8], index: 4, kind: input, shape index: {}]
  %s5 = inlined_call_operand.vmem [shape: bf16[4,8,32], index: 5, kind: input, shape index: {}]
  %s6 = inlined_call_operand.vmem [shape: bf16[32,64], index: 6, kind: input, shape index: {}]
  %s7 = inlined_call_operand.vmem [shape: bf16[64,32], index: 7, kind: input, shape index: {}]
  %s8 = inlined_call_operand.hbm [shape: f32[16,32], index: 8, kind: output, shape index: {}]
  %s9 = sld [smem:[#allocation0]]
  $region42: #{tpu_custom_call.1} parent=0
    _
  %s11 = ssub.s32 1, %s9
  %s12 = scalar_select 0, %s11, %s9
  $region1: #{tpu_custom_call.1} parent=0
    #allocation3 [shape = 'u8[8192]{0}', space=vmem, size = 0x2000, scoped, tag = 'output window, operand 0, single buffered']
    #allocation4 [shape = 's32[1]{0}', space=sflag, size = 0x4, scoped, tag = 'scoped memory for tpu_custom_call.1']
    %13 = vsyncpa [#allocation4], 0
    // Predicated region
    $region2: #{tpu_custom_call.1} parent=1 // pred_check
      _
    $region3: #{tpu_custom_call.1} parent=1 // pred_check_branch
      %15 = sbr.rel (0) target = $region5
    $region4: #{tpu_custom_call.1} parent=1 // pred_region
      _
    $region5: #{tpu_custom_call.1} parent=1 // pred_fallthru
      _
    // Predicated region
    $region6: #{tpu_custom_call.1} parent=1 // pred_check
      _
    $region7: #{tpu_custom_call.1} parent=1 // pred_check_branch
      %17 = sbr.rel (0) target = $region9
    $region8: #{tpu_custom_call.1} parent=1 // pred_region
      _
    $region9: #{tpu_custom_call.1} parent=1 // pred_fallthru
      _
    // Predicated region
    $region10: #{tpu_custom_call.1} parent=1 // pred_check
      _
    $region11: #{tpu_custom_call.1} parent=1 // pred_check_branch
      %19 = sbr.rel (0) target = $region13
    $region12: #{tpu_custom_call.1} parent=1 // pred_region
      _
    $region13: #{tpu_custom_call.1} parent=1 // pred_fallthru
      _
    // Predicated region
    $region14: #{tpu_custom_call.1} parent=1 // pred_check
      _
    $region15: #{tpu_custom_call.1} parent=1 // pred_check_branch
      %21 = sbr.rel (0) target = $region17
    $region16: #{tpu_custom_call.1} parent=1 // pred_region
      _
    $region17: #{tpu_custom_call.1} parent=1 // pred_fallthru
      _
    // Predicated region
    $region18: #{tpu_custom_call.1} parent=1 // pred_check
      _
    $region19: #{tpu_custom_call.1} parent=1 // pred_check_branch
      %23 = sbr.rel (0) target = $region21
    $region20: #{tpu_custom_call.1} parent=1 // pred_region
      _
    $region21: #{tpu_custom_call.1} parent=1 // pred_fallthru
      _
    // Predicated region
    $region22: #{tpu_custom_call.1} parent=1 // pred_check
      _
    $region23: #{tpu_custom_call.1} parent=1 // pred_check_branch
      %25 = sbr.rel (0) target = $region25
    $region24: #{tpu_custom_call.1} parent=1 // pred_region
      _
    $region25: #{tpu_custom_call.1} parent=1 // pred_fallthru
      _
    // Predicated region
    $region26: #{tpu_custom_call.1} parent=1 // pred_check
      _
    $region27: #{tpu_custom_call.1} parent=1 // pred_check_branch
      %27 = sbr.rel (0) target = $region29
    $region28: #{tpu_custom_call.1} parent=1 // pred_region
      _
    $region29: #{tpu_custom_call.1} parent=1 // pred_fallthru
      _
    // Predicated region
    $region30: #{tpu_custom_call.1} parent=1 // pred_check
      _
    $region31: #{tpu_custom_call.1} parent=1 // pred_check_branch
      %29 = sbr.rel (0) target = $region33
    $region32: #{tpu_custom_call.1} parent=1 // pred_region
      _
    $region33: #{tpu_custom_call.1} parent=1 // pred_fallthru
      _
    %v31 = vld [vmem:[%s0] sm:$0xff]
    %v32 = vld [vmem:[%s0 + $0x8] sm:$0xff]
    %v33 = vld [vmem:[%s1] sm:$0x1]
    %s34 = scalar_lea.vmem %s1, 1
    %v35 = vld [vmem:[%s34] sm:$0x1]
    %vm36 = vcmask 261120
    %v37 = vsel %vm36, %v31, 0.0
    %38 = vadd.xlane.f32.xlu0 %v37
    %v39 = vpop.xlane.xlu0 %38
    %v40 = vsel %vm36, %v32, 0.0
    %41 = vadd.xlane.f32.xlu0 %v40
    %v42 = vpop.xlane.xlu0 %41
    %v43 = vrcp.pop 32.0
    %v44 = vmul.f32 %v39, %v43
    %v45 = vmul.f32 %v42, %v43
    %v46 = vsub.f32 %v31, %v44
    %v47 = vsub.f32 %v32, %v45
    %v48 = vmul.f32 %v46, %v46
    %v49 = vmul.f32 %v47, %v47
    %v50 = vsel %vm36, %v48, 0.0
    %51 = vadd.xlane.f32.xlu0 %v50
    %v52 = vpop.xlane.xlu0 %51
    %v53 = vsel %vm36, %v49, 0.0
    %54 = vadd.xlane.f32.xlu0 %v53
    %v55 = vpop.xlane.xlu0 %54
    %v56 = vmul.f32 %v52, %v43
    %v57 = vmul.f32 %v55, %v43
    %v58 = vadd.f32 %v56, 1e-05
    %v59 = vadd.f32 %v57, 1e-05
    %v60 = vrsqrt.pop %v58
    %v61 = vrsqrt.pop %v59
    %v62 = vmul.f32 %v46, %v60
    %v63 = vmul.f32 %v47, %v61
    %v65 = vlaneseq
    %v66 = vshrl.u32 %v65, 7
    %v67 = vsub.s32 0, %v66
    %v68 = vrot.slane %v33, %v67
    %v70 = vmul.f32 %v62, %v68
    %v71 = vmul.f32 %v63, %v68
    %v73 = vlaneseq
    %v74 = vshrl.u32 %v73, 7
    %v75 = vsub.s32 0, %v74
    %v76 = vrot.slane %v35, %v75
    %v78 = vadd.f32 %v70, %v76
    %v79 = vadd.f32 %v71, %v76
    %v80 = vpack.c.bf16 %v79, %v78
    %v81 = vld [vmem:[%s4] sm:$0xf]
    %v82 = vld [vmem:[%s4 + $0x4] sm:$0xf]
    %v83 = vld [vmem:[%s4 + $0x8] sm:$0xf]
    %v84 = vld [vmem:[%s4 + $0xc] sm:$0xf]
    %v85 = vld [vmem:[%s2] sm:$0x1]
    %v87 = vlaneseq
    %v88 = vshrl.u32 %v87, 7
    %v89 = vsub.s32 0, %v88
    %v90 = vrot.slane %v85, %v89
    %v96 = vunpack.c.l.b16 %v81
    %v97 = vunpack.c.l.b16 %v82
    %v98 = vunpack.c.l.b16 %v83
    %v99 = vunpack.c.l.b16 %v84
    %v100 = vpack.c.b16 %v97, %v96
    %v101 = vpack.c.b16 %v99, %v98
    %v105 = vsel %vm36, %v80, 0
    %107 = vmatprep.subr.bf16.mxu0 0
    %108 = vmatpush1.bf16.msra.mxu0 %v100
    %109 = vmatprep.subr.bf16.mxu0 0
    %110 = vmatpush1.bf16.msra.mxu0 %v101
    %111 = vmatprep.subr.bf16.mxu0 0
    %112 = vmatpush1.bf16.msra.mxu0 0
    %113 = vmatprep.subr.bf16.mxu0 0
    %114 = vmatpush1.bf16.msra.mxu0 0
    %115 = vmatprep.subr.bf16.mxu0 0
    %116 = vmatpush1.bf16.msra.mxu0 0
    %117 = vmatprep.subr.bf16.mxu0 0
    %118 = vmatpush1.bf16.msra.mxu0 0
    %119 = vmatprep.subr.bf16.mxu0 0
    %120 = vmatpush1.bf16.msra.mxu0 0
    %121 = vmatprep.subr.bf16.mxu0 0
    %122 = vmatpush1.bf16.msra.mxu0 0
    %123 = vmatprep.subr.bf16.mxu0 0
    %124 = vmatpush1.bf16.msra.mxu0 0
    %125 = vmatprep.subr.bf16.mxu0 0
    %126 = vmatpush1.bf16.msra.mxu0 0
    %127 = vmatprep.subr.bf16.mxu0 0
    %128 = vmatpush1.bf16.msra.mxu0 0
    %129 = vmatprep.subr.bf16.mxu0 0
    %130 = vmatpush1.bf16.msra.mxu0 0
    %131 = vmatprep.subr.bf16.mxu0 0
    %132 = vmatpush1.bf16.msra.mxu0 0
    %133 = vmatprep.subr.bf16.mxu0 0
    %134 = vmatpush1.bf16.msra.mxu0 0
    %135 = vmatprep.subr.bf16.mxu0 0
    %136 = vmatpush1.bf16.msra.mxu0 0
    %137 = vmatprep.subr.bf16.mxu0 0
    %138 = vmatpush1.bf16.msra.mxu0 0
    %139 = vmatprep.mubr.bf16.mxu0 0
    %140 = vmatmul.mubr.bf16.gmra.mrb[0].mxu0 %v105
    %v141 = vpop.f32.mrb[0].mxu0
    %v142 = vadd.f32 %v90, %v141
    %v143 = vpop.f32.mrb[0].mxu0
    %v144 = vpop.f32.mrb[0].mxu0
    %v145 = vpop.f32.mrb[0].mxu0
    %146 = vdwg.mxu0
    %s147 = scalar_lea.vmem %s4, 64
    %v148 = vld [vmem:[%s147] sm:$0xf]
    %v149 = vld [vmem:[%s147 + $0x4] sm:$0xf]
    %v150 = vld [vmem:[%s147 + $0x8] sm:$0xf]
    %v151 = vld [vmem:[%s147 + $0xc] sm:$0xf]
    %s152 = scalar_lea.vmem %s2, 4
    %v153 = vld [vmem:[%s152] sm:$0x1]
    %v155 = vlaneseq
    %v156 = vshrl.u32 %v155, 7
    %v157 = vsub.s32 0, %v156
    %v158 = vrot.slane %v153, %v157
    %v164 = vunpack.c.l.b16 %v148
    %v165 = vunpack.c.l.b16 %v149
    %v166 = vunpack.c.l.b16 %v150
    %v167 = vunpack.c.l.b16 %v151
    %v168 = vpack.c.b16 %v165, %v164
    %v169 = vpack.c.b16 %v167, %v166
    %172 = vmatprep.subr.bf16.mxu0 0
    %173 = vmatpush1.bf16.msra.mxu0 %v168
    %174 = vmatprep.subr.bf16.mxu0 0
    %175 = vmatpush1.bf16.msra.mxu0 %v169
    %176 = vmatprep.subr.bf16.mxu0 0
    %177 = vmatpush1.bf16.msra.mxu0 0
    %178 = vmatprep.subr.bf16.mxu0 0
    %179 = vmatpush1.bf16.msra.mxu0 0
    %180 = vmatprep.subr.bf16.mxu0 0
    %181 = vmatpush1.bf16.msra.mxu0 0
    %182 = vmatprep.subr.bf16.mxu0 0
    %183 = vmatpush1.bf16.msra.mxu0 0
    %184 = vmatprep.subr.bf16.mxu0 0
    %185 = vmatpush1.bf16.msra.mxu0 0
    %186 = vmatprep.subr.bf16.mxu0 0
    %187 = vmatpush1.bf16.msra.mxu0 0
    %188 = vmatprep.subr.bf16.mxu0 0
    %189 = vmatpush1.bf16.msra.mxu0 0
    %190 = vmatprep.subr.bf16.mxu0 0
    %191 = vmatpush1.bf16.msra.mxu0 0
    %192 = vmatprep.subr.bf16.mxu0 0
    %193 = vmatpush1.bf16.msra.mxu0 0
    %194 = vmatprep.subr.bf16.mxu0 0
    %195 = vmatpush1.bf16.msra.mxu0 0
    %196 = vmatprep.subr.bf16.mxu0 0
    %197 = vmatpush1.bf16.msra.mxu0 0
    %198 = vmatprep.subr.bf16.mxu0 0
    %199 = vmatpush1.bf16.msra.mxu0 0
    %200 = vmatprep.subr.bf16.mxu0 0
    %201 = vmatpush1.bf16.msra.mxu0 0
    %202 = vmatprep.subr.bf16.mxu0 0
    %203 = vmatpush1.bf16.msra.mxu0 0
    %204 = vmatprep.mubr.bf16.mxu0 0
    %205 = vmatmul.mubr.bf16.gmra.mrb[0].mxu0 %v105
    %v206 = vpop.f32.mrb[0].mxu0
    %v207 = vadd.f32 %v158, %v206
    %v208 = vpop.f32.mrb[0].mxu0
    %v209 = vpop.f32.mrb[0].mxu0
    %v210 = vpop.f32.mrb[0].mxu0
    %211 = vdwg.mxu0
    %s212 = scalar_lea.vmem %s4, 128
    %v213 = vld [vmem:[%s212] sm:$0xf]
    %v214 = vld [vmem:[%s212 + $0x4] sm:$0xf]
    %v215 = vld [vmem:[%s212 + $0x8] sm:$0xf]
    %v216 = vld [vmem:[%s212 + $0xc] sm:$0xf]
    %s217 = scalar_lea.vmem %s2, 8
    %v218 = vld [vmem:[%s217] sm:$0x1]
    %v220 = vlaneseq
    %v221 = vshrl.u32 %v220, 7
    %v222 = vsub.s32 0, %v221
    %v223 = vrot.slane %v218, %v222
    %v229 = vunpack.c.l.b16 %v213
    %v230 = vunpack.c.l.b16 %v214
    %v231 = vunpack.c.l.b16 %v215
    %v232 = vunpack.c.l.b16 %v216
    %v233 = vpack.c.b16 %v230, %v229
    %v234 = vpack.c.b16 %v232, %v231
    %237 = vmatprep.subr.bf16.mxu0 0
    %238 = vmatpush1.bf16.msra.mxu0 %v233
    %239 = vmatprep.subr.bf16.mxu0 0
    %240 = vmatpush1.bf16.msra.mxu0 %v234
    %241 = vmatprep.subr.bf16.mxu0 0
    %242 = vmatpush1.bf16.msra.mxu0 0
    %243 = vmatprep.subr.bf16.mxu0 0
    %244 = vmatpush1.bf16.msra.mxu0 0
    %245 = vmatprep.subr.bf16.mxu0 0
    %246 = vmatpush1.bf16.msra.mxu0 0
    %247 = vmatprep.subr.bf16.mxu0 0
    %248 = vmatpush1.bf16.msra.mxu0 0
    %249 = vmatprep.subr.bf16.mxu0 0
    %250 = vmatpush1.bf16.msra.mxu0 0
    %251 = vmatprep.subr.bf16.mxu0 0
    %252 = vmatpush1.bf16.msra.mxu0 0
    %253 = vmatprep.subr.bf16.mxu0 0
    %254 = vmatpush1.bf16.msra.mxu0 0
    %255 = vmatprep.subr.bf16.mxu0 0
    %256 = vmatpush1.bf16.msra.mxu0 0
    %257 = vmatprep.subr.bf16.mxu0 0
    %258 = vmatpush1.bf16.msra.mxu0 0
    %259 = vmatprep.subr.bf16.mxu0 0
    %260 = vmatpush1.bf16.msra.mxu0 0
    %261 = vmatprep.subr.bf16.mxu0 0
    %262 = vmatpush1.bf16.msra.mxu0 0
    %263 = vmatprep.subr.bf16.mxu0 0
    %264 = vmatpush1.bf16.msra.mxu0 0
    %265 = vmatprep.subr.bf16.mxu0 0
    %266 = vmatpush1.bf16.msra.mxu0 0
    %267 = vmatprep.subr.bf16.mxu0 0
    %268 = vmatpush1.bf16.msra.mxu0 0
    %269 = vmatprep.mubr.bf16.mxu0 0
    %270 = vmatmul.mubr.bf16.gmra.mrb[0].mxu0 %v105
    %v271 = vpop.f32.mrb[0].mxu0
    %v272 = vadd.f32 %v223, %v271
    %v273 = vpop.f32.mrb[0].mxu0
    %v274 = vpop.f32.mrb[0].mxu0
    %v275 = vpop.f32.mrb[0].mxu0
    %276 = vdwg.mxu0
    %v277 = vpack.c.bf16 %v142, %v142
    %v278 = vpack.c.bf16 %v207, %v207
    %vm279 = vcmask 64512
    %v281 = vsel %vm279, %v277, 0
    %v284 = vsel %vm279, %v278, 0
    %286 = vmatprep.subr.bf16.mxu0 0
    %287 = vmatpush1.bf16.xpose.msra.mxu0 %v284
    %288 = vmatprep.subr.bf16.mxu0 0
    %289 = vmatpush1.bf16.xpose.msra.mxu0 0
    %290 = vmatprep.subr.bf16.mxu0 0
    %291 = vmatpush1.bf16.xpose.msra.mxu0 0
    %292 = vmatprep.subr.bf16.mxu0 0
    %293 = vmatpush1.bf16.xpose.msra.mxu0 0
    %294 = vmatprep.subr.bf16.mxu0 0
    %295 = vmatpush1.bf16.xpose.msra.mxu0 0
    %296 = vmatprep.subr.bf16.mxu0 0
    %297 = vmatpush1.bf16.xpose.msra.mxu0 0
    %298 = vmatprep.subr.bf16.mxu0 0
    %299 = vmatpush1.bf16.xpose.msra.mxu0 0
    %300 = vmatprep.subr.bf16.mxu0 0
    %301 = vmatpush1.bf16.xpose.msra.mxu0 0
    %302 = vmatprep.subr.bf16.mxu0 0
    %303 = vmatpush1.bf16.xpose.msra.mxu0 0
    %304 = vmatprep.subr.bf16.mxu0 0
    %305 = vmatpush1.bf16.xpose.msra.mxu0 0
    %306 = vmatprep.subr.bf16.mxu0 0
    %307 = vmatpush1.bf16.xpose.msra.mxu0 0
    %308 = vmatprep.subr.bf16.mxu0 0
    %309 = vmatpush1.bf16.xpose.msra.mxu0 0
    %310 = vmatprep.subr.bf16.mxu0 0
    %311 = vmatpush1.bf16.xpose.msra.mxu0 0
    %312 = vmatprep.subr.bf16.mxu0 0
    %313 = vmatpush1.bf16.xpose.msra.mxu0 0
    %314 = vmatprep.subr.bf16.mxu0 0
    %315 = vmatpush1.bf16.xpose.msra.mxu0 0
    %316 = vmatprep.subr.bf16.mxu0 0
    %317 = vmatpush1.bf16.xpose.msra.mxu0 0
    %318 = vmatprep.mubr.bf16.mxu0 0
    %319 = vmatmul.mubr.bf16.gmra.mrb[0].mxu0 %v281
    %v320 = vpop.f32.mrb[0].mxu0
    %v321 = vadd.f32 0.0, %v320
    %v322 = vpop.f32.mrb[0].mxu0
    %v323 = vpop.f32.mrb[0].mxu0
    %v324 = vpop.f32.mrb[0].mxu0
    %325 = vdwg.mxu0
    %v326 = vsel %vm279, %v321, -inf
    %327 = vmax.xlane.f32.xlu0 %v326
    %v328 = vpop.xlane.xlu0 %327
    %v329 = vsub.f32 %v321, %v328
    %v330 = vmul.f32 %v329, 1.442695
    %v331 = vpow.pop %v330
    %v332 = vsel %vm279, %v331, 0.0
    %333 = vadd.xlane.f32.xlu0 %v332
    %v334 = vpop.xlane.xlu0 %333
    %v335 = vrcp.pop %v334
    %v336 = vmul.f32 %v331, %v335
    %v337 = vpack.c.bf16 %v336, %v336
    %v338 = vpack.c.bf16 %v272, %v272
    %v340 = vsel %vm279, %v337, 0
    %vm342 = vcmask 1043456
    %v344 = vsel %vm342, %v338, 0
    %346 = vmatprep.subr.bf16.mxu0 0
    %347 = vmatpush1.bf16.msra.mxu0 %v344
    %348 = vmatprep.subr.bf16.mxu0 0
    %349 = vmatpush1.bf16.msra.mxu0 0
    %350 = vmatprep.subr.bf16.mxu0 0
    %351 = vmatpush1.bf16.msra.mxu0 0
    %352 = vmatprep.subr.bf16.mxu0 0
    %353 = vmatpush1.bf16.msra.mxu0 0
    %354 = vmatprep.subr.bf16.mxu0 0
    %355 = vmatpush1.bf16.msra.mxu0 0
    %356 = vmatprep.subr.bf16.mxu0 0
    %357 = vmatpush1.bf16.msra.mxu0 0
    %358 = vmatprep.subr.bf16.mxu0 0
    %359 = vmatpush1.bf16.msra.mxu0 0
    %360 = vmatprep.subr.bf16.mxu0 0
    %361 = vmatpush1.bf16.msra.mxu0 0
    %362 = vmatprep.subr.bf16.mxu0 0
    %363 = vmatpush1.bf16.msra.mxu0 0
    %364 = vmatprep.subr.bf16.mxu0 0
    %365 = vmatpush1.bf16.msra.mxu0 0
    %366 = vmatprep.subr.bf16.mxu0 0
    %367 = vmatpush1.bf16.msra.mxu0 0
    %368 = vmatprep.subr.bf16.mxu0 0
    %369 = vmatpush1.bf16.msra.mxu0 0
    %370 = vmatprep.subr.bf16.mxu0 0
    %371 = vmatpush1.bf16.msra.mxu0 0
    %372 = vmatprep.subr.bf16.mxu0 0
    %373 = vmatpush1.bf16.msra.mxu0 0
    %374 = vmatprep.subr.bf16.mxu0 0
    %375 = vmatpush1.bf16.msra.mxu0 0
    %376 = vmatprep.subr.bf16.mxu0 0
    %377 = vmatpush1.bf16.msra.mxu0 0
    %378 = vmatprep.mubr.bf16.mxu0 0
    %379 = vmatmul.mubr.bf16.gmra.mrb[0].mxu0 %v340
    %v380 = vpop.f32.mrb[0].mxu0
    %v381 = vadd.f32 0.0, %v380
    %v382 = vpop.f32.mrb[0].mxu0
    %v383 = vpop.f32.mrb[0].mxu0
    %v384 = vpop.f32.mrb[0].mxu0
    %385 = vdwg.mxu0
    %v386 = vpack.c.bf16 %v381, %v381
    %v387 = vld [vmem:[%s5] sm:$0xf]
    %s388 = scalar_lea.vmem %s4, 16
    %v389 = vld [vmem:[%s388] sm:$0xf]
    %v390 = vld [vmem:[%s388 + $0x4] sm:$0xf]
    %v391 = vld [vmem:[%s388 + $0x8] sm:$0xf]
    %v392 = vld [vmem:[%s388 + $0xc] sm:$0xf]
    %s393 = scalar_lea.vmem %s2, 1
    %v394 = vld [vmem:[%s393] sm:$0x1]
    %v396 = vlaneseq
    %v397 = vshrl.u32 %v396, 7
    %v398 = vsub.s32 0, %v397
    %v399 = vrot.slane %v394, %v398
    %v405 = vunpack.c.l.b16 %v389
    %v406 = vunpack.c.l.b16 %v390
    %v407 = vunpack.c.l.b16 %v391
    %v408 = vunpack.c.l.b16 %v392
    %v409 = vpack.c.b16 %v406, %v405
    %v410 = vpack.c.b16 %v408, %v407
    %413 = vmatprep.subr.bf16.mxu0 0
    %414 = vmatpush1.bf16.msra.mxu0 %v409
    %415 = vmatprep.subr.bf16.mxu0 0
    %416 = vmatpush1.bf16.msra.mxu0 %v410
    %417 = vmatprep.subr.bf16.mxu0 0
    %418 = vmatpush1.bf16.msra.mxu0 0
    %419 = vmatprep.subr.bf16.mxu0 0
    %420 = vmatpush1.bf16.msra.mxu0 0
    %421 = vmatprep.subr.bf16.mxu0 0
    %422 = vmatpush1.bf16.msra.mxu0 0
    %423 = vmatprep.subr.bf16.mxu0 0
    %424 = vmatpush1.bf16.msra.mxu0 0
    %425 = vmatprep.subr.bf16.mxu0 0
    %426 = vmatpush1.bf16.msra.mxu0 0
    %427 = vmatprep.subr.bf16.mxu0 0
    %428 = vmatpush1.bf16.msra.mxu0 0
    %429 = vmatprep.subr.bf16.mxu0 0
    %430 = vmatpush1.bf16.msra.mxu0 0
    %431 = vmatprep.subr.bf16.mxu0 0
    %432 = vmatpush1.bf16.msra.mxu0 0
    %433 = vmatprep.subr.bf16.mxu0 0
    %434 = vmatpush1.bf16.msra.mxu0 0
    %435 = vmatprep.subr.bf16.mxu0 0
    %436 = vmatpush1.bf16.msra.mxu0 0
    %437 = vmatprep.subr.bf16.mxu0 0
    %438 = vmatpush1.bf16.msra.mxu0 0
    %439 = vmatprep.subr.bf16.mxu0 0
    %440 = vmatpush1.bf16.msra.mxu0 0
    %441 = vmatprep.subr.bf16.mxu0 0
    %442 = vmatpush1.bf16.msra.mxu0 0
    %443 = vmatprep.subr.bf16.mxu0 0
    %444 = vmatpush1.bf16.msra.mxu0 0
    %445 = vmatprep.mubr.bf16.mxu0 0
    %446 = vmatmul.mubr.bf16.gmra.mrb[0].mxu0 %v105
    %v447 = vpop.f32.mrb[0].mxu0
    %v448 = vadd.f32 %v399, %v447
    %v449 = vpop.f32.mrb[0].mxu0
    %v450 = vpop.f32.mrb[0].mxu0
    %v451 = vpop.f32.mrb[0].mxu0
    %452 = vdwg.mxu0
    %s453 = scalar_lea.vmem %s4, 80
    %v454 = vld [vmem:[%s453] sm:$0xf]
    %v455 = vld [vmem:[%s453 + $0x4] sm:$0xf]
    %v456 = vld [vmem:[%s453 + $0x8] sm:$0xf]
    %v457 = vld [vmem:[%s453 + $0xc] sm:$0xf]
    %s458 = scalar_lea.vmem %s2, 5
    %v459 = vld [vmem:[%s458] sm:$0x1]
    %v461 = vlaneseq
    %v462 = vshrl.u32 %v461, 7
    %v463 = vsub.s32 0, %v462
    %v464 = vrot.slane %v459, %v463
    %v470 = vunpack.c.l.b16 %v454
    %v471 = vunpack.c.l.b16 %v455
    %v472 = vunpack.c.l.b16 %v456
    %v473 = vunpack.c.l.b16 %v457
    %v474 = vpack.c.b16 %v471, %v470
    %v475 = vpack.c.b16 %v473, %v472
    %478 = vmatprep.subr.bf16.mxu0 0
    %479 = vmatpush1.bf16.msra.mxu0 %v474
    %480 = vmatprep.subr.bf16.mxu0 0
    %481 = vmatpush1.bf16.msra.mxu0 %v475
    %482 = vmatprep.subr.bf16.mxu0 0
    %483 = vmatpush1.bf16.msra.mxu0 0
    %484 = vmatprep.subr.bf16.mxu0 0
    %485 = vmatpush1.bf16.msra.mxu0 0
    %486 = vmatprep.subr.bf16.mxu0 0
    %487 = vmatpush1.bf16.msra.mxu0 0
    %488 = vmatprep.subr.bf16.mxu0 0
    %489 = vmatpush1.bf16.msra.mxu0 0
    %490 = vmatprep.subr.bf16.mxu0 0
    %491 = vmatpush1.bf16.msra.mxu0 0
    %492 = vmatprep.subr.bf16.mxu0 0
    %493 = vmatpush1.bf16.msra.mxu0 0
    %494 = vmatprep.subr.bf16.mxu0 0
    %495 = vmatpush1.bf16.msra.mxu0 0
    %496 = vmatprep.subr.bf16.mxu0 0
    %497 = vmatpush1.bf16.msra.mxu0 0
    %498 = vmatprep.subr.bf16.mxu0 0
    %499 = vmatpush1.bf16.msra.mxu0 0
    %500 = vmatprep.subr.bf16.mxu0 0
    %501 = vmatpush1.bf16.msra.mxu0 0
    %502 = vmatprep.subr.bf16.mxu0 0
    %503 = vmatpush1.bf16.msra.mxu0 0
    %504 = vmatprep.subr.bf16.mxu0 0
    %505 = vmatpush1.bf16.msra.mxu0 0
    %506 = vmatprep.subr.bf16.mxu0 0
    %507 = vmatpush1.bf16.msra.mxu0 0
    %508 = vmatprep.subr.bf16.mxu0 0
    %509 = vmatpush1.bf16.msra.mxu0 0
    %510 = vmatprep.mubr.bf16.mxu0 0
    %511 = vmatmul.mubr.bf16.gmra.mrb[0].mxu0 %v105
    %v512 = vpop.f32.mrb[0].mxu0
    %v513 = vadd.f32 %v464, %v512
    %v514 = vpop.f32.mrb[0].mxu0
    %v515 = vpop.f32.mrb[0].mxu0
    %v516 = vpop.f32.mrb[0].mxu0
    %517 = vdwg.mxu0
    %s518 = scalar_lea.vmem %s4, 144
    %v519 = vld [vmem:[%s518] sm:$0xf]
    %v520 = vld [vmem:[%s518 + $0x4] sm:$0xf]
    %v521 = vld [vmem:[%s518 + $0x8] sm:$0xf]
    %v522 = vld [vmem:[%s518 + $0xc] sm:$0xf]
    %s523 = scalar_lea.vmem %s2, 9
    %v524 = vld [vmem:[%s523] sm:$0x1]
    %v526 = vlaneseq
    %v527 = vshrl.u32 %v526, 7
    %v528 = vsub.s32 0, %v527
    %v529 = vrot.slane %v524, %v528
    %v535 = vunpack.c.l.b16 %v519
    %v536 = vunpack.c.l.b16 %v520
    %v537 = vunpack.c.l.b16 %v521
    %v538 = vunpack.c.l.b16 %v522
    %v539 = vpack.c.b16 %v536, %v535
    %v540 = vpack.c.b16 %v538, %v537
    %543 = vmatprep.subr.bf16.mxu0 0
    %544 = vmatpush1.bf16.msra.mxu0 %v539
    %545 = vmatprep.subr.bf16.mxu0 0
    %546 = vmatpush1.bf16.msra.mxu0 %v540
    %547 = vmatprep.subr.bf16.mxu0 0
    %548 = vmatpush1.bf16.msra.mxu0 0
    %549 = vmatprep.subr.bf16.mxu0 0
    %550 = vmatpush1.bf16.msra.mxu0 0
    %551 = vmatprep.subr.bf16.mxu0 0
    %552 = vmatpush1.bf16.msra.mxu0 0
    %553 = vmatprep.subr.bf16.mxu0 0
    %554 = vmatpush1.bf16.msra.mxu0 0
    %555 = vmatprep.subr.bf16.mxu0 0
    %556 = vmatpush1.bf16.msra.mxu0 0
    %557 = vmatprep.subr.bf16.mxu0 0
    %558 = vmatpush1.bf16.msra.mxu0 0
    %559 = vmatprep.subr.bf16.mxu0 0
    %560 = vmatpush1.bf16.msra.mxu0 0
    %561 = vmatprep.subr.bf16.mxu0 0
    %562 = vmatpush1.bf16.msra.mxu0 0
    %563 = vmatprep.subr.bf16.mxu0 0
    %564 = vmatpush1.bf16.msra.mxu0 0
    %565 = vmatprep.subr.bf16.mxu0 0
    %566 = vmatpush1.bf16.msra.mxu0 0
    %567 = vmatprep.subr.bf16.mxu0 0
    %568 = vmatpush1.bf16.msra.mxu0 0
    %569 = vmatprep.subr.bf16.mxu0 0
    %570 = vmatpush1.bf16.msra.mxu0 0
    %571 = vmatprep.subr.bf16.mxu0 0
    %572 = vmatpush1.bf16.msra.mxu0 0
    %573 = vmatprep.subr.bf16.mxu0 0
    %574 = vmatpush1.bf16.msra.mxu0 0
    %575 = vmatprep.mubr.bf16.mxu0 0
    %576 = vmatmul.mubr.bf16.gmra.mrb[0].mxu0 %v105
    %v577 = vpop.f32.mrb[0].mxu0
    %v578 = vadd.f32 %v529, %v577
    %v579 = vpop.f32.mrb[0].mxu0
    %v580 = vpop.f32.mrb[0].mxu0
    %v581 = vpop.f32.mrb[0].mxu0
    %582 = vdwg.mxu0
    %v583 = vpack.c.bf16 %v448, %v448
    %v584 = vpack.c.bf16 %v513, %v513
    %v586 = vsel %vm279, %v583, 0
    %v589 = vsel %vm279, %v584, 0
    %591 = vmatprep.subr.bf16.mxu0 0
    %592 = vmatpush1.bf16.xpose.msra.mxu0 %v589
    %593 = vmatprep.subr.bf16.mxu0 0
    %594 = vmatpush1.bf16.xpose.msra.mxu0 0
    %595 = vmatprep.subr.bf16.mxu0 0
    %596 = vmatpush1.bf16.xpose.msra.mxu0 0
    %597 = vmatprep.subr.bf16.mxu0 0
    %598 = vmatpush1.bf16.xpose.msra.mxu0 0
    %599 = vmatprep.subr.bf16.mxu0 0
    %600 = vmatpush1.bf16.xpose.msra.mxu0 0
    %601 = vmatprep.subr.bf16.mxu0 0
    %602 = vmatpush1.bf16.xpose.msra.mxu0 0
    %603 = vmatprep.subr.bf16.mxu0 0
    %604 = vmatpush1.bf16.xpose.msra.mxu0 0
    %605 = vmatprep.subr.bf16.mxu0 0
    %606 = vmatpush1.bf16.xpose.msra.mxu0 0
    %607 = vmatprep.subr.bf16.mxu0 0
    %608 = vmatpush1.bf16.xpose.msra.mxu0 0
    %609 = vmatprep.subr.bf16.mxu0 0
    %610 = vmatpush1.bf16.xpose.msra.mxu0 0
    %611 = vmatprep.subr.bf16.mxu0 0
    %612 = vmatpush1.bf16.xpose.msra.mxu0 0
    %613 = vmatprep.subr.bf16.mxu0 0
    %614 = vmatpush1.bf16.xpose.msra.mxu0 0
    %615 = vmatprep.subr.bf16.mxu0 0
    %616 = vmatpush1.bf16.xpose.msra.mxu0 0
    %617 = vmatprep.subr.bf16.mxu0 0
    %618 = vmatpush1.bf16.xpose.msra.mxu0 0
    %619 = vmatprep.subr.bf16.mxu0 0
    %620 = vmatpush1.bf16.xpose.msra.mxu0 0
    %621 = vmatprep.subr.bf16.mxu0 0
    %622 = vmatpush1.bf16.xpose.msra.mxu0 0
    %623 = vmatprep.mubr.bf16.mxu0 0
    %624 = vmatmul.mubr.bf16.gmra.mrb[0].mxu0 %v586
    %v625 = vpop.f32.mrb[0].mxu0
    %v626 = vadd.f32 0.0, %v625
    %v627 = vpop.f32.mrb[0].mxu0
    %v628 = vpop.f32.mrb[0].mxu0
    %v629 = vpop.f32.mrb[0].mxu0
    %630 = vdwg.mxu0
    %v631 = vsel %vm279, %v626, -inf
    %632 = vmax.xlane.f32.xlu0 %v631
    %v633 = vpop.xlane.xlu0 %632
    %v634 = vsub.f32 %v626, %v633
    %v635 = vmul.f32 %v634, 1.442695
    %v636 = vpow.pop %v635
    %v637 = vsel %vm279, %v636, 0.0
    %638 = vadd.xlane.f32.xlu0 %v637
    %v639 = vpop.xlane.xlu0 %638
    %v640 = vrcp.pop %v639
    %v641 = vmul.f32 %v636, %v640
    %v642 = vpack.c.bf16 %v641, %v641
    %v643 = vpack.c.bf16 %v578, %v578
    %v645 = vsel %vm279, %v642, 0
    %v648 = vsel %vm342, %v643, 0
    %650 = vmatprep.subr.bf16.mxu0 0
    %651 = vmatpush1.bf16.msra.mxu0 %v648
    %652 = vmatprep.subr.bf16.mxu0 0
    %653 = vmatpush1.bf16.msra.mxu0 0
    %654 = vmatprep.subr.bf16.mxu0 0
    %655 = vmatpush1.bf16.msra.mxu0 0
    %656 = vmatprep.subr.bf16.mxu0 0
    %657 = vmatpush1.bf16.msra.mxu0 0
    %658 = vmatprep.subr.bf16.mxu0 0
    %659 = vmatpush1.bf16.msra.mxu0 0
    %660 = vmatprep.subr.bf16.mxu0 0
    %661 = vmatpush1.bf16.msra.mxu0 0
    %662 = vmatprep.subr.bf16.mxu0 0
    %663 = vmatpush1.bf16.msra.mxu0 0
    %664 = vmatprep.subr.bf16.mxu0 0
    %665 = vmatpush1.bf16.msra.mxu0 0
    %666 = vmatprep.subr.bf16.mxu0 0
    %667 = vmatpush1.bf16.msra.mxu0 0
    %668 = vmatprep.subr.bf16.mxu0 0
    %669 = vmatpush1.bf16.msra.mxu0 0
    %670 = vmatprep.subr.bf16.mxu0 0
    %671 = vmatpush1.bf16.msra.mxu0 0
    %672 = vmatprep.subr.bf16.mxu0 0
    %673 = vmatpush1.bf16.msra.mxu0 0
    %674 = vmatprep.subr.bf16.mxu0 0
    %675 = vmatpush1.bf16.msra.mxu0 0
    %676 = vmatprep.subr.bf16.mxu0 0
    %677 = vmatpush1.bf16.msra.mxu0 0
    %678 = vmatprep.subr.bf16.mxu0 0
    %679 = vmatpush1.bf16.msra.mxu0 0
    %680 = vmatprep.subr.bf16.mxu0 0
    %681 = vmatpush1.bf16.msra.mxu0 0
    %682 = vmatprep.mubr.bf16.mxu0 0
    %683 = vmatmul.mubr.bf16.gmra.mrb[0].mxu0 %v645
    %v684 = vpop.f32.mrb[0].mxu0
    %v685 = vadd.f32 0.0, %v684
    %v686 = vpop.f32.mrb[0].mxu0
    %v687 = vpop.f32.mrb[0].mxu0
    %v688 = vpop.f32.mrb[0].mxu0
    %689 = vdwg.mxu0
    %v690 = vpack.c.bf16 %v685, %v685
    %s691 = scalar_lea.vmem %s5, 4
    %v692 = vld [vmem:[%s691] sm:$0xf]
    %v694 = vsel %vm279, %v690, 0
    %v697 = vsel %vm342, %v692, 0
    %699 = vmatprep.subr.bf16.mxu0 0
    %700 = vmatpush1.bf16.msra.mxu0 %v697
    %701 = vmatprep.subr.bf16.mxu0 0
    %702 = vmatpush1.bf16.msra.mxu0 0
    %703 = vmatprep.subr.bf16.mxu0 0
    %704 = vmatpush1.bf16.msra.mxu0 0
    %705 = vmatprep.subr.bf16.mxu0 0
    %706 = vmatpush1.bf16.msra.mxu0 0
    %707 = vmatprep.subr.bf16.mxu0 0
    %708 = vmatpush1.bf16.msra.mxu0 0
    %709 = vmatprep.subr.bf16.mxu0 0
    %710 = vmatpush1.bf16.msra.mxu0 0
    %711 = vmatprep.subr.bf16.mxu0 0
    %712 = vmatpush1.bf16.msra.mxu0 0
    %713 = vmatprep.subr.bf16.mxu0 0
    %714 = vmatpush1.bf16.msra.mxu0 0
    %715 = vmatprep.subr.bf16.mxu0 0
    %716 = vmatpush1.bf16.msra.mxu0 0
    %717 = vmatprep.subr.bf16.mxu0 0
    %718 = vmatpush1.bf16.msra.mxu0 0
    %719 = vmatprep.subr.bf16.mxu0 0
    %720 = vmatpush1.bf16.msra.mxu0 0
    %721 = vmatprep.subr.bf16.mxu0 0
    %722 = vmatpush1.bf16.msra.mxu0 0
    %723 = vmatprep.subr.bf16.mxu0 0
    %724 = vmatpush1.bf16.msra.mxu0 0
    %725 = vmatprep.subr.bf16.mxu0 0
    %726 = vmatpush1.bf16.msra.mxu0 0
    %727 = vmatprep.subr.bf16.mxu0 0
    %728 = vmatpush1.bf16.msra.mxu0 0
    %729 = vmatprep.subr.bf16.mxu0 0
    %730 = vmatpush1.bf16.msra.mxu0 0
    %731 = vmatprep.mubr.bf16.mxu0 0
    %732 = vmatmul.mubr.bf16.gmra.mrb[0].mxu0 %v694
    %v733 = vpop.f32.mrb[0].mxu0
    %v734 = vadd.f32 0.0, %v733
    %v735 = vpop.f32.mrb[0].mxu0
    %v736 = vpop.f32.mrb[0].mxu0
    %v737 = vpop.f32.mrb[0].mxu0
    %738 = vdwg.mxu0
    %v740 = vsel %vm279, %v386, 0
    %v743 = vsel %vm342, %v387, 0
    %745 = vmatprep.subr.bf16.mxu0 0
    %746 = vmatpush1.bf16.msra.mxu0 %v743
    %747 = vmatprep.subr.bf16.mxu0 0
    %748 = vmatpush1.bf16.msra.mxu0 0
    %749 = vmatprep.subr.bf16.mxu0 0
    %750 = vmatpush1.bf16.msra.mxu0 0
    %751 = vmatprep.subr.bf16.mxu0 0
    %752 = vmatpush1.bf16.msra.mxu0 0
    %753 = vmatprep.subr.bf16.mxu0 0
    %754 = vmatpush1.bf16.msra.mxu0 0
    %755 = vmatprep.subr.bf16.mxu0 0
    %756 = vmatpush1.bf16.msra.mxu0 0
    %757 = vmatprep.subr.bf16.mxu0 0
    %758 = vmatpush1.bf16.msra.mxu0 0
    %759 = vmatprep.subr.bf16.mxu0 0
    %760 = vmatpush1.bf16.msra.mxu0 0
    %761 = vmatprep.subr.bf16.mxu0 0
    %762 = vmatpush1.bf16.msra.mxu0 0
    %763 = vmatprep.subr.bf16.mxu0 0
    %764 = vmatpush1.bf16.msra.mxu0 0
    %765 = vmatprep.subr.bf16.mxu0 0
    %766 = vmatpush1.bf16.msra.mxu0 0
    %767 = vmatprep.subr.bf16.mxu0 0
    %768 = vmatpush1.bf16.msra.mxu0 0
    %769 = vmatprep.subr.bf16.mxu0 0
    %770 = vmatpush1.bf16.msra.mxu0 0
    %771 = vmatprep.subr.bf16.mxu0 0
    %772 = vmatpush1.bf16.msra.mxu0 0
    %773 = vmatprep.subr.bf16.mxu0 0
    %774 = vmatpush1.bf16.msra.mxu0 0
    %775 = vmatprep.subr.bf16.mxu0 0
    %776 = vmatpush1.bf16.msra.mxu0 0
    %777 = vmatprep.mubr.bf16.mxu0 0
    %778 = vmatmul.mubr.bf16.gmra.mrb[0].mxu0 %v740
    %v779 = vpop.f32.mrb[0].mxu0
    %v780 = vadd.f32 %v734, %v779
    %v781 = vpop.f32.mrb[0].mxu0
    %v782 = vpop.f32.mrb[0].mxu0
    %v783 = vpop.f32.mrb[0].mxu0
    %784 = vdwg.mxu0
    %s785 = scalar_lea.vmem %s4, 32
    %v786 = vld [vmem:[%s785] sm:$0xf]
    %v787 = vld [vmem:[%s785 + $0x4] sm:$0xf]
    %v788 = vld [vmem:[%s785 + $0x8] sm:$0xf]
    %v789 = vld [vmem:[%s785 + $0xc] sm:$0xf]
    %s790 = scalar_lea.vmem %s2, 2
    %v791 = vld [vmem:[%s790] sm:$0x1]
    %v793 = vlaneseq
    %v794 = vshrl.u32 %v793, 7
    %v795 = vsub.s32 0, %v794
    %v796 = vrot.slane %v791, %v795
    %v802 = vunpack.c.l.b16 %v786
    %v803 = vunpack.c.l.b16 %v787
    %v804 = vunpack.c.l.b16 %v788
    %v805 = vunpack.c.l.b16 %v789
    %v806 = vpack.c.b16 %v803, %v802
    %v807 = vpack.c.b16 %v805, %v804
    %810 = vmatprep.subr.bf16.mxu0 0
    %811 = vmatpush1.bf16.msra.mxu0 %v806
    %812 = vmatprep.subr.bf16.mxu0 0
    %813 = vmatpush1.bf16.msra.mxu0 %v807
    %814 = vmatprep.subr.bf16.mxu0 0
    %815 = vmatpush1.bf16.msra.mxu0 0
    %816 = vmatprep.subr.bf16.mxu0 0
    %817 = vmatpush1.bf16.msra.mxu0 0
    %818 = vmatprep.subr.bf16.mxu0 0
    %819 = vmatpush1.bf16.msra.mxu0 0
    %820 = vmatprep.subr.bf16.mxu0 0
    %821 = vmatpush1.bf16.msra.mxu0 0
    %822 = vmatprep.subr.bf16.mxu0 0
    %823 = vmatpush1.bf16.msra.mxu0 0
    %824 = vmatprep.subr.bf16.mxu0 0
    %825 = vmatpush1.bf16.msra.mxu0 0
    %826 = vmatprep.subr.bf16.mxu0 0
    %827 = vmatpush1.bf16.msra.mxu0 0
    %828 = vmatprep.subr.bf16.mxu0 0
    %829 = vmatpush1.bf16.msra.mxu0 0
    %830 = vmatprep.subr.bf16.mxu0 0
    %831 = vmatpush1.bf16.msra.mxu0 0
    %832 = vmatprep.subr.bf16.mxu0 0
    %833 = vmatpush1.bf16.msra.mxu0 0
    %834 = vmatprep.subr.bf16.mxu0 0
    %835 = vmatpush1.bf16.msra.mxu0 0
    %836 = vmatprep.subr.bf16.mxu0 0
    %837 = vmatpush1.bf16.msra.mxu0 0
    %838 = vmatprep.subr.bf16.mxu0 0
    %839 = vmatpush1.bf16.msra.mxu0 0
    %840 = vmatprep.subr.bf16.mxu0 0
    %841 = vmatpush1.bf16.msra.mxu0 0
    %842 = vmatprep.mubr.bf16.mxu0 0
    %843 = vmatmul.mubr.bf16.gmra.mrb[0].mxu0 %v105
    %v844 = vpop.f32.mrb[0].mxu0
    %v845 = vadd.f32 %v796, %v844
    %v846 = vpop.f32.mrb[0].mxu0
    %v847 = vpop.f32.mrb[0].mxu0
    %v848 = vpop.f32.mrb[0].mxu0
    %849 = vdwg.mxu0
    %s850 = scalar_lea.vmem %s4, 96
    %v851 = vld [vmem:[%s850] sm:$0xf]
    %v852 = vld [vmem:[%s850 + $0x4] sm:$0xf]
    %v853 = vld [vmem:[%s850 + $0x8] sm:$0xf]
    %v854 = vld [vmem:[%s850 + $0xc] sm:$0xf]
    %s855 = scalar_lea.vmem %s2, 6
    %v856 = vld [vmem:[%s855] sm:$0x1]
    %v858 = vlaneseq
    %v859 = vshrl.u32 %v858, 7
    %v860 = vsub.s32 0, %v859
    %v861 = vrot.slane %v856, %v860
    %v867 = vunpack.c.l.b16 %v851
    %v868 = vunpack.c.l.b16 %v852
    %v869 = vunpack.c.l.b16 %v853
    %v870 = vunpack.c.l.b16 %v854
    %v871 = vpack.c.b16 %v868, %v867
    %v872 = vpack.c.b16 %v870, %v869
    %875 = vmatprep.subr.bf16.mxu0 0
    %876 = vmatpush1.bf16.msra.mxu0 %v871
    %877 = vmatprep.subr.bf16.mxu0 0
    %878 = vmatpush1.bf16.msra.mxu0 %v872
    %879 = vmatprep.subr.bf16.mxu0 0
    %880 = vmatpush1.bf16.msra.mxu0 0
    %881 = vmatprep.subr.bf16.mxu0 0
    %882 = vmatpush1.bf16.msra.mxu0 0
    %883 = vmatprep.subr.bf16.mxu0 0
    %884 = vmatpush1.bf16.msra.mxu0 0
    %885 = vmatprep.subr.bf16.mxu0 0
    %886 = vmatpush1.bf16.msra.mxu0 0
    %887 = vmatprep.subr.bf16.mxu0 0
    %888 = vmatpush1.bf16.msra.mxu0 0
    %889 = vmatprep.subr.bf16.mxu0 0
    %890 = vmatpush1.bf16.msra.mxu0 0
    %891 = vmatprep.subr.bf16.mxu0 0
    %892 = vmatpush1.bf16.msra.mxu0 0
    %893 = vmatprep.subr.bf16.mxu0 0
    %894 = vmatpush1.bf16.msra.mxu0 0
    %895 = vmatprep.subr.bf16.mxu0 0
    %896 = vmatpush1.bf16.msra.mxu0 0
    %897 = vmatprep.subr.bf16.mxu0 0
    %898 = vmatpush1.bf16.msra.mxu0 0
    %899 = vmatprep.subr.bf16.mxu0 0
    %900 = vmatpush1.bf16.msra.mxu0 0
    %901 = vmatprep.subr.bf16.mxu0 0
    %902 = vmatpush1.bf16.msra.mxu0 0
    %903 = vmatprep.subr.bf16.mxu0 0
    %904 = vmatpush1.bf16.msra.mxu0 0
    %905 = vmatprep.subr.bf16.mxu0 0
    %906 = vmatpush1.bf16.msra.mxu0 0
    %907 = vmatprep.mubr.bf16.mxu0 0
    %908 = vmatmul.mubr.bf16.gmra.mrb[0].mxu0 %v105
    %v909 = vpop.f32.mrb[0].mxu0
    %v910 = vadd.f32 %v861, %v909
    %v911 = vpop.f32.mrb[0].mxu0
    %v912 = vpop.f32.mrb[0].mxu0
    %v913 = vpop.f32.mrb[0].mxu0
    %914 = vdwg.mxu0
    %s915 = scalar_lea.vmem %s4, 160
    %v916 = vld [vmem:[%s915] sm:$0xf]
    %v917 = vld [vmem:[%s915 + $0x4] sm:$0xf]
    %v918 = vld [vmem:[%s915 + $0x8] sm:$0xf]
    %v919 = vld [vmem:[%s915 + $0xc] sm:$0xf]
    %s920 = scalar_lea.vmem %s2, 10
    %v921 = vld [vmem:[%s920] sm:$0x1]
    %v923 = vlaneseq
    %v924 = vshrl.u32 %v923, 7
    %v925 = vsub.s32 0, %v924
    %v926 = vrot.slane %v921, %v925
    %v932 = vunpack.c.l.b16 %v916
    %v933 = vunpack.c.l.b16 %v917
    %v934 = vunpack.c.l.b16 %v918
    %v935 = vunpack.c.l.b16 %v919
    %v936 = vpack.c.b16 %v933, %v932
    %v937 = vpack.c.b16 %v935, %v934
    %940 = vmatprep.subr.bf16.mxu0 0
    %941 = vmatpush1.bf16.msra.mxu0 %v936
    %942 = vmatprep.subr.bf16.mxu0 0
    %943 = vmatpush1.bf16.msra.mxu0 %v937
    %944 = vmatprep.subr.bf16.mxu0 0
    %945 = vmatpush1.bf16.msra.mxu0 0
    %946 = vmatprep.subr.bf16.mxu0 0
    %947 = vmatpush1.bf16.msra.mxu0 0
    %948 = vmatprep.subr.bf16.mxu0 0
    %949 = vmatpush1.bf16.msra.mxu0 0
    %950 = vmatprep.subr.bf16.mxu0 0
    %951 = vmatpush1.bf16.msra.mxu0 0
    %952 = vmatprep.subr.bf16.mxu0 0
    %953 = vmatpush1.bf16.msra.mxu0 0
    %954 = vmatprep.subr.bf16.mxu0 0
    %955 = vmatpush1.bf16.msra.mxu0 0
    %956 = vmatprep.subr.bf16.mxu0 0
    %957 = vmatpush1.bf16.msra.mxu0 0
    %958 = vmatprep.subr.bf16.mxu0 0
    %959 = vmatpush1.bf16.msra.mxu0 0
    %960 = vmatprep.subr.bf16.mxu0 0
    %961 = vmatpush1.bf16.msra.mxu0 0
    %962 = vmatprep.subr.bf16.mxu0 0
    %963 = vmatpush1.bf16.msra.mxu0 0
    %964 = vmatprep.subr.bf16.mxu0 0
    %965 = vmatpush1.bf16.msra.mxu0 0
    %966 = vmatprep.subr.bf16.mxu0 0
    %967 = vmatpush1.bf16.msra.mxu0 0
    %968 = vmatprep.subr.bf16.mxu0 0
    %969 = vmatpush1.bf16.msra.mxu0 0
    %970 = vmatprep.subr.bf16.mxu0 0
    %971 = vmatpush1.bf16.msra.mxu0 0
    %972 = vmatprep.mubr.bf16.mxu0 0
    %973 = vmatmul.mubr.bf16.gmra.mrb[0].mxu0 %v105
    %v974 = vpop.f32.mrb[0].mxu0
    %v975 = vadd.f32 %v926, %v974
    %v976 = vpop.f32.mrb[0].mxu0
    %v977 = vpop.f32.mrb[0].mxu0
    %v978 = vpop.f32.mrb[0].mxu0
    %979 = vdwg.mxu0
    %v980 = vpack.c.bf16 %v845, %v845
    %v981 = vpack.c.bf16 %v910, %v910
    %v983 = vsel %vm279, %v980, 0
    %v986 = vsel %vm279, %v981, 0
    %988 = vmatprep.subr.bf16.mxu0 0
    %989 = vmatpush1.bf16.xpose.msra.mxu0 %v986
    %990 = vmatprep.subr.bf16.mxu0 0
    %991 = vmatpush1.bf16.xpose.msra.mxu0 0
    %992 = vmatprep.subr.bf16.mxu0 0
    %993 = vmatpush1.bf16.xpose.msra.mxu0 0
    %994 = vmatprep.subr.bf16.mxu0 0
    %995 = vmatpush1.bf16.xpose.msra.mxu0 0
    %996 = vmatprep.subr.bf16.mxu0 0
    %997 = vmatpush1.bf16.xpose.msra.mxu0 0
    %998 = vmatprep.subr.bf16.mxu0 0
    %999 = vmatpush1.bf16.xpose.msra.mxu0 0
    %1000 = vmatprep.subr.bf16.mxu0 0
    %1001 = vmatpush1.bf16.xpose.msra.mxu0 0
    %1002 = vmatprep.subr.bf16.mxu0 0
    %1003 = vmatpush1.bf16.xpose.msra.mxu0 0
    %1004 = vmatprep.subr.bf16.mxu0 0
    %1005 = vmatpush1.bf16.xpose.msra.mxu0 0
    %1006 = vmatprep.subr.bf16.mxu0 0
    %1007 = vmatpush1.bf16.xpose.msra.mxu0 0
    %1008 = vmatprep.subr.bf16.mxu0 0
    %1009 = vmatpush1.bf16.xpose.msra.mxu0 0
    %1010 = vmatprep.subr.bf16.mxu0 0
    %1011 = vmatpush1.bf16.xpose.msra.mxu0 0
    %1012 = vmatprep.subr.bf16.mxu0 0
    %1013 = vmatpush1.bf16.xpose.msra.mxu0 0
    %1014 = vmatprep.subr.bf16.mxu0 0
    %1015 = vmatpush1.bf16.xpose.msra.mxu0 0
    %1016 = vmatprep.subr.bf16.mxu0 0
    %1017 = vmatpush1.bf16.xpose.msra.mxu0 0
    %1018 = vmatprep.subr.bf16.mxu0 0
    %1019 = vmatpush1.bf16.xpose.msra.mxu0 0
    %1020 = vmatprep.mubr.bf16.mxu0 0
    %1021 = vmatmul.mubr.bf16.gmra.mrb[0].mxu0 %v983
    %v1022 = vpop.f32.mrb[0].mxu0
    %v1023 = vadd.f32 0.0, %v1022
    %v1024 = vpop.f32.mrb[0].mxu0
    %v1025 = vpop.f32.mrb[0].mxu0
    %v1026 = vpop.f32.mrb[0].mxu0
    %1027 = vdwg.mxu0
    %v1028 = vsel %vm279, %v1023, -inf
    %1029 = vmax.xlane.f32.xlu0 %v1028
    %v1030 = vpop.xlane.xlu0 %1029
    %v1031 = vsub.f32 %v1023, %v1030
    %v1032 = vmul.f32 %v1031, 1.442695
    %v1033 = vpow.pop %v1032
    %v1034 = vsel %vm279, %v1033, 0.0
    %1035 = vadd.xlane.f32.xlu0 %v1034
    %v1036 = vpop.xlane.xlu0 %1035
    %v1037 = vrcp.pop %v1036
    %v1038 = vmul.f32 %v1033, %v1037
    %v1039 = vpack.c.bf16 %v1038, %v1038
    %v1040 = vpack.c.bf16 %v975, %v975
    %v1042 = vsel %vm279, %v1039, 0
    %v1045 = vsel %vm342, %v1040, 0
    %1047 = vmatprep.subr.bf16.mxu0 0
    %1048 = vmatpush1.bf16.msra.mxu0 %v1045
    %1049 = vmatprep.subr.bf16.mxu0 0
    %1050 = vmatpush1.bf16.msra.mxu0 0
    %1051 = vmatprep.subr.bf16.mxu0 0
    %1052 = vmatpush1.bf16.msra.mxu0 0
    %1053 = vmatprep.subr.bf16.mxu0 0
    %1054 = vmatpush1.bf16.msra.mxu0 0
    %1055 = vmatprep.subr.bf16.mxu0 0
    %1056 = vmatpush1.bf16.msra.mxu0 0
    %1057 = vmatprep.subr.bf16.mxu0 0
    %1058 = vmatpush1.bf16.msra.mxu0 0
    %1059 = vmatprep.subr.bf16.mxu0 0
    %1060 = vmatpush1.bf16.msra.mxu0 0
    %1061 = vmatprep.subr.bf16.mxu0 0
    %1062 = vmatpush1.bf16.msra.mxu0 0
    %1063 = vmatprep.subr.bf16.mxu0 0
    %1064 = vmatpush1.bf16.msra.mxu0 0
    %1065 = vmatprep.subr.bf16.mxu0 0
    %1066 = vmatpush1.bf16.msra.mxu0 0
    %1067 = vmatprep.subr.bf16.mxu0 0
    %1068 = vmatpush1.bf16.msra.mxu0 0
    %1069 = vmatprep.subr.bf16.mxu0 0
    %1070 = vmatpush1.bf16.msra.mxu0 0
    %1071 = vmatprep.subr.bf16.mxu0 0
    %1072 = vmatpush1.bf16.msra.mxu0 0
    %1073 = vmatprep.subr.bf16.mxu0 0
    %1074 = vmatpush1.bf16.msra.mxu0 0
    %1075 = vmatprep.subr.bf16.mxu0 0
    %1076 = vmatpush1.bf16.msra.mxu0 0
    %1077 = vmatprep.subr.bf16.mxu0 0
    %1078 = vmatpush1.bf16.msra.mxu0 0
    %1079 = vmatprep.mubr.bf16.mxu0 0
    %1080 = vmatmul.mubr.bf16.gmra.mrb[0].mxu0 %v1042
    %v1081 = vpop.f32.mrb[0].mxu0
    %v1082 = vadd.f32 0.0, %v1081
    %v1083 = vpop.f32.mrb[0].mxu0
    %v1084 = vpop.f32.mrb[0].mxu0
    %v1085 = vpop.f32.mrb[0].mxu0
    %1086 = vdwg.mxu0
    %v1087 = vpack.c.bf16 %v1082, %v1082
    %s1088 = scalar_lea.vmem %s5, 8
    %v1089 = vld [vmem:[%s1088] sm:$0xf]
    %v1091 = vsel %vm279, %v1087, 0
    %v1094 = vsel %vm342, %v1089, 0
    %1096 = vmatprep.subr.bf16.mxu0 0
    %1097 = vmatpush1.bf16.msra.mxu0 %v1094
    %1098 = vmatprep.subr.bf16.mxu0 0
    %1099 = vmatpush1.bf16.msra.mxu0 0
    %1100 = vmatprep.subr.bf16.mxu0 0
    %1101 = vmatpush1.bf16.msra.mxu0 0
    %1102 = vmatprep.subr.bf16.mxu0 0
    %1103 = vmatpush1.bf16.msra.mxu0 0
    %1104 = vmatprep.subr.bf16.mxu0 0
    %1105 = vmatpush1.bf16.msra.mxu0 0
    %1106 = vmatprep.subr.bf16.mxu0 0
    %1107 = vmatpush1.bf16.msra.mxu0 0
    %1108 = vmatprep.subr.bf16.mxu0 0
    %1109 = vmatpush1.bf16.msra.mxu0 0
    %1110 = vmatprep.subr.bf16.mxu0 0
    %1111 = vmatpush1.bf16.msra.mxu0 0
    %1112 = vmatprep.subr.bf16.mxu0 0
    %1113 = vmatpush1.bf16.msra.mxu0 0
    %1114 = vmatprep.subr.bf16.mxu0 0
    %1115 = vmatpush1.bf16.msra.mxu0 0
    %1116 = vmatprep.subr.bf16.mxu0 0
    %1117 = vmatpush1.bf16.msra.mxu0 0
    %1118 = vmatprep.subr.bf16.mxu0 0
    %1119 = vmatpush1.bf16.msra.mxu0 0
    %1120 = vmatprep.subr.bf16.mxu0 0
    %1121 = vmatpush1.bf16.msra.mxu0 0
    %1122 = vmatprep.subr.bf16.mxu0 0
    %1123 = vmatpush1.bf16.msra.mxu0 0
    %1124 = vmatprep.subr.bf16.mxu0 0
    %1125 = vmatpush1.bf16.msra.mxu0 0
    %1126 = vmatprep.subr.bf16.mxu0 0
    %1127 = vmatpush1.bf16.msra.mxu0 0
    %1128 = vmatprep.mubr.bf16.mxu0 0
    %1129 = vmatmul.mubr.bf16.gmra.mrb[0].mxu0 %v1091
    %v1130 = vpop.f32.mrb[0].mxu0
    %v1131 = vadd.f32 0.0, %v1130
    %v1132 = vpop.f32.mrb[0].mxu0
    %v1133 = vpop.f32.mrb[0].mxu0
    %v1134 = vpop.f32.mrb[0].mxu0
    %1135 = vdwg.mxu0
    %v1136 = vadd.f32 %v780, %v1131
    %s1137 = scalar_lea.vmem %s4, 48
    %v1138 = vld [vmem:[%s1137] sm:$0xf]
    %v1139 = vld [vmem:[%s1137 + $0x4] sm:$0xf]
    %v1140 = vld [vmem:[%s1137 + $0x8] sm:$0xf]
    %v1141 = vld [vmem:[%s1137 + $0xc] sm:$0xf]
    %s1142 = scalar_lea.vmem %s2, 3
    %v1143 = vld [vmem:[%s1142] sm:$0x1]
    %v1145 = vlaneseq
    %v1146 = vshrl.u32 %v1145, 7
    %v1147 = vsub.s32 0, %v1146
    %v1148 = vrot.slane %v1143, %v1147
    %v1154 = vunpack.c.l.b16 %v1138
    %v1155 = vunpack.c.l.b16 %v1139
    %v1156 = vunpack.c.l.b16 %v1140
    %v1157 = vunpack.c.l.b16 %v1141
    %v1158 = vpack.c.b16 %v1155, %v1154
    %v1159 = vpack.c.b16 %v1157, %v1156
    %1162 = vmatprep.subr.bf16.mxu0 0
    %1163 = vmatpush1.bf16.msra.mxu0 %v1158
    %1164 = vmatprep.subr.bf16.mxu0 0
    %1165 = vmatpush1.bf16.msra.mxu0 %v1159
    %1166 = vmatprep.subr.bf16.mxu0 0
    %1167 = vmatpush1.bf16.msra.mxu0 0
    %1168 = vmatprep.subr.bf16.mxu0 0
    %1169 = vmatpush1.bf16.msra.mxu0 0
    %1170 = vmatprep.subr.bf16.mxu0 0
    %1171 = vmatpush1.bf16.msra.mxu0 0
    %1172 = vmatprep.subr.bf16.mxu0 0
    %1173 = vmatpush1.bf16.msra.mxu0 0
    %1174 = vmatprep.subr.bf16.mxu0 0
    %1175 = vmatpush1.bf16.msra.mxu0 0
    %1176 = vmatprep.subr.bf16.mxu0 0
    %1177 = vmatpush1.bf16.msra.mxu0 0
    %1178 = vmatprep.subr.bf16.mxu0 0
    %1179 = vmatpush1.bf16.msra.mxu0 0
    %1180 = vmatprep.subr.bf16.mxu0 0
    %1181 = vmatpush1.bf16.msra.mxu0 0
    %1182 = vmatprep.subr.bf16.mxu0 0
    %1183 = vmatpush1.bf16.msra.mxu0 0
    %1184 = vmatprep.subr.bf16.mxu0 0
    %1185 = vmatpush1.bf16.msra.mxu0 0
    %1186 = vmatprep.subr.bf16.mxu0 0
    %1187 = vmatpush1.bf16.msra.mxu0 0
    %1188 = vmatprep.subr.bf16.mxu0 0
    %1189 = vmatpush1.bf16.msra.mxu0 0
    %1190 = vmatprep.subr.bf16.mxu0 0
    %1191 = vmatpush1.bf16.msra.mxu0 0
    %1192 = vmatprep.subr.bf16.mxu0 0
    %1193 = vmatpush1.bf16.msra.mxu0 0
    %1194 = vmatprep.mubr.bf16.mxu0 0
    %1195 = vmatmul.mubr.bf16.gmra.mrb[0].mxu0 %v105
    %v1196 = vpop.f32.mrb[0].mxu0
    %v1197 = vadd.f32 %v1148, %v1196
    %v1198 = vpop.f32.mrb[0].mxu0
    %v1199 = vpop.f32.mrb[0].mxu0
    %v1200 = vpop.f32.mrb[0].mxu0
    %1201 = vdwg.mxu0
    %s1202 = scalar_lea.vmem %s4, 112
    %v1203 = vld [vmem:[%s1202] sm:$0xf]
    %v1204 = vld [vmem:[%s1202 + $0x4] sm:$0xf]
    %v1205 = vld [vmem:[%s1202 + $0x8] sm:$0xf]
    %v1206 = vld [vmem:[%s1202 + $0xc] sm:$0xf]
    %s1207 = scalar_lea.vmem %s2, 7
    %v1208 = vld [vmem:[%s1207] sm:$0x1]
    %v1210 = vlaneseq
    %v1211 = vshrl.u32 %v1210, 7
    %v1212 = vsub.s32 0, %v1211
    %v1213 = vrot.slane %v1208, %v1212
    %v1219 = vunpack.c.l.b16 %v1203
    %v1220 = vunpack.c.l.b16 %v1204
    %v1221 = vunpack.c.l.b16 %v1205
    %v1222 = vunpack.c.l.b16 %v1206
    %v1223 = vpack.c.b16 %v1220, %v1219
    %v1224 = vpack.c.b16 %v1222, %v1221
    %1227 = vmatprep.subr.bf16.mxu0 0
    %1228 = vmatpush1.bf16.msra.mxu0 %v1223
    %1229 = vmatprep.subr.bf16.mxu0 0
    %1230 = vmatpush1.bf16.msra.mxu0 %v1224
    %1231 = vmatprep.subr.bf16.mxu0 0
    %1232 = vmatpush1.bf16.msra.mxu0 0
    %1233 = vmatprep.subr.bf16.mxu0 0
    %1234 = vmatpush1.bf16.msra.mxu0 0
    %1235 = vmatprep.subr.bf16.mxu0 0
    %1236 = vmatpush1.bf16.msra.mxu0 0
    %1237 = vmatprep.subr.bf16.mxu0 0
    %1238 = vmatpush1.bf16.msra.mxu0 0
    %1239 = vmatprep.subr.bf16.mxu0 0
    %1240 = vmatpush1.bf16.msra.mxu0 0
    %1241 = vmatprep.subr.bf16.mxu0 0
    %1242 = vmatpush1.bf16.msra.mxu0 0
    %1243 = vmatprep.subr.bf16.mxu0 0
    %1244 = vmatpush1.bf16.msra.mxu0 0
    %1245 = vmatprep.subr.bf16.mxu0 0
    %1246 = vmatpush1.bf16.msra.mxu0 0
    %1247 = vmatprep.subr.bf16.mxu0 0
    %1248 = vmatpush1.bf16.msra.mxu0 0
    %1249 = vmatprep.subr.bf16.mxu0 0
    %1250 = vmatpush1.bf16.msra.mxu0 0
    %1251 = vmatprep.subr.bf16.mxu0 0
    %1252 = vmatpush1.bf16.msra.mxu0 0
    %1253 = vmatprep.subr.bf16.mxu0 0
    %1254 = vmatpush1.bf16.msra.mxu0 0
    %1255 = vmatprep.subr.bf16.mxu0 0
    %1256 = vmatpush1.bf16.msra.mxu0 0
    %1257 = vmatprep.subr.bf16.mxu0 0
    %1258 = vmatpush1.bf16.msra.mxu0 0
    %1259 = vmatprep.mubr.bf16.mxu0 0
    %1260 = vmatmul.mubr.bf16.gmra.mrb[0].mxu0 %v105
    %v1261 = vpop.f32.mrb[0].mxu0
    %v1262 = vadd.f32 %v1213, %v1261
    %v1263 = vpop.f32.mrb[0].mxu0
    %v1264 = vpop.f32.mrb[0].mxu0
    %v1265 = vpop.f32.mrb[0].mxu0
    %1266 = vdwg.mxu0
    %s1267 = scalar_lea.vmem %s4, 176
    %v1268 = vld [vmem:[%s1267] sm:$0xf]
    %v1269 = vld [vmem:[%s1267 + $0x4] sm:$0xf]
    %v1270 = vld [vmem:[%s1267 + $0x8] sm:$0xf]
    %v1271 = vld [vmem:[%s1267 + $0xc] sm:$0xf]
    %s1272 = scalar_lea.vmem %s2, 11
    %v1273 = vld [vmem:[%s1272] sm:$0x1]
    %v1275 = vlaneseq
    %v1276 = vshrl.u32 %v1275, 7
    %v1277 = vsub.s32 0, %v1276
    %v1278 = vrot.slane %v1273, %v1277
    %v1284 = vunpack.c.l.b16 %v1268
    %v1285 = vunpack.c.l.b16 %v1269
    %v1286 = vunpack.c.l.b16 %v1270
    %v1287 = vunpack.c.l.b16 %v1271
    %v1288 = vpack.c.b16 %v1285, %v1284
    %v1289 = vpack.c.b16 %v1287, %v1286
    %1292 = vmatprep.subr.bf16.mxu0 0
    %1293 = vmatpush1.bf16.msra.mxu0 %v1288
    %1294 = vmatprep.subr.bf16.mxu0 0
    %1295 = vmatpush1.bf16.msra.mxu0 %v1289
    %1296 = vmatprep.subr.bf16.mxu0 0
    %1297 = vmatpush1.bf16.msra.mxu0 0
    %1298 = vmatprep.subr.bf16.mxu0 0
    %1299 = vmatpush1.bf16.msra.mxu0 0
    %1300 = vmatprep.subr.bf16.mxu0 0
    %1301 = vmatpush1.bf16.msra.mxu0 0
    %1302 = vmatprep.subr.bf16.mxu0 0
    %1303 = vmatpush1.bf16.msra.mxu0 0
    %1304 = vmatprep.subr.bf16.mxu0 0
    %1305 = vmatpush1.bf16.msra.mxu0 0
    %1306 = vmatprep.subr.bf16.mxu0 0
    %1307 = vmatpush1.bf16.msra.mxu0 0
    %1308 = vmatprep.subr.bf16.mxu0 0
    %1309 = vmatpush1.bf16.msra.mxu0 0
    %1310 = vmatprep.subr.bf16.mxu0 0
    %1311 = vmatpush1.bf16.msra.mxu0 0
    %1312 = vmatprep.subr.bf16.mxu0 0
    %1313 = vmatpush1.bf16.msra.mxu0 0
    %1314 = vmatprep.subr.bf16.mxu0 0
    %1315 = vmatpush1.bf16.msra.mxu0 0
    %1316 = vmatprep.subr.bf16.mxu0 0
    %1317 = vmatpush1.bf16.msra.mxu0 0
    %1318 = vmatprep.subr.bf16.mxu0 0
    %1319 = vmatpush1.bf16.msra.mxu0 0
    %1320 = vmatprep.subr.bf16.mxu0 0
    %1321 = vmatpush1.bf16.msra.mxu0 0
    %1322 = vmatprep.subr.bf16.mxu0 0
    %1323 = vmatpush1.bf16.msra.mxu0 0
    %1324 = vmatprep.mubr.bf16.mxu0 0
    %1325 = vmatmul.mubr.bf16.gmra.mrb[0].mxu0 %v105
    %v1326 = vpop.f32.mrb[0].mxu0
    %v1327 = vadd.f32 %v1278, %v1326
    %v1328 = vpop.f32.mrb[0].mxu0
    %v1329 = vpop.f32.mrb[0].mxu0
    %v1330 = vpop.f32.mrb[0].mxu0
    %1331 = vdwg.mxu0
    %v1332 = vpack.c.bf16 %v1197, %v1197
    %v1333 = vpack.c.bf16 %v1262, %v1262
    %v1335 = vsel %vm279, %v1332, 0
    %v1338 = vsel %vm279, %v1333, 0
    %1340 = vmatprep.subr.bf16.mxu0 0
    %1341 = vmatpush1.bf16.xpose.msra.mxu0 %v1338
    %1342 = vmatprep.subr.bf16.mxu0 0
    %1343 = vmatpush1.bf16.xpose.msra.mxu0 0
    %1344 = vmatprep.subr.bf16.mxu0 0
    %1345 = vmatpush1.bf16.xpose.msra.mxu0 0
    %1346 = vmatprep.subr.bf16.mxu0 0
    %1347 = vmatpush1.bf16.xpose.msra.mxu0 0
    %1348 = vmatprep.subr.bf16.mxu0 0
    %1349 = vmatpush1.bf16.xpose.msra.mxu0 0
    %1350 = vmatprep.subr.bf16.mxu0 0
    %1351 = vmatpush1.bf16.xpose.msra.mxu0 0
    %1352 = vmatprep.subr.bf16.mxu0 0
    %1353 = vmatpush1.bf16.xpose.msra.mxu0 0
    %1354 = vmatprep.subr.bf16.mxu0 0
    %1355 = vmatpush1.bf16.xpose.msra.mxu0 0
    %1356 = vmatprep.subr.bf16.mxu0 0
    %1357 = vmatpush1.bf16.xpose.msra.mxu0 0
    %1358 = vmatprep.subr.bf16.mxu0 0
    %1359 = vmatpush1.bf16.xpose.msra.mxu0 0
    %1360 = vmatprep.subr.bf16.mxu0 0
    %1361 = vmatpush1.bf16.xpose.msra.mxu0 0
    %1362 = vmatprep.subr.bf16.mxu0 0
    %1363 = vmatpush1.bf16.xpose.msra.mxu0 0
    %1364 = vmatprep.subr.bf16.mxu0 0
    %1365 = vmatpush1.bf16.xpose.msra.mxu0 0
    %1366 = vmatprep.subr.bf16.mxu0 0
    %1367 = vmatpush1.bf16.xpose.msra.mxu0 0
    %1368 = vmatprep.subr.bf16.mxu0 0
    %1369 = vmatpush1.bf16.xpose.msra.mxu0 0
    %1370 = vmatprep.subr.bf16.mxu0 0
    %1371 = vmatpush1.bf16.xpose.msra.mxu0 0
    %1372 = vmatprep.mubr.bf16.mxu0 0
    %1373 = vmatmul.mubr.bf16.gmra.mrb[0].mxu0 %v1335
    %v1374 = vpop.f32.mrb[0].mxu0
    %v1375 = vadd.f32 0.0, %v1374
    %v1376 = vpop.f32.mrb[0].mxu0
    %v1377 = vpop.f32.mrb[0].mxu0
    %v1378 = vpop.f32.mrb[0].mxu0
    %1379 = vdwg.mxu0
    %v1380 = vsel %vm279, %v1375, -inf
    %1381 = vmax.xlane.f32.xlu0 %v1380
    %v1382 = vpop.xlane.xlu0 %1381
    %v1383 = vsub.f32 %v1375, %v1382
    %v1384 = vmul.f32 %v1383, 1.442695
    %v1385 = vpow.pop %v1384
    %v1386 = vsel %vm279, %v1385, 0.0
    %1387 = vadd.xlane.f32.xlu0 %v1386
    %v1388 = vpop.xlane.xlu0 %1387
    %v1389 = vrcp.pop %v1388
    %v1390 = vmul.f32 %v1385, %v1389
    %v1391 = vpack.c.bf16 %v1390, %v1390
    %v1392 = vpack.c.bf16 %v1327, %v1327
    %v1394 = vsel %vm279, %v1391, 0
    %v1397 = vsel %vm342, %v1392, 0
    %1399 = vmatprep.subr.bf16.mxu0 0
    %1400 = vmatpush1.bf16.msra.mxu0 %v1397
    %1401 = vmatprep.subr.bf16.mxu0 0
    %1402 = vmatpush1.bf16.msra.mxu0 0
    %1403 = vmatprep.subr.bf16.mxu0 0
    %1404 = vmatpush1.bf16.msra.mxu0 0
    %1405 = vmatprep.subr.bf16.mxu0 0
    %1406 = vmatpush1.bf16.msra.mxu0 0
    %1407 = vmatprep.subr.bf16.mxu0 0
    %1408 = vmatpush1.bf16.msra.mxu0 0
    %1409 = vmatprep.subr.bf16.mxu0 0
    %1410 = vmatpush1.bf16.msra.mxu0 0
    %1411 = vmatprep.subr.bf16.mxu0 0
    %1412 = vmatpush1.bf16.msra.mxu0 0
    %1413 = vmatprep.subr.bf16.mxu0 0
    %1414 = vmatpush1.bf16.msra.mxu0 0
    %1415 = vmatprep.subr.bf16.mxu0 0
    %1416 = vmatpush1.bf16.msra.mxu0 0
    %1417 = vmatprep.subr.bf16.mxu0 0
    %1418 = vmatpush1.bf16.msra.mxu0 0
    %1419 = vmatprep.subr.bf16.mxu0 0
    %1420 = vmatpush1.bf16.msra.mxu0 0
    %1421 = vmatprep.subr.bf16.mxu0 0
    %1422 = vmatpush1.bf16.msra.mxu0 0
    %1423 = vmatprep.subr.bf16.mxu0 0
    %1424 = vmatpush1.bf16.msra.mxu0 0
    %1425 = vmatprep.subr.bf16.mxu0 0
    %1426 = vmatpush1.bf16.msra.mxu0 0
    %1427 = vmatprep.subr.bf16.mxu0 0
    %1428 = vmatpush1.bf16.msra.mxu0 0
    %1429 = vmatprep.subr.bf16.mxu0 0
    %1430 = vmatpush1.bf16.msra.mxu0 0
    %1431 = vmatprep.mubr.bf16.mxu0 0
    %1432 = vmatmul.mubr.bf16.gmra.mrb[0].mxu0 %v1394
    %v1433 = vpop.f32.mrb[0].mxu0
    %v1434 = vadd.f32 0.0, %v1433
    %v1435 = vpop.f32.mrb[0].mxu0
    %v1436 = vpop.f32.mrb[0].mxu0
    %v1437 = vpop.f32.mrb[0].mxu0
    %1438 = vdwg.mxu0
    %v1439 = vpack.c.bf16 %v1434, %v1434
    %s1440 = scalar_lea.vmem %s5, 12
    %v1441 = vld [vmem:[%s1440] sm:$0xf]
    %v1443 = vsel %vm279, %v1439, 0
    %v1446 = vsel %vm342, %v1441, 0
    %1448 = vmatprep.subr.bf16.mxu0 0
    %1449 = vmatpush1.bf16.msra.mxu0 %v1446
    %1450 = vmatprep.subr.bf16.mxu0 0
    %1451 = vmatpush1.bf16.msra.mxu0 0
    %1452 = vmatprep.subr.bf16.mxu0 0
    %1453 = vmatpush1.bf16.msra.mxu0 0
    %1454 = vmatprep.subr.bf16.mxu0 0
    %1455 = vmatpush1.bf16.msra.mxu0 0
    %1456 = vmatprep.subr.bf16.mxu0 0
    %1457 = vmatpush1.bf16.msra.mxu0 0
    %1458 = vmatprep.subr.bf16.mxu0 0
    %1459 = vmatpush1.bf16.msra.mxu0 0
    %1460 = vmatprep.subr.bf16.mxu0 0
    %1461 = vmatpush1.bf16.msra.mxu0 0
    %1462 = vmatprep.subr.bf16.mxu0 0
    %1463 = vmatpush1.bf16.msra.mxu0 0
    %1464 = vmatprep.subr.bf16.mxu0 0
    %1465 = vmatpush1.bf16.msra.mxu0 0
    %1466 = vmatprep.subr.bf16.mxu0 0
    %1467 = vmatpush1.bf16.msra.mxu0 0
    %1468 = vmatprep.subr.bf16.mxu0 0
    %1469 = vmatpush1.bf16.msra.mxu0 0
    %1470 = vmatprep.subr.bf16.mxu0 0
    %1471 = vmatpush1.bf16.msra.mxu0 0
    %1472 = vmatprep.subr.bf16.mxu0 0
    %1473 = vmatpush1.bf16.msra.mxu0 0
    %1474 = vmatprep.subr.bf16.mxu0 0
    %1475 = vmatpush1.bf16.msra.mxu0 0
    %1476 = vmatprep.subr.bf16.mxu0 0
    %1477 = vmatpush1.bf16.msra.mxu0 0
    %1478 = vmatprep.subr.bf16.mxu0 0
    %1479 = vmatpush1.bf16.msra.mxu0 0
    %1480 = vmatprep.mubr.bf16.mxu0 0
    %1481 = vmatmul.mubr.bf16.gmra.mrb[0].mxu0 %v1443
    %v1482 = vpop.f32.mrb[0].mxu0
    %v1483 = vadd.f32 0.0, %v1482
    %v1484 = vpop.f32.mrb[0].mxu0
    %v1485 = vpop.f32.mrb[0].mxu0
    %v1486 = vpop.f32.mrb[0].mxu0
    %1487 = vdwg.mxu0
    %v1488 = vadd.f32 %v1136, %v1483
    %s1489 = scalar_lea.vmem %s1, 4
    %v1490 = vld [vmem:[%s1489] sm:$0x1]
    %v1492 = vlaneseq
    %v1493 = vshrl.u32 %v1492, 7
    %v1494 = vsub.s32 0, %v1493
    %v1495 = vrot.slane %v1490, %v1494
    %v1497 = vadd.f32 %v1488, %v1495
    %1498 = vst.msk [vmem:[#allocation2] sm:$0xff] %vm36, %v1497
    %v1499 = vld [vmem:[%s4] sm:$0xf]
    %v1500 = vld [vmem:[%s4 + $0x4] sm:$0xf]
    %v1501 = vld [vmem:[%s4 + $0x8] sm:$0xf]
    %v1502 = vld [vmem:[%s4 + $0xc] sm:$0xf]
    %v1503 = vld [vmem:[%s2] sm:$0x1]
    %v1505 = vlaneseq
    %v1506 = vshrl.u32 %v1505, 7
    %v1507 = vsub.s32 0, %v1506
    %v1508 = vrot.slane %v1503, %v1507
    %v1511 = vrot.slane %v80, 4
    %v1516 = vunpack.c.l.b16 %v1499
    %v1517 = vunpack.c.l.b16 %v1500
    %v1518 = vunpack.c.l.b16 %v1501
    %v1519 = vunpack.c.l.b16 %v1502
    %v1520 = vpack.c.b16 %v1517, %v1516
    %v1521 = vpack.c.b16 %v1519, %v1518
    %v1525 = vsel %vm36, %v1511, 0
    %1527 = vmatprep.subr.bf16.mxu0 0
    %1528 = vmatpush1.bf16.msra.mxu0 %v1520
    %1529 = vmatprep.subr.bf16.mxu0 0
    %1530 = vmatpush1.bf16.msra.mxu0 %v1521
    %1531 = vmatprep.subr.bf16.mxu0 0
    %1532 = vmatpush1.bf16.msra.mxu0 0
    %1533 = vmatprep.subr.bf16.mxu0 0
    %1534 = vmatpush1.bf16.msra.mxu0 0
    %1535 = vmatprep.subr.bf16.mxu0 0
    %1536 = vmatpush1.bf16.msra.mxu0 0
    %1537 = vmatprep.subr.bf16.mxu0 0
    %1538 = vmatpush1.bf16.msra.mxu0 0
    %1539 = vmatprep.subr.bf16.mxu0 0
    %1540 = vmatpush1.bf16.msra.mxu0 0
    %1541 = vmatprep.subr.bf16.mxu0 0
    %1542 = vmatpush1.bf16.msra.mxu0 0
    %1543 = vmatprep.subr.bf16.mxu0 0
    %1544 = vmatpush1.bf16.msra.mxu0 0
    %1545 = vmatprep.subr.bf16.mxu0 0
    %1546 = vmatpush1.bf16.msra.mxu0 0
    %1547 = vmatprep.subr.bf16.mxu0 0
    %1548 = vmatpush1.bf16.msra.mxu0 0
    %1549 = vmatprep.subr.bf16.mxu0 0
    %1550 = vmatpush1.bf16.msra.mxu0 0
    %1551 = vmatprep.subr.bf16.mxu0 0
    %1552 = vmatpush1.bf16.msra.mxu0 0
    %1553 = vmatprep.subr.bf16.mxu0 0
    %1554 = vmatpush1.bf16.msra.mxu0 0
    %1555 = vmatprep.subr.bf16.mxu0 0
    %1556 = vmatpush1.bf16.msra.mxu0 0
    %1557 = vmatprep.subr.bf16.mxu0 0
    %1558 = vmatpush1.bf16.msra.mxu0 0
    %1559 = vmatprep.mubr.bf16.mxu0 0
    %1560 = vmatmul.mubr.bf16.gmra.mrb[0].mxu0 %v1525
    %v1561 = vpop.f32.mrb[0].mxu0
    %v1562 = vadd.f32 %v1508, %v1561
    %v1563 = vpop.f32.mrb[0].mxu0
    %v1564 = vpop.f32.mrb[0].mxu0
    %v1565 = vpop.f32.mrb[0].mxu0
    %1566 = vdwg.mxu0
    %v1567 = vld [vmem:[%s147] sm:$0xf]
    %v1568 = vld [vmem:[%s147 + $0x4] sm:$0xf]
    %v1569 = vld [vmem:[%s147 + $0x8] sm:$0xf]
    %v1570 = vld [vmem:[%s147 + $0xc] sm:$0xf]
    %v1571 = vld [vmem:[%s152] sm:$0x1]
    %v1573 = vlaneseq
    %v1574 = vshrl.u32 %v1573, 7
    %v1575 = vsub.s32 0, %v1574
    %v1576 = vrot.slane %v1571, %v1575
    %v1582 = vunpack.c.l.b16 %v1567
    %v1583 = vunpack.c.l.b16 %v1568
    %v1584 = vunpack.c.l.b16 %v1569
    %v1585 = vunpack.c.l.b16 %v1570
    %v1586 = vpack.c.b16 %v1583, %v1582
    %v1587 = vpack.c.b16 %v1585, %v1584
    %1590 = vmatprep.subr.bf16.mxu0 0
    %1591 = vmatpush1.bf16.msra.mxu0 %v1586
    %1592 = vmatprep.subr.bf16.mxu0 0
    %1593 = vmatpush1.bf16.msra.mxu0 %v1587
    %1594 = vmatprep.subr.bf16.mxu0 0
    %1595 = vmatpush1.bf16.msra.mxu0 0
    %1596 = vmatprep.subr.bf16.mxu0 0
    %1597 = vmatpush1.bf16.msra.mxu0 0
    %1598 = vmatprep.subr.bf16.mxu0 0
    %1599 = vmatpush1.bf16.msra.mxu0 0
    %1600 = vmatprep.subr.bf16.mxu0 0
    %1601 = vmatpush1.bf16.msra.mxu0 0
    %1602 = vmatprep.subr.bf16.mxu0 0
    %1603 = vmatpush1.bf16.msra.mxu0 0
    %1604 = vmatprep.subr.bf16.mxu0 0
    %1605 = vmatpush1.bf16.msra.mxu0 0
    %1606 = vmatprep.subr.bf16.mxu0 0
    %1607 = vmatpush1.bf16.msra.mxu0 0
    %1608 = vmatprep.subr.bf16.mxu0 0
    %1609 = vmatpush1.bf16.msra.mxu0 0
    %1610 = vmatprep.subr.bf16.mxu0 0
    %1611 = vmatpush1.bf16.msra.mxu0 0
    %1612 = vmatprep.subr.bf16.mxu0 0
    %1613 = vmatpush1.bf16.msra.mxu0 0
    %1614 = vmatprep.subr.bf16.mxu0 0
    %1615 = vmatpush1.bf16.msra.mxu0 0
    %1616 = vmatprep.subr.bf16.mxu0 0
    %1617 = vmatpush1.bf16.msra.mxu0 0
    %1618 = vmatprep.subr.bf16.mxu0 0
    %1619 = vmatpush1.bf16.msra.mxu0 0
    %1620 = vmatprep.subr.bf16.mxu0 0
    %1621 = vmatpush1.bf16.msra.mxu0 0
    %1622 = vmatprep.mubr.bf16.mxu0 0
    %1623 = vmatmul.mubr.bf16.gmra.mrb[0].mxu0 %v1525
    %v1624 = vpop.f32.mrb[0].mxu0
    %v1625 = vadd.f32 %v1576, %v1624
    %v1626 = vpop.f32.mrb[0].mxu0
    %v1627 = vpop.f32.mrb[0].mxu0
    %v1628 = vpop.f32.mrb[0].mxu0
    %1629 = vdwg.mxu0
    %v1630 = vld [vmem:[%s212] sm:$0xf]
    %v1631 = vld [vmem:[%s212 + $0x4] sm:$0xf]
    %v1632 = vld [vmem:[%s212 + $0x8] sm:$0xf]
    %v1633 = vld [vmem:[%s212 + $0xc] sm:$0xf]
    %v1634 = vld [vmem:[%s217] sm:$0x1]
    %v1636 = vlaneseq
    %v1637 = vshrl.u32 %v1636, 7
    %v1638 = vsub.s32 0, %v1637
    %v1639 = vrot.slane %v1634, %v1638
    %v1645 = vunpack.c.l.b16 %v1630
    %v1646 = vunpack.c.l.b16 %v1631
    %v1647 = vunpack.c.l.b16 %v1632
    %v1648 = vunpack.c.l.b16 %v1633
    %v1649 = vpack.c.b16 %v1646, %v1645
    %v1650 = vpack.c.b16 %v1648, %v1647
    %1653 = vmatprep.subr.bf16.mxu0 0
    %1654 = vmatpush1.bf16.msra.mxu0 %v1649
    %1655 = vmatprep.subr.bf16.mxu0 0
    %1656 = vmatpush1.bf16.msra.mxu0 %v1650
    %1657 = vmatprep.subr.bf16.mxu0 0
    %1658 = vmatpush1.bf16.msra.mxu0 0
    %1659 = vmatprep.subr.bf16.mxu0 0
    %1660 = vmatpush1.bf16.msra.mxu0 0
    %1661 = vmatprep.subr.bf16.mxu0 0
    %1662 = vmatpush1.bf16.msra.mxu0 0
    %1663 = vmatprep.subr.bf16.mxu0 0
    %1664 = vmatpush1.bf16.msra.mxu0 0
    %1665 = vmatprep.subr.bf16.mxu0 0
    %1666 = vmatpush1.bf16.msra.mxu0 0
    %1667 = vmatprep.subr.bf16.mxu0 0
    %1668 = vmatpush1.bf16.msra.mxu0 0
    %1669 = vmatprep.subr.bf16.mxu0 0
    %1670 = vmatpush1.bf16.msra.mxu0 0
    %1671 = vmatprep.subr.bf16.mxu0 0
    %1672 = vmatpush1.bf16.msra.mxu0 0
    %1673 = vmatprep.subr.bf16.mxu0 0
    %1674 = vmatpush1.bf16.msra.mxu0 0
    %1675 = vmatprep.subr.bf16.mxu0 0
    %1676 = vmatpush1.bf16.msra.mxu0 0
    %1677 = vmatprep.subr.bf16.mxu0 0
    %1678 = vmatpush1.bf16.msra.mxu0 0
    %1679 = vmatprep.subr.bf16.mxu0 0
    %1680 = vmatpush1.bf16.msra.mxu0 0
    %1681 = vmatprep.subr.bf16.mxu0 0
    %1682 = vmatpush1.bf16.msra.mxu0 0
    %1683 = vmatprep.subr.bf16.mxu0 0
    %1684 = vmatpush1.bf16.msra.mxu0 0
    %1685 = vmatprep.mubr.bf16.mxu0 0
    %1686 = vmatmul.mubr.bf16.gmra.mrb[0].mxu0 %v1525
    %v1687 = vpop.f32.mrb[0].mxu0
    %v1688 = vadd.f32 %v1639, %v1687
    %v1689 = vpop.f32.mrb[0].mxu0
    %v1690 = vpop.f32.mrb[0].mxu0
    %v1691 = vpop.f32.mrb[0].mxu0
    %1692 = vdwg.mxu0
    %v1693 = vpack.c.bf16 %v1562, %v1562
    %v1694 = vpack.c.bf16 %v1625, %v1625
    %v1696 = vsel %vm279, %v1693, 0
    %v1699 = vsel %vm279, %v1694, 0
    %1701 = vmatprep.subr.bf16.mxu0 0
    %1702 = vmatpush1.bf16.xpose.msra.mxu0 %v1699
    %1703 = vmatprep.subr.bf16.mxu0 0
    %1704 = vmatpush1.bf16.xpose.msra.mxu0 0
    %1705 = vmatprep.subr.bf16.mxu0 0
    %1706 = vmatpush1.bf16.xpose.msra.mxu0 0
    %1707 = vmatprep.subr.bf16.mxu0 0
    %1708 = vmatpush1.bf16.xpose.msra.mxu0 0
    %1709 = vmatprep.subr.bf16.mxu0 0
    %1710 = vmatpush1.bf16.xpose.msra.mxu0 0
    %1711 = vmatprep.subr.bf16.mxu0 0
    %1712 = vmatpush1.bf16.xpose.msra.mxu0 0
    %1713 = vmatprep.subr.bf16.mxu0 0
    %1714 = vmatpush1.bf16.xpose.msra.mxu0 0
    %1715 = vmatprep.subr.bf16.mxu0 0
    %1716 = vmatpush1.bf16.xpose.msra.mxu0 0
    %1717 = vmatprep.subr.bf16.mxu0 0
    %1718 = vmatpush1.bf16.xpose.msra.mxu0 0
    %1719 = vmatprep.subr.bf16.mxu0 0
    %1720 = vmatpush1.bf16.xpose.msra.mxu0 0
    %1721 = vmatprep.subr.bf16.mxu0 0
    %1722 = vmatpush1.bf16.xpose.msra.mxu0 0
    %1723 = vmatprep.subr.bf16.mxu0 0
    %1724 = vmatpush1.bf16.xpose.msra.mxu0 0
    %1725 = vmatprep.subr.bf16.mxu0 0
    %1726 = vmatpush1.bf16.xpose.msra.mxu0 0
    %1727 = vmatprep.subr.bf16.mxu0 0
    %1728 = vmatpush1.bf16.xpose.msra.mxu0 0
    %1729 = vmatprep.subr.bf16.mxu0 0
    %1730 = vmatpush1.bf16.xpose.msra.mxu0 0
    %1731 = vmatprep.subr.bf16.mxu0 0
    %1732 = vmatpush1.bf16.xpose.msra.mxu0 0
    %1733 = vmatprep.mubr.bf16.mxu0 0
    %1734 = vmatmul.mubr.bf16.gmra.mrb[0].mxu0 %v1696
    %v1735 = vpop.f32.mrb[0].mxu0
    %v1736 = vadd.f32 0.0, %v1735
    %v1737 = vpop.f32.mrb[0].mxu0
    %v1738 = vpop.f32.mrb[0].mxu0
    %v1739 = vpop.f32.mrb[0].mxu0
    %1740 = vdwg.mxu0
    %v1741 = vsel %vm279, %v1736, -inf
    %1742 = vmax.xlane.f32.xlu0 %v1741
    %v1743 = vpop.xlane.xlu0 %1742
    %v1744 = vsub.f32 %v1736, %v1743
    %v1745 = vmul.f32 %v1744, 1.442695
    %v1746 = vpow.pop %v1745
    %v1747 = vsel %vm279, %v1746, 0.0
    %1748 = vadd.xlane.f32.xlu0 %v1747
    %v1749 = vpop.xlane.xlu0 %1748
    %v1750 = vrcp.pop %v1749
    %v1751 = vmul.f32 %v1746, %v1750
    %v1752 = vpack.c.bf16 %v1751, %v1751
    %v1753 = vpack.c.bf16 %v1688, %v1688
    %v1755 = vsel %vm279, %v1752, 0
    %v1758 = vsel %vm342, %v1753, 0
    %1760 = vmatprep.subr.bf16.mxu0 0
    %1761 = vmatpush1.bf16.msra.mxu0 %v1758
    %1762 = vmatprep.subr.bf16.mxu0 0
    %1763 = vmatpush1.bf16.msra.mxu0 0
    %1764 = vmatprep.subr.bf16.mxu0 0
    %1765 = vmatpush1.bf16.msra.mxu0 0
    %1766 = vmatprep.subr.bf16.mxu0 0
    %1767 = vmatpush1.bf16.msra.mxu0 0
    %1768 = vmatprep.subr.bf16.mxu0 0
    %1769 = vmatpush1.bf16.msra.mxu0 0
    %1770 = vmatprep.subr.bf16.mxu0 0
    %1771 = vmatpush1.bf16.msra.mxu0 0
    %1772 = vmatprep.subr.bf16.mxu0 0
    %1773 = vmatpush1.bf16.msra.mxu0 0
    %1774 = vmatprep.subr.bf16.mxu0 0
    %1775 = vmatpush1.bf16.msra.mxu0 0
    %1776 = vmatprep.subr.bf16.mxu0 0
    %1777 = vmatpush1.bf16.msra.mxu0 0
    %1778 = vmatprep.subr.bf16.mxu0 0
    %1779 = vmatpush1.bf16.msra.mxu0 0
    %1780 = vmatprep.subr.bf16.mxu0 0
    %1781 = vmatpush1.bf16.msra.mxu0 0
    %1782 = vmatprep.subr.bf16.mxu0 0
    %1783 = vmatpush1.bf16.msra.mxu0 0
    %1784 = vmatprep.subr.bf16.mxu0 0
    %1785 = vmatpush1.bf16.msra.mxu0 0
    %1786 = vmatprep.subr.bf16.mxu0 0
    %1787 = vmatpush1.bf16.msra.mxu0 0
    %1788 = vmatprep.subr.bf16.mxu0 0
    %1789 = vmatpush1.bf16.msra.mxu0 0
    %1790 = vmatprep.subr.bf16.mxu0 0
    %1791 = vmatpush1.bf16.msra.mxu0 0
    %1792 = vmatprep.mubr.bf16.mxu0 0
    %1793 = vmatmul.mubr.bf16.gmra.mrb[0].mxu0 %v1755
    %v1794 = vpop.f32.mrb[0].mxu0
    %v1795 = vadd.f32 0.0, %v1794
    %v1796 = vpop.f32.mrb[0].mxu0
    %v1797 = vpop.f32.mrb[0].mxu0
    %v1798 = vpop.f32.mrb[0].mxu0
    %1799 = vdwg.mxu0
    %v1800 = vpack.c.bf16 %v1795, %v1795
    %v1801 = vld [vmem:[%s5] sm:$0xf]
    %v1802 = vld [vmem:[%s388] sm:$0xf]
    %v1803 = vld [vmem:[%s388 + $0x4] sm:$0xf]
    %v1804 = vld [vmem:[%s388 + $0x8] sm:$0xf]
    %v1805 = vld [vmem:[%s388 + $0xc] sm:$0xf]
    %v1806 = vld [vmem:[%s393] sm:$0x1]
    %v1808 = vlaneseq
    %v1809 = vshrl.u32 %v1808, 7
    %v1810 = vsub.s32 0, %v1809
    %v1811 = vrot.slane %v1806, %v1810
    %v1817 = vunpack.c.l.b16 %v1802
    %v1818 = vunpack.c.l.b16 %v1803
    %v1819 = vunpack.c.l.b16 %v1804
    %v1820 = vunpack.c.l.b16 %v1805
    %v1821 = vpack.c.b16 %v1818, %v1817
    %v1822 = vpack.c.b16 %v1820, %v1819
    %1825 = vmatprep.subr.bf16.mxu0 0
    %1826 = vmatpush1.bf16.msra.mxu0 %v1821
    %1827 = vmatprep.subr.bf16.mxu0 0
    %1828 = vmatpush1.bf16.msra.mxu0 %v1822
    %1829 = vmatprep.subr.bf16.mxu0 0
    %1830 = vmatpush1.bf16.msra.mxu0 0
    %1831 = vmatprep.subr.bf16.mxu0 0
    %1832 = vmatpush1.bf16.msra.mxu0 0
    %1833 = vmatprep.subr.bf16.mxu0 0
    %1834 = vmatpush1.bf16.msra.mxu0 0
    %1835 = vmatprep.subr.bf16.mxu0 0
    %1836 = vmatpush1.bf16.msra.mxu0 0
    %1837 = vmatprep.subr.bf16.mxu0 0
    %1838 = vmatpush1.bf16.msra.mxu0 0
    %1839 = vmatprep.subr.bf16.mxu0 0
    %1840 = vmatpush1.bf16.msra.mxu0 0
    %1841 = vmatprep.subr.bf16.mxu0 0
    %1842 = vmatpush1.bf16.msra.mxu0 0
    %1843 = vmatprep.subr.bf16.mxu0 0
    %1844 = vmatpush1.bf16.msra.mxu0 0
    %1845 = vmatprep.subr.bf16.mxu0 0
    %1846 = vmatpush1.bf16.msra.mxu0 0
    %1847 = vmatprep.subr.bf16.mxu0 0
    %1848 = vmatpush1.bf16.msra.mxu0 0
    %1849 = vmatprep.subr.bf16.mxu0 0
    %1850 = vmatpush1.bf16.msra.mxu0 0
    %1851 = vmatprep.subr.bf16.mxu0 0
    %1852 = vmatpush1.bf16.msra.mxu0 0
    %1853 = vmatprep.subr.bf16.mxu0 0
    %1854 = vmatpush1.bf16.msra.mxu0 0
    %1855 = vmatprep.subr.bf16.mxu0 0
    %1856 = vmatpush1.bf16.msra.mxu0 0
    %1857 = vmatprep.mubr.bf16.mxu0 0
    %1858 = vmatmul.mubr.bf16.gmra.mrb[0].mxu0 %v1525
    %v1859 = vpop.f32.mrb[0].mxu0
    %v1860 = vadd.f32 %v1811, %v1859
    %v1861 = vpop.f32.mrb[0].mxu0
    %v1862 = vpop.f32.mrb[0].mxu0
    %v1863 = vpop.f32.mrb[0].mxu0
    %1864 = vdwg.mxu0
    %v1865 = vld [vmem:[%s453] sm:$0xf]
    %v1866 = vld [vmem:[%s453 + $0x4] sm:$0xf]
    %v1867 = vld [vmem:[%s453 + $0x8] sm:$0xf]
    %v1868 = vld [vmem:[%s453 + $0xc] sm:$0xf]
    %v1869 = vld [vmem:[%s458] sm:$0x1]
    %v1871 = vlaneseq
    %v1872 = vshrl.u32 %v1871, 7
    %v1873 = vsub.s32 0, %v1872
    %v1874 = vrot.slane %v1869, %v1873
    %v1880 = vunpack.c.l.b16 %v1865
    %v1881 = vunpack.c.l.b16 %v1866
    %v1882 = vunpack.c.l.b16 %v1867
    %v1883 = vunpack.c.l.b16 %v1868
    %v1884 = vpack.c.b16 %v1881, %v1880
    %v1885 = vpack.c.b16 %v1883, %v1882
    %1888 = vmatprep.subr.bf16.mxu0 0
    %1889 = vmatpush1.bf16.msra.mxu0 %v1884
    %1890 = vmatprep.subr.bf16.mxu0 0
    %1891 = vmatpush1.bf16.msra.mxu0 %v1885
    %1892 = vmatprep.subr.bf16.mxu0 0
    %1893 = vmatpush1.bf16.msra.mxu0 0
    %1894 = vmatprep.subr.bf16.mxu0 0
    %1895 = vmatpush1.bf16.msra.mxu0 0
    %1896 = vmatprep.subr.bf16.mxu0 0
    %1897 = vmatpush1.bf16.msra.mxu0 0
    %1898 = vmatprep.subr.bf16.mxu0 0
    %1899 = vmatpush1.bf16.msra.mxu0 0
    %1900 = vmatprep.subr.bf16.mxu0 0
    %1901 = vmatpush1.bf16.msra.mxu0 0
    %1902 = vmatprep.subr.bf16.mxu0 0
    %1903 = vmatpush1.bf16.msra.mxu0 0
    %1904 = vmatprep.subr.bf16.mxu0 0
    %1905 = vmatpush1.bf16.msra.mxu0 0
    %1906 = vmatprep.subr.bf16.mxu0 0
    %1907 = vmatpush1.bf16.msra.mxu0 0
    %1908 = vmatprep.subr.bf16.mxu0 0
    %1909 = vmatpush1.bf16.msra.mxu0 0
    %1910 = vmatprep.subr.bf16.mxu0 0
    %1911 = vmatpush1.bf16.msra.mxu0 0
    %1912 = vmatprep.subr.bf16.mxu0 0
    %1913 = vmatpush1.bf16.msra.mxu0 0
    %1914 = vmatprep.subr.bf16.mxu0 0
    %1915 = vmatpush1.bf16.msra.mxu0 0
    %1916 = vmatprep.subr.bf16.mxu0 0
    %1917 = vmatpush1.bf16.msra.mxu0 0
    %1918 = vmatprep.subr.bf16.mxu0 0
    %1919 = vmatpush1.bf16.msra.mxu0 0
    %1920 = vmatprep.mubr.bf16.mxu0 0
    %1921 = vmatmul.mubr.bf16.gmra.mrb[0].mxu0 %v1525
    %v1922 = vpop.f32.mrb[0].mxu0
    %v1923 = vadd.f32 %v1874, %v1922
    %v1924 = vpop.f32.mrb[0].mxu0
    %v1925 = vpop.f32.mrb[0].mxu0
    %v1926 = vpop.f32.mrb[0].mxu0
    %1927 = vdwg.mxu0
    %v1928 = vld [vmem:[%s518] sm:$0xf]
    %v1929 = vld [vmem:[%s518 + $0x4] sm:$0xf]
    %v1930 = vld [vmem:[%s518 + $0x8] sm:$0xf]
    %v1931 = vld [vmem:[%s518 + $0xc] sm:$0xf]
    %v1932 = vld [vmem:[%s523] sm:$0x1]
    %v1934 = vlaneseq
    %v1935 = vshrl.u32 %v1934, 7
    %v1936 = vsub.s32 0, %v1935
    %v1937 = vrot.slane %v1932, %v1936
    %v1943 = vunpack.c.l.b16 %v1928
    %v1944 = vunpack.c.l.b16 %v1929
    %v1945 = vunpack.c.l.b16 %v1930
    %v1946 = vunpack.c.l.b16 %v1931
    %v1947 = vpack.c.b16 %v1944, %v1943
    %v1948 = vpack.c.b16 %v1946, %v1945
    %1951 = vmatprep.subr.bf16.mxu0 0
    %1952 = vmatpush1.bf16.msra.mxu0 %v1947
    %1953 = vmatprep.subr.bf16.mxu0 0
    %1954 = vmatpush1.bf16.msra.mxu0 %v1948
    %1955 = vmatprep.subr.bf16.mxu0 0
    %1956 = vmatpush1.bf16.msra.mxu0 0
    %1957 = vmatprep.subr.bf16.mxu0 0
    %1958 = vmatpush1.bf16.msra.mxu0 0
    %1959 = vmatprep.subr.bf16.mxu0 0
    %1960 = vmatpush1.bf16.msra.mxu0 0
    %1961 = vmatprep.subr.bf16.mxu0 0
    %1962 = vmatpush1.bf16.msra.mxu0 0
    %1963 = vmatprep.subr.bf16.mxu0 0
    %1964 = vmatpush1.bf16.msra.mxu0 0
    %1965 = vmatprep.subr.bf16.mxu0 0
    %1966 = vmatpush1.bf16.msra.mxu0 0
    %1967 = vmatprep.subr.bf16.mxu0 0
    %1968 = vmatpush1.bf16.msra.mxu0 0
    %1969 = vmatprep.subr.bf16.mxu0 0
    %1970 = vmatpush1.bf16.msra.mxu0 0
    %1971 = vmatprep.subr.bf16.mxu0 0
    %1972 = vmatpush1.bf16.msra.mxu0 0
    %1973 = vmatprep.subr.bf16.mxu0 0
    %1974 = vmatpush1.bf16.msra.mxu0 0
    %1975 = vmatprep.subr.bf16.mxu0 0
    %1976 = vmatpush1.bf16.msra.mxu0 0
    %1977 = vmatprep.subr.bf16.mxu0 0
    %1978 = vmatpush1.bf16.msra.mxu0 0
    %1979 = vmatprep.subr.bf16.mxu0 0
    %1980 = vmatpush1.bf16.msra.mxu0 0
    %1981 = vmatprep.subr.bf16.mxu0 0
    %1982 = vmatpush1.bf16.msra.mxu0 0
    %1983 = vmatprep.mubr.bf16.mxu0 0
    %1984 = vmatmul.mubr.bf16.gmra.mrb[0].mxu0 %v1525
    %v1985 = vpop.f32.mrb[0].mxu0
    %v1986 = vadd.f32 %v1937, %v1985
    %v1987 = vpop.f32.mrb[0].mxu0
    %v1988 = vpop.f32.mrb[0].mxu0
    %v1989 = vpop.f32.mrb[0].mxu0
    %1990 = vdwg.mxu0
    %v1991 = vpack.c.bf16 %v1860, %v1860
    %v1992 = vpack.c.bf16 %v1923, %v1923
    %v1994 = vsel %vm279, %v1991, 0
    %v1997 = vsel %vm279, %v1992, 0
    %1999 = vmatprep.subr.bf16.mxu0 0
    %2000 = vmatpush1.bf16.xpose.msra.mxu0 %v1997
    %2001 = vmatprep.subr.bf16.mxu0 0
    %2002 = vmatpush1.bf16.xpose.msra.mxu0 0
    %2003 = vmatprep.subr.bf16.mxu0 0
    %2004 = vmatpush1.bf16.xpose.msra.mxu0 0
    %2005 = vmatprep.subr.bf16.mxu0 0
    %2006 = vmatpush1.bf16.xpose.msra.mxu0 0
    %2007 = vmatprep.subr.bf16.mxu0 0
    %2008 = vmatpush1.bf16.xpose.msra.mxu0 0
    %2009 = vmatprep.subr.bf16.mxu0 0
    %2010 = vmatpush1.bf16.xpose.msra.mxu0 0
    %2011 = vmatprep.subr.bf16.mxu0 0
    %2012 = vmatpush1.bf16.xpose.msra.mxu0 0
    %2013 = vmatprep.subr.bf16.mxu0 0
    %2014 = vmatpush1.bf16.xpose.msra.mxu0 0
    %2015 = vmatprep.subr.bf16.mxu0 0
    %2016 = vmatpush1.bf16.xpose.msra.mxu0 0
    %2017 = vmatprep.subr.bf16.mxu0 0
    %2018 = vmatpush1.bf16.xpose.msra.mxu0 0
    %2019 = vmatprep.subr.bf16.mxu0 0
    %2020 = vmatpush1.bf16.xpose.msra.mxu0 0
    %2021 = vmatprep.subr.bf16.mxu0 0
    %2022 = vmatpush1.bf16.xpose.msra.mxu0 0
    %2023 = vmatprep.subr.bf16.mxu0 0
    %2024 = vmatpush1.bf16.xpose.msra.mxu0 0
    %2025 = vmatprep.subr.bf16.mxu0 0
    %2026 = vmatpush1.bf16.xpose.msra.mxu0 0
    %2027 = vmatprep.subr.bf16.mxu0 0
    %2028 = vmatpush1.bf16.xpose.msra.mxu0 0
    %2029 = vmatprep.subr.bf16.mxu0 0
    %2030 = vmatpush1.bf16.xpose.msra.mxu0 0
    %2031 = vmatprep.mubr.bf16.mxu0 0
    %2032 = vmatmul.mubr.bf16.gmra.mrb[0].mxu0 %v1994
    %v2033 = vpop.f32.mrb[0].mxu0
    %v2034 = vadd.f32 0.0, %v2033
    %v2035 = vpop.f32.mrb[0].mxu0
    %v2036 = vpop.f32.mrb[0].mxu0
    %v2037 = vpop.f32.mrb[0].mxu0
    %2038 = vdwg.mxu0
    %v2039 = vsel %vm279, %v2034, -inf
    %2040 = vmax.xlane.f32.xlu0 %v2039
    %v2041 = vpop.xlane.xlu0 %2040
    %v2042 = vsub.f32 %v2034, %v2041
    %v2043 = vmul.f32 %v2042, 1.442695
    %v2044 = vpow.pop %v2043
    %v2045 = vsel %vm279, %v2044, 0.0
    %2046 = vadd.xlane.f32.xlu0 %v2045
    %v2047 = vpop.xlane.xlu0 %2046
    %v2048 = vrcp.pop %v2047
    %v2049 = vmul.f32 %v2044, %v2048
    %v2050 = vpack.c.bf16 %v2049, %v2049
    %v2051 = vpack.c.bf16 %v1986, %v1986
    %v2053 = vsel %vm279, %v2050, 0
    %v2056 = vsel %vm342, %v2051, 0
    %2058 = vmatprep.subr.bf16.mxu0 0
    %2059 = vmatpush1.bf16.msra.mxu0 %v2056
    %2060 = vmatprep.subr.bf16.mxu0 0
    %2061 = vmatpush1.bf16.msra.mxu0 0
    %2062 = vmatprep.subr.bf16.mxu0 0
    %2063 = vmatpush1.bf16.msra.mxu0 0
    %2064 = vmatprep.subr.bf16.mxu0 0
    %2065 = vmatpush1.bf16.msra.mxu0 0
    %2066 = vmatprep.subr.bf16.mxu0 0
    %2067 = vmatpush1.bf16.msra.mxu0 0
    %2068 = vmatprep.subr.bf16.mxu0 0
    %2069 = vmatpush1.bf16.msra.mxu0 0
    %2070 = vmatprep.subr.bf16.mxu0 0
    %2071 = vmatpush1.bf16.msra.mxu0 0
    %2072 = vmatprep.subr.bf16.mxu0 0
    %2073 = vmatpush1.bf16.msra.mxu0 0
    %2074 = vmatprep.subr.bf16.mxu0 0
    %2075 = vmatpush1.bf16.msra.mxu0 0
    %2076 = vmatprep.subr.bf16.mxu0 0
    %2077 = vmatpush1.bf16.msra.mxu0 0
    %2078 = vmatprep.subr.bf16.mxu0 0
    %2079 = vmatpush1.bf16.msra.mxu0 0
    %2080 = vmatprep.subr.bf16.mxu0 0
    %2081 = vmatpush1.bf16.msra.mxu0 0
    %2082 = vmatprep.subr.bf16.mxu0 0
    %2083 = vmatpush1.bf16.msra.mxu0 0
    %2084 = vmatprep.subr.bf16.mxu0 0
    %2085 = vmatpush1.bf16.msra.mxu0 0
    %2086 = vmatprep.subr.bf16.mxu0 0
    %2087 = vmatpush1.bf16.msra.mxu0 0
    %2088 = vmatprep.subr.bf16.mxu0 0
    %2089 = vmatpush1.bf16.msra.mxu0 0
    %2090 = vmatprep.mubr.bf16.mxu0 0
    %2091 = vmatmul.mubr.bf16.gmra.mrb[0].mxu0 %v2053
    %v2092 = vpop.f32.mrb[0].mxu0
    %v2093 = vadd.f32 0.0, %v2092
    %v2094 = vpop.f32.mrb[0].mxu0
    %v2095 = vpop.f32.mrb[0].mxu0
    %v2096 = vpop.f32.mrb[0].mxu0
    %2097 = vdwg.mxu0
    %v2098 = vpack.c.bf16 %v2093, %v2093
    %v2099 = vld [vmem:[%s691] sm:$0xf]
    %v2101 = vsel %vm279, %v2098, 0
    %v2104 = vsel %vm342, %v2099, 0
    %2106 = vmatprep.subr.bf16.mxu0 0
    %2107 = vmatpush1.bf16.msra.mxu0 %v2104
    %2108 = vmatprep.subr.bf16.mxu0 0
    %2109 = vmatpush1.bf16.msra.mxu0 0
    %2110 = vmatprep.subr.bf16.mxu0 0
    %2111 = vmatpush1.bf16.msra.mxu0 0
    %2112 = vmatprep.subr.bf16.mxu0 0
    %2113 = vmatpush1.bf16.msra.mxu0 0
    %2114 = vmatprep.subr.bf16.mxu0 0
    %2115 = vmatpush1.bf16.msra.mxu0 0
    %2116 = vmatprep.subr.bf16.mxu0 0
    %2117 = vmatpush1.bf16.msra.mxu0 0
    %2118 = vmatprep.subr.bf16.mxu0 0
    %2119 = vmatpush1.bf16.msra.mxu0 0
    %2120 = vmatprep.subr.bf16.mxu0 0
    %2121 = vmatpush1.bf16.msra.mxu0 0
    %2122 = vmatprep.subr.bf16.mxu0 0
    %2123 = vmatpush1.bf16.msra.mxu0 0
    %2124 = vmatprep.subr.bf16.mxu0 0
    %2125 = vmatpush1.bf16.msra.mxu0 0
    %2126 = vmatprep.subr.bf16.mxu0 0
    %2127 = vmatpush1.bf16.msra.mxu0 0
    %2128 = vmatprep.subr.bf16.mxu0 0
    %2129 = vmatpush1.bf16.msra.mxu0 0
    %2130 = vmatprep.subr.bf16.mxu0 0
    %2131 = vmatpush1.bf16.msra.mxu0 0
    %2132 = vmatprep.subr.bf16.mxu0 0
    %2133 = vmatpush1.bf16.msra.mxu0 0
    %2134 = vmatprep.subr.bf16.mxu0 0
    %2135 = vmatpush1.bf16.msra.mxu0 0
    %2136 = vmatprep.subr.bf16.mxu0 0
    %2137 = vmatpush1.bf16.msra.mxu0 0
    %2138 = vmatprep.mubr.bf16.mxu0 0
    %2139 = vmatmul.mubr.bf16.gmra.mrb[0].mxu0 %v2101
    %v2140 = vpop.f32.mrb[0].mxu0
    %v2141 = vadd.f32 0.0, %v2140
    %v2142 = vpop.f32.mrb[0].mxu0
    %v2143 = vpop.f32.mrb[0].mxu0
    %v2144 = vpop.f32.mrb[0].mxu0
    %2145 = vdwg.mxu0
    %v2147 = vsel %vm279, %v1800, 0
    %v2150 = vsel %vm342, %v1801, 0
    %2152 = vmatprep.subr.bf16.mxu0 0
    %2153 = vmatpush1.bf16.msra.mxu0 %v2150
    %2154 = vmatprep.subr.bf16.mxu0 0
    %2155 = vmatpush1.bf16.msra.mxu0 0
    %2156 = vmatprep.subr.bf16.mxu0 0
    %2157 = vmatpush1.bf16.msra.mxu0 0
    %2158 = vmatprep.subr.bf16.mxu0 0
    %2159 = vmatpush1.bf16.msra.mxu0 0
    %2160 = vmatprep.subr.bf16.mxu0 0
    %2161 = vmatpush1.bf16.msra.mxu0 0
    %2162 = vmatprep.subr.bf16.mxu0 0
    %2163 = vmatpush1.bf16.msra.mxu0 0
    %2164 = vmatprep.subr.bf16.mxu0 0
    %2165 = vmatpush1.bf16.msra.mxu0 0
    %2166 = vmatprep.subr.bf16.mxu0 0
    %2167 = vmatpush1.bf16.msra.mxu0 0
    %2168 = vmatprep.subr.bf16.mxu0 0
    %2169 = vmatpush1.bf16.msra.mxu0 0
    %2170 = vmatprep.subr.bf16.mxu0 0
    %2171 = vmatpush1.bf16.msra.mxu0 0
    %2172 = vmatprep.subr.bf16.mxu0 0
    %2173 = vmatpush1.bf16.msra.mxu0 0
    %2174 = vmatprep.subr.bf16.mxu0 0
    %2175 = vmatpush1.bf16.msra.mxu0 0
    %2176 = vmatprep.subr.bf16.mxu0 0
    %2177 = vmatpush1.bf16.msra.mxu0 0
    %2178 = vmatprep.subr.bf16.mxu0 0
    %2179 = vmatpush1.bf16.msra.mxu0 0
    %2180 = vmatprep.subr.bf16.mxu0 0
    %2181 = vmatpush1.bf16.msra.mxu0 0
    %2182 = vmatprep.subr.bf16.mxu0 0
    %2183 = vmatpush1.bf16.msra.mxu0 0
    %2184 = vmatprep.mubr.bf16.mxu0 0
    %2185 = vmatmul.mubr.bf16.gmra.mrb[0].mxu0 %v2147
    %v2186 = vpop.f32.mrb[0].mxu0
    %v2187 = vadd.f32 %v2141, %v2186
    %v2188 = vpop.f32.mrb[0].mxu0
    %v2189 = vpop.f32.mrb[0].mxu0
    %v2190 = vpop.f32.mrb[0].mxu0
    %2191 = vdwg.mxu0
    %v2192 = vld [vmem:[%s785] sm:$0xf]
    %v2193 = vld [vmem:[%s785 + $0x4] sm:$0xf]
    %v2194 = vld [vmem:[%s785 + $0x8] sm:$0xf]
    %v2195 = vld [vmem:[%s785 + $0xc] sm:$0xf]
    %v2196 = vld [vmem:[%s790] sm:$0x1]
    %v2198 = vlaneseq
    %v2199 = vshrl.u32 %v2198, 7
    %v2200 = vsub.s32 0, %v2199
    %v2201 = vrot.slane %v2196, %v2200
    %v2207 = vunpack.c.l.b16 %v2192
    %v2208 = vunpack.c.l.b16 %v2193
    %v2209 = vunpack.c.l.b16 %v2194
    %v2210 = vunpack.c.l.b16 %v2195
    %v2211 = vpack.c.b16 %v2208, %v2207
    %v2212 = vpack.c.b16 %v2210, %v2209
    %2215 = vmatprep.subr.bf16.mxu0 0
    %2216 = vmatpush1.bf16.msra.mxu0 %v2211
    %2217 = vmatprep.subr.bf16.mxu0 0
    %2218 = vmatpush1.bf16.msra.mxu0 %v2212
    %2219 = vmatprep.subr.bf16.mxu0 0
    %2220 = vmatpush1.bf16.msra.mxu0 0
    %2221 = vmatprep.subr.bf16.mxu0 0
    %2222 = vmatpush1.bf16.msra.mxu0 0
    %2223 = vmatprep.subr.bf16.mxu0 0
    %2224 = vmatpush1.bf16.msra.mxu0 0
    %2225 = vmatprep.subr.bf16.mxu0 0
    %2226 = vmatpush1.bf16.msra.mxu0 0
    %2227 = vmatprep.subr.bf16.mxu0 0
    %2228 = vmatpush1.bf16.msra.mxu0 0
    %2229 = vmatprep.subr.bf16.mxu0 0
    %2230 = vmatpush1.bf16.msra.mxu0 0
    %2231 = vmatprep.subr.bf16.mxu0 0
    %2232 = vmatpush1.bf16.msra.mxu0 0
    %2233 = vmatprep.subr.bf16.mxu0 0
    %2234 = vmatpush1.bf16.msra.mxu0 0
    %2235 = vmatprep.subr.bf16.mxu0 0
    %2236 = vmatpush1.bf16.msra.mxu0 0
    %2237 = vmatprep.subr.bf16.mxu0 0
    %2238 = vmatpush1.bf16.msra.mxu0 0
    %2239 = vmatprep.subr.bf16.mxu0 0
    %2240 = vmatpush1.bf16.msra.mxu0 0
    %2241 = vmatprep.subr.bf16.mxu0 0
    %2242 = vmatpush1.bf16.msra.mxu0 0
    %2243 = vmatprep.subr.bf16.mxu0 0
    %2244 = vmatpush1.bf16.msra.mxu0 0
    %2245 = vmatprep.subr.bf16.mxu0 0
    %2246 = vmatpush1.bf16.msra.mxu0 0
    %2247 = vmatprep.mubr.bf16.mxu0 0
    %2248 = vmatmul.mubr.bf16.gmra.mrb[0].mxu0 %v1525
    %v2249 = vpop.f32.mrb[0].mxu0
    %v2250 = vadd.f32 %v2201, %v2249
    %v2251 = vpop.f32.mrb[0].mxu0
    %v2252 = vpop.f32.mrb[0].mxu0
    %v2253 = vpop.f32.mrb[0].mxu0
    %2254 = vdwg.mxu0
    %v2255 = vld [vmem:[%s850] sm:$0xf]
    %v2256 = vld [vmem:[%s850 + $0x4] sm:$0xf]
    %v2257 = vld [vmem:[%s850 + $0x8] sm:$0xf]
    %v2258 = vld [vmem:[%s850 + $0xc] sm:$0xf]
    %v2259 = vld [vmem:[%s855] sm:$0x1]
    %v2261 = vlaneseq
    %v2262 = vshrl.u32 %v2261, 7
    %v2263 = vsub.s32 0, %v2262
    %v2264 = vrot.slane %v2259, %v2263
    %v2270 = vunpack.c.l.b16 %v2255
    %v2271 = vunpack.c.l.b16 %v2256
    %v2272 = vunpack.c.l.b16 %v2257
    %v2273 = vunpack.c.l.b16 %v2258
    %v2274 = vpack.c.b16 %v2271, %v2270
    %v2275 = vpack.c.b16 %v2273, %v2272
    %2278 = vmatprep.subr.bf16.mxu0 0
    %2279 = vmatpush1.bf16.msra.mxu0 %v2274
    %2280 = vmatprep.subr.bf16.mxu0 0
    %2281 = vmatpush1.bf16.msra.mxu0 %v2275
    %2282 = vmatprep.subr.bf16.mxu0 0
    %2283 = vmatpush1.bf16.msra.mxu0 0
    %2284 = vmatprep.subr.bf16.mxu0 0
    %2285 = vmatpush1.bf16.msra.mxu0 0
    %2286 = vmatprep.subr.bf16.mxu0 0
    %2287 = vmatpush1.bf16.msra.mxu0 0
    %2288 = vmatprep.subr.bf16.mxu0 0
    %2289 = vmatpush1.bf16.msra.mxu0 0
    %2290 = vmatprep.subr.bf16.mxu0 0
    %2291 = vmatpush1.bf16.msra.mxu0 0
    %2292 = vmatprep.subr.bf16.mxu0 0
    %2293 = vmatpush1.bf16.msra.mxu0 0
    %2294 = vmatprep.subr.bf16.mxu0 0
    %2295 = vmatpush1.bf16.msra.mxu0 0
    %2296 = vmatprep.subr.bf16.mxu0 0
    %2297 = vmatpush1.bf16.msra.mxu0 0
    %2298 = vmatprep.subr.bf16.mxu0 0
    %2299 = vmatpush1.bf16.msra.mxu0 0
    %2300 = vmatprep.subr.bf16.mxu0 0
    %2301 = vmatpush1.bf16.msra.mxu0 0
    %2302 = vmatprep.subr.bf16.mxu0 0
    %2303 = vmatpush1.bf16.msra.mxu0 0
    %2304 = vmatprep.subr.bf16.mxu0 0
    %2305 = vmatpush1.bf16.msra.mxu0 0
    %2306 = vmatprep.subr.bf16.mxu0 0
    %2307 = vmatpush1.bf16.msra.mxu0 0
    %2308 = vmatprep.subr.bf16.mxu0 0
    %2309 = vmatpush1.bf16.msra.mxu0 0
    %2310 = vmatprep.mubr.bf16.mxu0 0
    %2311 = vmatmul.mubr.bf16.gmra.mrb[0].mxu0 %v1525
    %v2312 = vpop.f32.mrb[0].mxu0
    %v2313 = vadd.f32 %v2264, %v2312
    %v2314 = vpop.f32.mrb[0].mxu0
    %v2315 = vpop.f32.mrb[0].mxu0
    %v2316 = vpop.f32.mrb[0].mxu0
    %2317 = vdwg.mxu0
    %v2318 = vld [vmem:[%s915] sm:$0xf]
    %v2319 = vld [vmem:[%s915 + $0x4] sm:$0xf]
    %v2320 = vld [vmem:[%s915 + $0x8] sm:$0xf]
    %v2321 = vld [vmem:[%s915 + $0xc] sm:$0xf]
    %v2322 = vld [vmem:[%s920] sm:$0x1]
    %v2324 = vlaneseq
    %v2325 = vshrl.u32 %v2324, 7
    %v2326 = vsub.s32 0, %v2325
    %v2327 = vrot.slane %v2322, %v2326
    %v2333 = vunpack.c.l.b16 %v2318
    %v2334 = vunpack.c.l.b16 %v2319
    %v2335 = vunpack.c.l.b16 %v2320
    %v2336 = vunpack.c.l.b16 %v2321
    %v2337 = vpack.c.b16 %v2334, %v2333
    %v2338 = vpack.c.b16 %v2336, %v2335
    %2341 = vmatprep.subr.bf16.mxu0 0
    %2342 = vmatpush1.bf16.msra.mxu0 %v2337
    %2343 = vmatprep.subr.bf16.mxu0 0
    %2344 = vmatpush1.bf16.msra.mxu0 %v2338
    %2345 = vmatprep.subr.bf16.mxu0 0
    %2346 = vmatpush1.bf16.msra.mxu0 0
    %2347 = vmatprep.subr.bf16.mxu0 0
    %2348 = vmatpush1.bf16.msra.mxu0 0
    %2349 = vmatprep.subr.bf16.mxu0 0
    %2350 = vmatpush1.bf16.msra.mxu0 0
    %2351 = vmatprep.subr.bf16.mxu0 0
    %2352 = vmatpush1.bf16.msra.mxu0 0
    %2353 = vmatprep.subr.bf16.mxu0 0
    %2354 = vmatpush1.bf16.msra.mxu0 0
    %2355 = vmatprep.subr.bf16.mxu0 0
    %2356 = vmatpush1.bf16.msra.mxu0 0
    %2357 = vmatprep.subr.bf16.mxu0 0
    %2358 = vmatpush1.bf16.msra.mxu0 0
    %2359 = vmatprep.subr.bf16.mxu0 0
    %2360 = vmatpush1.bf16.msra.mxu0 0
    %2361 = vmatprep.subr.bf16.mxu0 0
    %2362 = vmatpush1.bf16.msra.mxu0 0
    %2363 = vmatprep.subr.bf16.mxu0 0
    %2364 = vmatpush1.bf16.msra.mxu0 0
    %2365 = vmatprep.subr.bf16.mxu0 0
    %2366 = vmatpush1.bf16.msra.mxu0 0
    %2367 = vmatprep.subr.bf16.mxu0 0
    %2368 = vmatpush1.bf16.msra.mxu0 0
    %2369 = vmatprep.subr.bf16.mxu0 0
    %2370 = vmatpush1.bf16.msra.mxu0 0
    %2371 = vmatprep.subr.bf16.mxu0 0
    %2372 = vmatpush1.bf16.msra.mxu0 0
    %2373 = vmatprep.mubr.bf16.mxu0 0
    %2374 = vmatmul.mubr.bf16.gmra.mrb[0].mxu0 %v1525
    %v2375 = vpop.f32.mrb[0].mxu0
    %v2376 = vadd.f32 %v2327, %v2375
    %v2377 = vpop.f32.mrb[0].mxu0
    %v2378 = vpop.f32.mrb[0].mxu0
    %v2379 = vpop.f32.mrb[0].mxu0
    %2380 = vdwg.mxu0
    %v2381 = vpack.c.bf16 %v2250, %v2250
    %v2382 = vpack.c.bf16 %v2313, %v2313
    %v2384 = vsel %vm279, %v2381, 0
    %v2387 = vsel %vm279, %v2382, 0
    %2389 = vmatprep.subr.bf16.mxu0 0
    %2390 = vmatpush1.bf16.xpose.msra.mxu0 %v2387
    %2391 = vmatprep.subr.bf16.mxu0 0
    %2392 = vmatpush1.bf16.xpose.msra.mxu0 0
    %2393 = vmatprep.subr.bf16.mxu0 0
    %2394 = vmatpush1.bf16.xpose.msra.mxu0 0
    %2395 = vmatprep.subr.bf16.mxu0 0
    %2396 = vmatpush1.bf16.xpose.msra.mxu0 0
    %2397 = vmatprep.subr.bf16.mxu0 0
    %2398 = vmatpush1.bf16.xpose.msra.mxu0 0
    %2399 = vmatprep.subr.bf16.mxu0 0
    %2400 = vmatpush1.bf16.xpose.msra.mxu0 0
    %2401 = vmatprep.subr.bf16.mxu0 0
    %2402 = vmatpush1.bf16.xpose.msra.mxu0 0
    %2403 = vmatprep.subr.bf16.mxu0 0
    %2404 = vmatpush1.bf16.xpose.msra.mxu0 0
    %2405 = vmatprep.subr.bf16.mxu0 0
    %2406 = vmatpush1.bf16.xpose.msra.mxu0 0
    %2407 = vmatprep.subr.bf16.mxu0 0
    %2408 = vmatpush1.bf16.xpose.msra.mxu0 0
    %2409 = vmatprep.subr.bf16.mxu0 0
    %2410 = vmatpush1.bf16.xpose.msra.mxu0 0
    %2411 = vmatprep.subr.bf16.mxu0 0
    %2412 = vmatpush1.bf16.xpose.msra.mxu0 0
    %2413 = vmatprep.subr.bf16.mxu0 0
    %2414 = vmatpush1.bf16.xpose.msra.mxu0 0
    %2415 = vmatprep.subr.bf16.mxu0 0
    %2416 = vmatpush1.bf16.xpose.msra.mxu0 0
    %2417 = vmatprep.subr.bf16.mxu0 0
    %2418 = vmatpush1.bf16.xpose.msra.mxu0 0
    %2419 = vmatprep.subr.bf16.mxu0 0
    %2420 = vmatpush1.bf16.xpose.msra.mxu0 0
    %2421 = vmatprep.mubr.bf16.mxu0 0
    %2422 = vmatmul.mubr.bf16.gmra.mrb[0].mxu0 %v2384
    %v2423 = vpop.f32.mrb[0].mxu0
    %v2424 = vadd.f32 0.0, %v2423
    %v2425 = vpop.f32.mrb[0].mxu0
    %v2426 = vpop.f32.mrb[0].mxu0
    %v2427 = vpop.f32.mrb[0].mxu0
    %2428 = vdwg.mxu0
    %v2429 = vsel %vm279, %v2424, -inf
    %2430 = vmax.xlane.f32.xlu0 %v2429
    %v2431 = vpop.xlane.xlu0 %2430
    %v2432 = vsub.f32 %v2424, %v2431
    %v2433 = vmul.f32 %v2432, 1.442695
    %v2434 = vpow.pop %v2433
    %v2435 = vsel %vm279, %v2434, 0.0
    %2436 = vadd.xlane.f32.xlu0 %v2435
    %v2437 = vpop.xlane.xlu0 %2436
    %v2438 = vrcp.pop %v2437
    %v2439 = vmul.f32 %v2434, %v2438
    %v2440 = vpack.c.bf16 %v2439, %v2439
    %v2441 = vpack.c.bf16 %v2376, %v2376
    %v2443 = vsel %vm279, %v2440, 0
    %v2446 = vsel %vm342, %v2441, 0
    %2448 = vmatprep.subr.bf16.mxu0 0
    %2449 = vmatpush1.bf16.msra.mxu0 %v2446
    %2450 = vmatprep.subr.bf16.mxu0 0
    %2451 = vmatpush1.bf16.msra.mxu0 0
    %2452 = vmatprep.subr.bf16.mxu0 0
    %2453 = vmatpush1.bf16.msra.mxu0 0
    %2454 = vmatprep.subr.bf16.mxu0 0
    %2455 = vmatpush1.bf16.msra.mxu0 0
    %2456 = vmatprep.subr.bf16.mxu0 0
    %2457 = vmatpush1.bf16.msra.mxu0 0
    %2458 = vmatprep.subr.bf16.mxu0 0
    %2459 = vmatpush1.bf16.msra.mxu0 0
    %2460 = vmatprep.subr.bf16.mxu0 0
    %2461 = vmatpush1.bf16.msra.mxu0 0
    %2462 = vmatprep.subr.bf16.mxu0 0
    %2463 = vmatpush1.bf16.msra.mxu0 0
    %2464 = vmatprep.subr.bf16.mxu0 0
    %2465 = vmatpush1.bf16.msra.mxu0 0
    %2466 = vmatprep.subr.bf16.mxu0 0
    %2467 = vmatpush1.bf16.msra.mxu0 0
    %2468 = vmatprep.subr.bf16.mxu0 0
    %2469 = vmatpush1.bf16.msra.mxu0 0
    %2470 = vmatprep.subr.bf16.mxu0 0
    %2471 = vmatpush1.bf16.msra.mxu0 0
    %2472 = vmatprep.subr.bf16.mxu0 0
    %2473 = vmatpush1.bf16.msra.mxu0 0
    %2474 = vmatprep.subr.bf16.mxu0 0
    %2475 = vmatpush1.bf16.msra.mxu0 0
    %2476 = vmatprep.subr.bf16.mxu0 0
    %2477 = vmatpush1.bf16.msra.mxu0 0
    %2478 = vmatprep.subr.bf16.mxu0 0
    %2479 = vmatpush1.bf16.msra.mxu0 0
    %2480 = vmatprep.mubr.bf16.mxu0 0
    %2481 = vmatmul.mubr.bf16.gmra.mrb[0].mxu0 %v2443
    %v2482 = vpop.f32.mrb[0].mxu0
    %v2483 = vadd.f32 0.0, %v2482
    %v2484 = vpop.f32.mrb[0].mxu0
    %v2485 = vpop.f32.mrb[0].mxu0
    %v2486 = vpop.f32.mrb[0].mxu0
    %2487 = vdwg.mxu0
    %v2488 = vpack.c.bf16 %v2483, %v2483
    %v2489 = vld [vmem:[%s1088] sm:$0xf]
    %v2491 = vsel %vm279, %v2488, 0
    %v2494 = vsel %vm342, %v2489, 0
    %2496 = vmatprep.subr.bf16.mxu0 0
    %2497 = vmatpush1.bf16.msra.mxu0 %v2494
    %2498 = vmatprep.subr.bf16.mxu0 0
    %2499 = vmatpush1.bf16.msra.mxu0 0
    %2500 = vmatprep.subr.bf16.mxu0 0
    %2501 = vmatpush1.bf16.msra.mxu0 0
    %2502 = vmatprep.subr.bf16.mxu0 0
    %2503 = vmatpush1.bf16.msra.mxu0 0
    %2504 = vmatprep.subr.bf16.mxu0 0
    %2505 = vmatpush1.bf16.msra.mxu0 0
    %2506 = vmatprep.subr.bf16.mxu0 0
    %2507 = vmatpush1.bf16.msra.mxu0 0
    %2508 = vmatprep.subr.bf16.mxu0 0
    %2509 = vmatpush1.bf16.msra.mxu0 0
    %2510 = vmatprep.subr.bf16.mxu0 0
    %2511 = vmatpush1.bf16.msra.mxu0 0
    %2512 = vmatprep.subr.bf16.mxu0 0
    %2513 = vmatpush1.bf16.msra.mxu0 0
    %2514 = vmatprep.subr.bf16.mxu0 0
    %2515 = vmatpush1.bf16.msra.mxu0 0
    %2516 = vmatprep.subr.bf16.mxu0 0
    %2517 = vmatpush1.bf16.msra.mxu0 0
    %2518 = vmatprep.subr.bf16.mxu0 0
    %2519 = vmatpush1.bf16.msra.mxu0 0
    %2520 = vmatprep.subr.bf16.mxu0 0
    %2521 = vmatpush1.bf16.msra.mxu0 0
    %2522 = vmatprep.subr.bf16.mxu0 0
    %2523 = vmatpush1.bf16.msra.mxu0 0
    %2524 = vmatprep.subr.bf16.mxu0 0
    %2525 = vmatpush1.bf16.msra.mxu0 0
    %2526 = vmatprep.subr.bf16.mxu0 0
    %2527 = vmatpush1.bf16.msra.mxu0 0
    %2528 = vmatprep.mubr.bf16.mxu0 0
    %2529 = vmatmul.mubr.bf16.gmra.mrb[0].mxu0 %v2491
    %v2530 = vpop.f32.mrb[0].mxu0
    %v2531 = vadd.f32 0.0, %v2530
    %v2532 = vpop.f32.mrb[0].mxu0
    %v2533 = vpop.f32.mrb[0].mxu0
    %v2534 = vpop.f32.mrb[0].mxu0
    %2535 = vdwg.mxu0
    %v2536 = vadd.f32 %v2187, %v2531
    %v2537 = vld [vmem:[%s1137] sm:$0xf]
    %v2538 = vld [vmem:[%s1137 + $0x4] sm:$0xf]
    %v2539 = vld [vmem:[%s1137 + $0x8] sm:$0xf]
    %v2540 = vld [vmem:[%s1137 + $0xc] sm:$0xf]
    %v2541 = vld [vmem:[%s1142] sm:$0x1]
    %v2543 = vlaneseq
    %v2544 = vshrl.u32 %v2543, 7
    %v2545 = vsub.s32 0, %v2544
    %v2546 = vrot.slane %v2541, %v2545
    %v2552 = vunpack.c.l.b16 %v2537
    %v2553 = vunpack.c.l.b16 %v2538
    %v2554 = vunpack.c.l.b16 %v2539
    %v2555 = vunpack.c.l.b16 %v2540
    %v2556 = vpack.c.b16 %v2553, %v2552
    %v2557 = vpack.c.b16 %v2555, %v2554
    %2560 = vmatprep.subr.bf16.mxu0 0
    %2561 = vmatpush1.bf16.msra.mxu0 %v2556
    %2562 = vmatprep.subr.bf16.mxu0 0
    %2563 = vmatpush1.bf16.msra.mxu0 %v2557
    %2564 = vmatprep.subr.bf16.mxu0 0
    %2565 = vmatpush1.bf16.msra.mxu0 0
    %2566 = vmatprep.subr.bf16.mxu0 0
    %2567 = vmatpush1.bf16.msra.mxu0 0
    %2568 = vmatprep.subr.bf16.mxu0 0
    %2569 = vmatpush1.bf16.msra.mxu0 0
    %2570 = vmatprep.subr.bf16.mxu0 0
    %2571 = vmatpush1.bf16.msra.mxu0 0
    %2572 = vmatprep.subr.bf16.mxu0 0
    %2573 = vmatpush1.bf16.msra.mxu0 0
    %2574 = vmatprep.subr.bf16.mxu0 0
    %2575 = vmatpush1.bf16.msra.mxu0 0
    %2576 = vmatprep.subr.bf16.mxu0 0
    %2577 = vmatpush1.bf16.msra.mxu0 0
    %2578 = vmatprep.subr.bf16.mxu0 0
    %2579 = vmatpush1.bf16.msra.mxu0 0
    %2580 = vmatprep.subr.bf16.mxu0 0
    %2581 = vmatpush1.bf16.msra.mxu0 0
    %2582 = vmatprep.subr.bf16.mxu0 0
    %2583 = vmatpush1.bf16.msra.mxu0 0
    %2584 = vmatprep.subr.bf16.mxu0 0
    %2585 = vmatpush1.bf16.msra.mxu0 0
    %2586 = vmatprep.subr.bf16.mxu0 0
    %2587 = vmatpush1.bf16.msra.mxu0 0
    %2588 = vmatprep.subr.bf16.mxu0 0
    %2589 = vmatpush1.bf16.msra.mxu0 0
    %2590 = vmatprep.subr.bf16.mxu0 0
    %2591 = vmatpush1.bf16.msra.mxu0 0
    %2592 = vmatprep.mubr.bf16.mxu0 0
    %2593 = vmatmul.mubr.bf16.gmra.mrb[0].mxu0 %v1525
    %v2594 = vpop.f32.mrb[0].mxu0
    %v2595 = vadd.f32 %v2546, %v2594
    %v2596 = vpop.f32.mrb[0].mxu0
    %v2597 = vpop.f32.mrb[0].mxu0
    %v2598 = vpop.f32.mrb[0].mxu0
    %2599 = vdwg.mxu0
    %v2600 = vld [vmem:[%s1202] sm:$0xf]
    %v2601 = vld [vmem:[%s1202 + $0x4] sm:$0xf]
    %v2602 = vld [vmem:[%s1202 + $0x8] sm:$0xf]
    %v2603 = vld [vmem:[%s1202 + $0xc] sm:$0xf]
    %v2604 = vld [vmem:[%s1207] sm:$0x1]
    %v2606 = vlaneseq
    %v2607 = vshrl.u32 %v2606, 7
    %v2608 = vsub.s32 0, %v2607
    %v2609 = vrot.slane %v2604, %v2608
    %v2615 = vunpack.c.l.b16 %v2600
    %v2616 = vunpack.c.l.b16 %v2601
    %v2617 = vunpack.c.l.b16 %v2602
    %v2618 = vunpack.c.l.b16 %v2603
    %v2619 = vpack.c.b16 %v2616, %v2615
    %v2620 = vpack.c.b16 %v2618, %v2617
    %2623 = vmatprep.subr.bf16.mxu0 0
    %2624 = vmatpush1.bf16.msra.mxu0 %v2619
    %2625 = vmatprep.subr.bf16.mxu0 0
    %2626 = vmatpush1.bf16.msra.mxu0 %v2620
    %2627 = vmatprep.subr.bf16.mxu0 0
    %2628 = vmatpush1.bf16.msra.mxu0 0
    %2629 = vmatprep.subr.bf16.mxu0 0
    %2630 = vmatpush1.bf16.msra.mxu0 0
    %2631 = vmatprep.subr.bf16.mxu0 0
    %2632 = vmatpush1.bf16.msra.mxu0 0
    %2633 = vmatprep.subr.bf16.mxu0 0
    %2634 = vmatpush1.bf16.msra.mxu0 0
    %2635 = vmatprep.subr.bf16.mxu0 0
    %2636 = vmatpush1.bf16.msra.mxu0 0
    %2637 = vmatprep.subr.bf16.mxu0 0
    %2638 = vmatpush1.bf16.msra.mxu0 0
    %2639 = vmatprep.subr.bf16.mxu0 0
    %2640 = vmatpush1.bf16.msra.mxu0 0
    %2641 = vmatprep.subr.bf16.mxu0 0
    %2642 = vmatpush1.bf16.msra.mxu0 0
    %2643 = vmatprep.subr.bf16.mxu0 0
    %2644 = vmatpush1.bf16.msra.mxu0 0
    %2645 = vmatprep.subr.bf16.mxu0 0
    %2646 = vmatpush1.bf16.msra.mxu0 0
    %2647 = vmatprep.subr.bf16.mxu0 0
    %2648 = vmatpush1.bf16.msra.mxu0 0
    %2649 = vmatprep.subr.bf16.mxu0 0
    %2650 = vmatpush1.bf16.msra.mxu0 0
    %2651 = vmatprep.subr.bf16.mxu0 0
    %2652 = vmatpush1.bf16.msra.mxu0 0
    %2653 = vmatprep.subr.bf16.mxu0 0
    %2654 = vmatpush1.bf16.msra.mxu0 0
    %2655 = vmatprep.mubr.bf16.mxu0 0
    %2656 = vmatmul.mubr.bf16.gmra.mrb[0].mxu0 %v1525
    %v2657 = vpop.f32.mrb[0].mxu0
    %v2658 = vadd.f32 %v2609, %v2657
    %v2659 = vpop.f32.mrb[0].mxu0
    %v2660 = vpop.f32.mrb[0].mxu0
    %v2661 = vpop.f32.mrb[0].mxu0
    %2662 = vdwg.mxu0
    %v2663 = vld [vmem:[%s1267] sm:$0xf]
    %v2664 = vld [vmem:[%s1267 + $0x4] sm:$0xf]
    %v2665 = vld [vmem:[%s1267 + $0x8] sm:$0xf]
    %v2666 = vld [vmem:[%s1267 + $0xc] sm:$0xf]
    %v2667 = vld [vmem:[%s1272] sm:$0x1]
    %v2669 = vlaneseq
    %v2670 = vshrl.u32 %v2669, 7
    %v2671 = vsub.s32 0, %v2670
    %v2672 = vrot.slane %v2667, %v2671
    %v2678 = vunpack.c.l.b16 %v2663
    %v2679 = vunpack.c.l.b16 %v2664
    %v2680 = vunpack.c.l.b16 %v2665
    %v2681 = vunpack.c.l.b16 %v2666
    %v2682 = vpack.c.b16 %v2679, %v2678
    %v2683 = vpack.c.b16 %v2681, %v2680
    %2686 = vmatprep.subr.bf16.mxu0 0
    %2687 = vmatpush1.bf16.msra.mxu0 %v2682
    %2688 = vmatprep.subr.bf16.mxu0 0
    %2689 = vmatpush1.bf16.msra.mxu0 %v2683
    %2690 = vmatprep.subr.bf16.mxu0 0
    %2691 = vmatpush1.bf16.msra.mxu0 0
    %2692 = vmatprep.subr.bf16.mxu0 0
    %2693 = vmatpush1.bf16.msra.mxu0 0
    %2694 = vmatprep.subr.bf16.mxu0 0
    %2695 = vmatpush1.bf16.msra.mxu0 0
    %2696 = vmatprep.subr.bf16.mxu0 0
    %2697 = vmatpush1.bf16.msra.mxu0 0
    %2698 = vmatprep.subr.bf16.mxu0 0
    %2699 = vmatpush1.bf16.msra.mxu0 0
    %2700 = vmatprep.subr.bf16.mxu0 0
    %2701 = vmatpush1.bf16.msra.mxu0 0
    %2702 = vmatprep.subr.bf16.mxu0 0
    %2703 = vmatpush1.bf16.msra.mxu0 0
    %2704 = vmatprep.subr.bf16.mxu0 0
    %2705 = vmatpush1.bf16.msra.mxu0 0
    %2706 = vmatprep.subr.bf16.mxu0 0
    %2707 = vmatpush1.bf16.msra.mxu0 0
    %2708 = vmatprep.subr.bf16.mxu0 0
    %2709 = vmatpush1.bf16.msra.mxu0 0
    %2710 = vmatprep.subr.bf16.mxu0 0
    %2711 = vmatpush1.bf16.msra.mxu0 0
    %2712 = vmatprep.subr.bf16.mxu0 0
    %2713 = vmatpush1.bf16.msra.mxu0 0
    %2714 = vmatprep.subr.bf16.mxu0 0
    %2715 = vmatpush1.bf16.msra.mxu0 0
    %2716 = vmatprep.subr.bf16.mxu0 0
    %2717 = vmatpush1.bf16.msra.mxu0 0
    %2718 = vmatprep.mubr.bf16.mxu0 0
    %2719 = vmatmul.mubr.bf16.gmra.mrb[0].mxu0 %v1525
    %v2720 = vpop.f32.mrb[0].mxu0
    %v2721 = vadd.f32 %v2672, %v2720
    %v2722 = vpop.f32.mrb[0].mxu0
    %v2723 = vpop.f32.mrb[0].mxu0
    %v2724 = vpop.f32.mrb[0].mxu0
    %2725 = vdwg.mxu0
    %v2726 = vpack.c.bf16 %v2595, %v2595
    %v2727 = vpack.c.bf16 %v2658, %v2658
    %v2729 = vsel %vm279, %v2726, 0
    %v2732 = vsel %vm279, %v2727, 0
    %2734 = vmatprep.subr.bf16.mxu0 0
    %2735 = vmatpush1.bf16.xpose.msra.mxu0 %v2732
    %2736 = vmatprep.subr.bf16.mxu0 0
    %2737 = vmatpush1.bf16.xpose.msra.mxu0 0
    %2738 = vmatprep.subr.bf16.mxu0 0
    %2739 = vmatpush1.bf16.xpose.msra.mxu0 0
    %2740 = vmatprep.subr.bf16.mxu0 0
    %2741 = vmatpush1.bf16.xpose.msra.mxu0 0
    %2742 = vmatprep.subr.bf16.mxu0 0
    %2743 = vmatpush1.bf16.xpose.msra.mxu0 0
    %2744 = vmatprep.subr.bf16.mxu0 0
    %2745 = vmatpush1.bf16.xpose.msra.mxu0 0
    %2746 = vmatprep.subr.bf16.mxu0 0
    %2747 = vmatpush1.bf16.xpose.msra.mxu0 0
    %2748 = vmatprep.subr.bf16.mxu0 0
    %2749 = vmatpush1.bf16.xpose.msra.mxu0 0
    %2750 = vmatprep.subr.bf16.mxu0 0
    %2751 = vmatpush1.bf16.xpose.msra.mxu0 0
    %2752 = vmatprep.subr.bf16.mxu0 0
    %2753 = vmatpush1.bf16.xpose.msra.mxu0 0
    %2754 = vmatprep.subr.bf16.mxu0 0
    %2755 = vmatpush1.bf16.xpose.msra.mxu0 0
    %2756 = vmatprep.subr.bf16.mxu0 0
    %2757 = vmatpush1.bf16.xpose.msra.mxu0 0
    %2758 = vmatprep.subr.bf16.mxu0 0
    %2759 = vmatpush1.bf16.xpose.msra.mxu0 0
    %2760 = vmatprep.subr.bf16.mxu0 0
    %2761 = vmatpush1.bf16.xpose.msra.mxu0 0
    %2762 = vmatprep.subr.bf16.mxu0 0
    %2763 = vmatpush1.bf16.xpose.msra.mxu0 0
    %2764 = vmatprep.subr.bf16.mxu0 0
    %2765 = vmatpush1.bf16.xpose.msra.mxu0 0
    %2766 = vmatprep.mubr.bf16.mxu0 0
    %2767 = vmatmul.mubr.bf16.gmra.mrb[0].mxu0 %v2729
    %v2768 = vpop.f32.mrb[0].mxu0
    %v2769 = vadd.f32 0.0, %v2768
    %v2770 = vpop.f32.mrb[0].mxu0
    %v2771 = vpop.f32.mrb[0].mxu0
    %v2772 = vpop.f32.mrb[0].mxu0
    %2773 = vdwg.mxu0
    %v2774 = vsel %vm279, %v2769, -inf
    %2775 = vmax.xlane.f32.xlu0 %v2774
    %v2776 = vpop.xlane.xlu0 %2775
    %v2777 = vsub.f32 %v2769, %v2776
    %v2778 = vmul.f32 %v2777, 1.442695
    %v2779 = vpow.pop %v2778
    %v2780 = vsel %vm279, %v2779, 0.0
    %2781 = vadd.xlane.f32.xlu0 %v2780
    %v2782 = vpop.xlane.xlu0 %2781
    %v2783 = vrcp.pop %v2782
    %v2784 = vmul.f32 %v2779, %v2783
    %v2785 = vpack.c.bf16 %v2784, %v2784
    %v2786 = vpack.c.bf16 %v2721, %v2721
    %v2788 = vsel %vm279, %v2785, 0
    %v2791 = vsel %vm342, %v2786, 0
    %2793 = vmatprep.subr.bf16.mxu0 0
    %2794 = vmatpush1.bf16.msra.mxu0 %v2791
    %2795 = vmatprep.subr.bf16.mxu0 0
    %2796 = vmatpush1.bf16.msra.mxu0 0
    %2797 = vmatprep.subr.bf16.mxu0 0
    %2798 = vmatpush1.bf16.msra.mxu0 0
    %2799 = vmatprep.subr.bf16.mxu0 0
    %2800 = vmatpush1.bf16.msra.mxu0 0
    %2801 = vmatprep.subr.bf16.mxu0 0
    %2802 = vmatpush1.bf16.msra.mxu0 0
    %2803 = vmatprep.subr.bf16.mxu0 0
    %2804 = vmatpush1.bf16.msra.mxu0 0
    %2805 = vmatprep.subr.bf16.mxu0 0
    %2806 = vmatpush1.bf16.msra.mxu0 0
    %2807 = vmatprep.subr.bf16.mxu0 0
    %2808 = vmatpush1.bf16.msra.mxu0 0
    %2809 = vmatprep.subr.bf16.mxu0 0
    %2810 = vmatpush1.bf16.msra.mxu0 0
    %2811 = vmatprep.subr.bf16.mxu0 0
    %2812 = vmatpush1.bf16.msra.mxu0 0
    %2813 = vmatprep.subr.bf16.mxu0 0
    %2814 = vmatpush1.bf16.msra.mxu0 0
    %2815 = vmatprep.subr.bf16.mxu0 0
    %2816 = vmatpush1.bf16.msra.mxu0 0
    %2817 = vmatprep.subr.bf16.mxu0 0
    %2818 = vmatpush1.bf16.msra.mxu0 0
    %2819 = vmatprep.subr.bf16.mxu0 0
    %2820 = vmatpush1.bf16.msra.mxu0 0
    %2821 = vmatprep.subr.bf16.mxu0 0
    %2822 = vmatpush1.bf16.msra.mxu0 0
    %2823 = vmatprep.subr.bf16.mxu0 0
    %2824 = vmatpush1.bf16.msra.mxu0 0
    %2825 = vmatprep.mubr.bf16.mxu0 0
    %2826 = vmatmul.mubr.bf16.gmra.mrb[0].mxu0 %v2788
    %v2827 = vpop.f32.mrb[0].mxu0
    %v2828 = vadd.f32 0.0, %v2827
    %v2829 = vpop.f32.mrb[0].mxu0
    %v2830 = vpop.f32.mrb[0].mxu0
    %v2831 = vpop.f32.mrb[0].mxu0
    %2832 = vdwg.mxu0
    %v2833 = vpack.c.bf16 %v2828, %v2828
    %v2834 = vld [vmem:[%s1440] sm:$0xf]
    %v2836 = vsel %vm279, %v2833, 0
    %v2839 = vsel %vm342, %v2834, 0
    %2841 = vmatprep.subr.bf16.mxu0 0
    %2842 = vmatpush1.bf16.msra.mxu0 %v2839
    %2843 = vmatprep.subr.bf16.mxu0 0
    %2844 = vmatpush1.bf16.msra.mxu0 0
    %2845 = vmatprep.subr.bf16.mxu0 0
    %2846 = vmatpush1.bf16.msra.mxu0 0
    %2847 = vmatprep.subr.bf16.mxu0 0
    %2848 = vmatpush1.bf16.msra.mxu0 0
    %2849 = vmatprep.subr.bf16.mxu0 0
    %2850 = vmatpush1.bf16.msra.mxu0 0
    %2851 = vmatprep.subr.bf16.mxu0 0
    %2852 = vmatpush1.bf16.msra.mxu0 0
    %2853 = vmatprep.subr.bf16.mxu0 0
    %2854 = vmatpush1.bf16.msra.mxu0 0
    %2855 = vmatprep.subr.bf16.mxu0 0
    %2856 = vmatpush1.bf16.msra.mxu0 0
    %2857 = vmatprep.subr.bf16.mxu0 0
    %2858 = vmatpush1.bf16.msra.mxu0 0
    %2859 = vmatprep.subr.bf16.mxu0 0
    %2860 = vmatpush1.bf16.msra.mxu0 0
    %2861 = vmatprep.subr.bf16.mxu0 0
    %2862 = vmatpush1.bf16.msra.mxu0 0
    %2863 = vmatprep.subr.bf16.mxu0 0
    %2864 = vmatpush1.bf16.msra.mxu0 0
    %2865 = vmatprep.subr.bf16.mxu0 0
    %2866 = vmatpush1.bf16.msra.mxu0 0
    %2867 = vmatprep.subr.bf16.mxu0 0
    %2868 = vmatpush1.bf16.msra.mxu0 0
    %2869 = vmatprep.subr.bf16.mxu0 0
    %2870 = vmatpush1.bf16.msra.mxu0 0
    %2871 = vmatprep.subr.bf16.mxu0 0
    %2872 = vmatpush1.bf16.msra.mxu0 0
    %2873 = vmatprep.mubr.bf16.mxu0 0
    %2874 = vmatmul.mubr.bf16.gmra.mrb[0].mxu0 %v2836
    %v2875 = vpop.f32.mrb[0].mxu0
    %v2876 = vadd.f32 0.0, %v2875
    %v2877 = vpop.f32.mrb[0].mxu0
    %v2878 = vpop.f32.mrb[0].mxu0
    %v2879 = vpop.f32.mrb[0].mxu0
    %2880 = vdwg.mxu0
    %v2881 = vadd.f32 %v2536, %v2876
    %v2882 = vld [vmem:[%s1489] sm:$0x1]
    %v2884 = vlaneseq
    %v2885 = vshrl.u32 %v2884, 7
    %v2886 = vsub.s32 0, %v2885
    %v2887 = vrot.slane %v2882, %v2886
    %v2889 = vadd.f32 %v2881, %v2887
    %2890 = vst.msk [vmem:[#allocation2 + $0x8] sm:$0xff] %vm36, %v2889
    %v2891 = vld [vmem:[#allocation2] sm:$0xff]
    %v2892 = vld [vmem:[#allocation2 + $0x8] sm:$0xff]
    %v2893 = vadd.f32 %v31, %v2891
    %v2894 = vadd.f32 %v32, %v2892
    %s2895 = scalar_lea.vmem %s1, 2
    %v2896 = vld [vmem:[%s2895] sm:$0x1]
    %s2897 = scalar_lea.vmem %s1, 3
    %v2898 = vld [vmem:[%s2897] sm:$0x1]
    %v2899 = vsel %vm36, %v2893, 0.0
    %2900 = vadd.xlane.f32.xlu0 %v2899
    %v2901 = vpop.xlane.xlu0 %2900
    %v2902 = vsel %vm36, %v2894, 0.0
    %2903 = vadd.xlane.f32.xlu0 %v2902
    %v2904 = vpop.xlane.xlu0 %2903
    %v2905 = vmul.f32 %v2901, %v43
    %v2906 = vmul.f32 %v2904, %v43
    %v2907 = vsub.f32 %v2893, %v2905
    %v2908 = vsub.f32 %v2894, %v2906
    %v2909 = vmul.f32 %v2907, %v2907
    %v2910 = vmul.f32 %v2908, %v2908
    %v2911 = vsel %vm36, %v2909, 0.0
    %2912 = vadd.xlane.f32.xlu0 %v2911
    %v2913 = vpop.xlane.xlu0 %2912
    %v2914 = vsel %vm36, %v2910, 0.0
    %2915 = vadd.xlane.f32.xlu0 %v2914
    %v2916 = vpop.xlane.xlu0 %2915
    %v2917 = vmul.f32 %v2913, %v43
    %v2918 = vmul.f32 %v2916, %v43
    %v2919 = vadd.f32 %v2917, 1e-05
    %v2920 = vadd.f32 %v2918, 1e-05
    %v2921 = vrsqrt.pop %v2919
    %v2922 = vrsqrt.pop %v2920
    %v2923 = vmul.f32 %v2907, %v2921
    %v2924 = vmul.f32 %v2908, %v2922
    %v2926 = vlaneseq
    %v2927 = vshrl.u32 %v2926, 7
    %v2928 = vsub.s32 0, %v2927
    %v2929 = vrot.slane %v2896, %v2928
    %v2931 = vmul.f32 %v2923, %v2929
    %v2932 = vmul.f32 %v2924, %v2929
    %v2934 = vlaneseq
    %v2935 = vshrl.u32 %v2934, 7
    %v2936 = vsub.s32 0, %v2935
    %v2937 = vrot.slane %v2898, %v2936
    %v2939 = vadd.f32 %v2931, %v2937
    %v2940 = vadd.f32 %v2932, %v2937
    %v2941 = vpack.c.bf16 %v2940, %v2939
    %v2942 = vld [vmem:[%s6] sm:$0xf]
    %v2943 = vld [vmem:[%s6 + $0x4] sm:$0xf]
    %v2944 = vld [vmem:[%s6 + $0x8] sm:$0xf]
    %v2945 = vld [vmem:[%s6 + $0xc] sm:$0xf]
    %v2946 = vld [vmem:[%s3] sm:$0x1]
    %v2948 = vlaneseq
    %v2949 = vshrl.u32 %v2948, 7
    %v2950 = vsub.s32 0, %v2949
    %v2951 = vrot.slane %v2946, %v2950
    %v2957 = vunpack.c.l.b16 %v2942
    %v2958 = vunpack.c.l.b16 %v2943
    %v2959 = vunpack.c.l.b16 %v2944
    %v2960 = vunpack.c.l.b16 %v2945
    %v2961 = vpack.c.b16 %v2958, %v2957
    %v2962 = vpack.c.b16 %v2960, %v2959
    %v2966 = vsel %vm36, %v2941, 0
    %2968 = vmatprep.subr.bf16.mxu0 0
    %2969 = vmatpush1.bf16.msra.mxu0 %v2961
    %2970 = vmatprep.subr.bf16.mxu0 0
    %2971 = vmatpush1.bf16.msra.mxu0 %v2962
    %2972 = vmatprep.subr.bf16.mxu0 0
    %2973 = vmatpush1.bf16.msra.mxu0 0
    %2974 = vmatprep.subr.bf16.mxu0 0
    %2975 = vmatpush1.bf16.msra.mxu0 0
    %2976 = vmatprep.subr.bf16.mxu0 0
    %2977 = vmatpush1.bf16.msra.mxu0 0
    %2978 = vmatprep.subr.bf16.mxu0 0
    %2979 = vmatpush1.bf16.msra.mxu0 0
    %2980 = vmatprep.subr.bf16.mxu0 0
    %2981 = vmatpush1.bf16.msra.mxu0 0
    %2982 = vmatprep.subr.bf16.mxu0 0
    %2983 = vmatpush1.bf16.msra.mxu0 0
    %2984 = vmatprep.subr.bf16.mxu0 0
    %2985 = vmatpush1.bf16.msra.mxu0 0
    %2986 = vmatprep.subr.bf16.mxu0 0
    %2987 = vmatpush1.bf16.msra.mxu0 0
    %2988 = vmatprep.subr.bf16.mxu0 0
    %2989 = vmatpush1.bf16.msra.mxu0 0
    %2990 = vmatprep.subr.bf16.mxu0 0
    %2991 = vmatpush1.bf16.msra.mxu0 0
    %2992 = vmatprep.subr.bf16.mxu0 0
    %2993 = vmatpush1.bf16.msra.mxu0 0
    %2994 = vmatprep.subr.bf16.mxu0 0
    %2995 = vmatpush1.bf16.msra.mxu0 0
    %2996 = vmatprep.subr.bf16.mxu0 0
    %2997 = vmatpush1.bf16.msra.mxu0 0
    %2998 = vmatprep.subr.bf16.mxu0 0
    %2999 = vmatpush1.bf16.msra.mxu0 0
    %3000 = vmatprep.mubr.bf16.mxu0 0
    %3001 = vmatmul.mubr.bf16.gmra.mrb[0].mxu0 %v2966
    %v3002 = vpop.f32.mrb[0].mxu0
    %v3003 = vadd.f32 %v2951, %v3002
    %v3004 = vpop.f32.mrb[0].mxu0
    %v3005 = vpop.f32.mrb[0].mxu0
    %v3006 = vadd.f32 %v2951, %v3005
    %v3007 = vpop.f32.mrb[0].mxu0
    %3008 = vdwg.mxu0
    %v3009 = vmul.f32 %v3003, %v3003
    %v3010 = vmul.f32 %v3006, %v3006
    %v3011 = vmul.f32 %v3003, %v3009
    %v3012 = vmul.f32 %v3006, %v3010
    %v3013 = vmul.f32 %v3011, 0.044715
    %v3014 = vmul.f32 %v3012, 0.044715
    %v3015 = vadd.f32 %v3003, %v3013
    %v3016 = vadd.f32 %v3006, %v3014
    %v3017 = vmul.f32 %v3015, 0.7978846
    %v3018 = vmul.f32 %v3016, 0.7978846
    %v3019 = vtanh.pop %v3017
    %v3020 = vtanh.pop %v3018
    %v3021 = vadd.f32 %v3019, 1.0
    %v3022 = vadd.f32 %v3020, 1.0
    %v3023 = vmul.f32 %v3021, 0.5
    %v3024 = vmul.f32 %v3022, 0.5
    %v3025 = vmul.f32 %v3003, %v3023
    %v3026 = vmul.f32 %v3006, %v3024
    %v3027 = vpack.c.bf16 %v3026, %v3025
    %v3028 = vld [vmem:[%s7] sm:$0xf]
    %v3029 = vld [vmem:[%s7 + $0x4] sm:$0xf]
    %v3030 = vld [vmem:[%s7 + $0x8] sm:$0xf]
    %v3031 = vld [vmem:[%s7 + $0xc] sm:$0xf]
    %v3032 = vld [vmem:[%s7 + $0x10] sm:$0xf]
    %v3033 = vld [vmem:[%s7 + $0x14] sm:$0xf]
    %v3034 = vld [vmem:[%s7 + $0x18] sm:$0xf]
    %v3035 = vld [vmem:[%s7 + $0x1c] sm:$0xf]
    %s3036 = scalar_lea.vmem %s1, 5
    %v3037 = vld [vmem:[%s3036] sm:$0x1]
    %v3039 = vlaneseq
    %v3040 = vshrl.u32 %v3039, 7
    %v3041 = vsub.s32 0, %v3040
    %v3042 = vrot.slane %v3037, %v3041
    %v3052 = vunpack.c.l.b16 %v3028
    %v3053 = vunpack.c.l.b16 %v3029
    %v3054 = vunpack.c.l.b16 %v3030
    %v3055 = vunpack.c.l.b16 %v3031
    %v3056 = vunpack.c.l.b16 %v3032
    %v3057 = vunpack.c.l.b16 %v3033
    %v3058 = vunpack.c.l.b16 %v3034
    %v3059 = vunpack.c.l.b16 %v3035
    %v3060 = vpack.c.b16 %v3053, %v3052
    %v3061 = vpack.c.b16 %v3055, %v3054
    %v3062 = vpack.c.b16 %v3057, %v3056
    %v3063 = vpack.c.b16 %v3059, %v3058
    %vm3068 = vcmask 523264
    %v3070 = vsel %vm3068, %v3027, 0
    %3072 = vmatprep.subr.bf16.mxu0 0
    %3073 = vmatpush1.bf16.msra.mxu0 %v3060
    %3074 = vmatprep.subr.bf16.mxu0 0
    %3075 = vmatpush1.bf16.msra.mxu0 %v3061
    %3076 = vmatprep.subr.bf16.mxu0 0
    %3077 = vmatpush1.bf16.msra.mxu0 %v3062
    %3078 = vmatprep.subr.bf16.mxu0 0
    %3079 = vmatpush1.bf16.msra.mxu0 %v3063
    %3080 = vmatprep.subr.bf16.mxu0 0
    %3081 = vmatpush1.bf16.msra.mxu0 0
    %3082 = vmatprep.subr.bf16.mxu0 0
    %3083 = vmatpush1.bf16.msra.mxu0 0
    %3084 = vmatprep.subr.bf16.mxu0 0
    %3085 = vmatpush1.bf16.msra.mxu0 0
    %3086 = vmatprep.subr.bf16.mxu0 0
    %3087 = vmatpush1.bf16.msra.mxu0 0
    %3088 = vmatprep.subr.bf16.mxu0 0
    %3089 = vmatpush1.bf16.msra.mxu0 0
    %3090 = vmatprep.subr.bf16.mxu0 0
    %3091 = vmatpush1.bf16.msra.mxu0 0
    %3092 = vmatprep.subr.bf16.mxu0 0
    %3093 = vmatpush1.bf16.msra.mxu0 0
    %3094 = vmatprep.subr.bf16.mxu0 0
    %3095 = vmatpush1.bf16.msra.mxu0 0
    %3096 = vmatprep.subr.bf16.mxu0 0
    %3097 = vmatpush1.bf16.msra.mxu0 0
    %3098 = vmatprep.subr.bf16.mxu0 0
    %3099 = vmatpush1.bf16.msra.mxu0 0
    %3100 = vmatprep.subr.bf16.mxu0 0
    %3101 = vmatpush1.bf16.msra.mxu0 0
    %3102 = vmatprep.subr.bf16.mxu0 0
    %3103 = vmatpush1.bf16.msra.mxu0 0
    %3104 = vmatprep.mubr.bf16.mxu0 0
    %3105 = vmatmul.mubr.bf16.gmra.mrb[0].mxu0 %v3070
    %v3106 = vpop.f32.mrb[0].mxu0
    %v3107 = vadd.f32 %v3042, %v3106
    %v3108 = vpop.f32.mrb[0].mxu0
    %v3109 = vpop.f32.mrb[0].mxu0
    %v3110 = vadd.f32 %v3042, %v3109
    %v3111 = vpop.f32.mrb[0].mxu0
    %3112 = vdwg.mxu0
    %v3113 = vadd.f32 %v2893, %v3107
    %v3114 = vadd.f32 %v2894, %v3110
    %3115 = vst.msk [vmem:[#allocation3] sm:$0xff] %vm36, %v3113
    %3116 = vst.msk [vmem:[#allocation3 + $0x8] sm:$0xff] %vm36, %v3114
    // Predicated region
    $region34: #{tpu_custom_call.1} parent=1 // pred_check
      _
    $region35: #{tpu_custom_call.1} parent=1 // pred_check_branch
      %3118 = sbr.rel (0) target = $region37
    $region36: #{tpu_custom_call.1} parent=1 // pred_region
      %s3120 = ssub.s32 256, 256
      %3121 = vsyncadd [#allocation4], %s3120
      %s3122 = sshll.u32 [#allocation3], 4
      %s3123 = int_to_ptr.vmem [resolvable:$true] %s3122
      %3128 = dma.vmem_to_hbm [thread:$0]  %s3123, 256, %s8, [#allocation4], 128, 128, 8
    $region37: #{tpu_custom_call.1} parent=1 // pred_fallthru
      _
    // Predicated region
    $region38: #{tpu_custom_call.1} parent=1 // pred_check
      _
    $region39: #{tpu_custom_call.1} parent=1 // pred_check_branch
      %3130 = sbr.rel (0) target = $region41
    $region40: #{tpu_custom_call.1} parent=1 // pred_region
      %3131 = dma.done [#allocation4], 256
    $region41: #{tpu_custom_call.1} parent=1 // pred_fallthru
      _
    %3132 = vsyncpa [#allocation4], 1

</llo_original>
